<compile_context>
chip_gen: v7x
topology: tpu7x:2x2x1
jax: 0.10.0
libtpu: 0.0.40
codegen_flags: <defaults>
</compile_context>

<pallas_src>
import functools

import jax
import jax.numpy as jnp
import numpy as np
from jax.experimental import pallas as pl
from jax.experimental.pallas import tpu as pltpu


def _round_up(x, m):
    return (x + m - 1) // m * m


# ----------------------------------------------------------------------------
# Pallas kernel: base-network forward (conv->ReLU->pool->FC) + anchor mean/std
# ----------------------------------------------------------------------------
def _encoder_kernel(patches_ref, wc_ref, bc_ref, wf_ref, bf_ref,
                    mu_ref, std_ref, pool_acc, logits_acc,
                    *, n_anchors, inv_hw):
    a = pl.program_id(1)                      # anchor index
    h = pl.program_id(2)                      # HW-tile index
    last_a = pl.num_programs(1) - 1
    last_h = pl.num_programs(2) - 1

    @pl.when(h == 0)
    def _():                                  # reset pooled-sum accumulator
        pool_acc[...] = jnp.zeros_like(pool_acc)

    p = patches_ref[...]                      # (tile_img, tile_hw, Kp)
    ti, th, kp = p.shape
    fp = wc_ref.shape[1]

    # One large 2D MXU matmul over the whole (img, hw) tile.
    conv = jnp.dot(p.reshape(ti * th, kp), wc_ref[...],
                   preferred_element_type=jnp.float32)        # (ti*th, Fp)
    act = jnp.maximum(conv + bc_ref[...], 0.0)                # bias + ReLU (VPU)

    # Fused partial global-average-pool for this HW tile.
    pool_acc[...] += act.reshape(ti, th, fp).sum(axis=1)      # (ti, Fp)

    @pl.when(h == last_h)
    def _():                                  # finish pooling + FC for anchor a
        pooled = pool_acc[...] * inv_hw                       # (ti, Fp)
        logits = jnp.dot(pooled, wf_ref[...],
                         preferred_element_type=jnp.float32) + bf_ref[...]
        logits_acc[a] = logits                                # (ti, Dp)

    @pl.when(jnp.logical_and(h == last_h, a == last_a))
    def _():                                  # anchor-ensemble mean / std
        L = logits_acc[...]                                   # (n_anchors, ti, Dp)
        mu = L.mean(axis=0)
        mu_ref[...] = mu.astype(mu_ref.dtype)
        if n_anchors > 1:
            d = L - mu[None]
            var = (d * d).sum(axis=0) * (1.0 / (n_anchors - 1))  # unbiased (torch.std)
            std_ref[...] = jnp.sqrt(var).astype(std_ref.dtype)
        else:
            # torch.std(ddof=1) with one sample is NaN; return 0 instead.  This
            # output is never exposed: return_std with n_anchors==1 raises.
            std_ref[...] = jnp.zeros_like(std_ref)


# ----------------------------------------------------------------------------
# Plain-JAX glue (fused by jax.jit around the whole forward)
# ----------------------------------------------------------------------------
def _im2col_nchw(x, k=3, pad=1):
    """(N, C, H, W) -> (N, H*W, C*k*k) patches (stride 1, zero pad)."""
    N, C, H, W = x.shape
    xp = jnp.pad(x, ((0, 0), (0, 0), (pad, pad), (pad, pad)))
    taps = []
    for i in range(k):
        for j in range(k):
            taps.append(xp[:, :, i:i + H, j:j + W])          # (N, C, H, W)
    p = jnp.stack(taps, axis=2)                              # (N, C, k*k, H, W)
    p = p.transpose(0, 3, 4, 1, 2).reshape(N, H * W, C * k * k)
    return p


def create_anchored_batch(x, key, n_anchors, anchors=None):
    """Inference-mode anchoring of deltaUQ.create_anchored_batch."""
    n_img = x.shape[0]
    k1, k2 = jax.random.split(key)
    if anchors is None:
        anchors = x[jax.random.permutation(k1, n_img)]        # x[randperm(n_img)]
    sel = jax.random.permutation(k2, n_anchors)               # anchors[randperm(n_anchors)]
    A = jnp.repeat(anchors[sel], n_img, axis=0)               # repeat_interleave(., n_img, 0)
    refs = A
    diff = jnp.tile(x, (n_anchors, 1, 1, 1)) - A
    return jnp.concatenate([refs, diff], axis=1)              # channel concat (NCHW)


@functools.partial(jax.jit,
                   static_argnames=("n_anchors", "tile_img", "tile_hw"))
def _forward_impl(x, w_conv, b_conv, w_fc, b_fc, key, anchors,
                  n_anchors, tile_img, tile_hw):
    a_batch = create_anchored_batch(x, key, n_anchors, anchors=anchors)  # (A*n_img, 2C, H, W)
    _, C2, H, W = a_batch.shape
    n_img = x.shape[0]
    HW = H * W
    F = w_conv.shape[0]
    D = w_fc.shape[0]
    K = C2 * 9

    # ---- padding policy ------------------------------------------------------
    # K: only to a multiple of 8 (sublane) and exposed as a *full-extent* block
    #    dim -> minimal HBM traffic for the (dominant) patch stream.
    # F, D: to 128 lanes -> lane-dense MXU outputs and unmasked vst.
    # n_img: to the image tile (8 sublanes of the output).
    Kp = _round_up(K, 8)
    Fp, Dp = _round_up(F, 128), _round_up(D, 128)
    if HW % tile_hw != 0:
        tile_hw = HW                         # fall back: full spatial extent per step
    tile_img = min(tile_img, _round_up(n_img, 8))
    n_img_pad = _round_up(n_img, tile_img)

    patches = _im2col_nchw(a_batch)                            # (A*n_img, HW, K)
    patches = patches.reshape(n_anchors, n_img, HW, K)
    patches = jnp.pad(patches,
                      ((0, 0), (0, n_img_pad - n_img), (0, 0), (0, Kp - K)))

    # Zero-padded weights: padded K rows / F cols / D cols contribute exactly 0.
    wc = jnp.pad(w_conv.reshape(F, K).T, ((0, Kp - K), (0, Fp - F)))   # (Kp, Fp)
    bc = jnp.pad(b_conv.reshape(1, F), ((0, 0), (0, Fp - F)))          # (1, Fp)
    wf = jnp.pad(w_fc.T, ((0, Fp - F), (0, Dp - D)))                   # (Fp, Dp)
    bf = jnp.pad(b_fc.reshape(1, D), ((0, 0), (0, Dp - D)))            # (1, Dp)

    grid = (n_img_pad // tile_img, n_anchors, HW // tile_hw)

    kernel = functools.partial(_encoder_kernel,
                               n_anchors=n_anchors, inv_hw=1.0 / HW)

    mu_p, std_p = pl.pallas_call(
        kernel,
        out_shape=(jax.ShapeDtypeStruct((n_img_pad, Dp), jnp.float32),
                   jax.ShapeDtypeStruct((n_img_pad, Dp), jnp.float32)),
        grid_spec=pltpu.PrefetchScalarGridSpec(
            num_scalar_prefetch=0,
            grid=grid,
            in_specs=[
                # patches: (anchor, img, hw, K); anchor dim squeezed away,
                # K block = full array extent (Kp, multiple of 8).
                pl.BlockSpec((None, tile_img, tile_hw, Kp),
                             lambda i, a, h: (a, i, h, 0)),
                # weights / biases: constant index_map -> fetched once, stay
                # VMEM-resident across the whole grid.
                pl.BlockSpec((Kp, Fp), lambda i, a, h: (0, 0)),
                pl.BlockSpec((1, Fp), lambda i, a, h: (0, 0)),
                pl.BlockSpec((Fp, Dp), lambda i, a, h: (0, 0)),
                pl.BlockSpec((1, Dp), lambda i, a, h: (0, 0)),
            ],
            out_specs=(
                pl.BlockSpec((tile_img, Dp), lambda i, a, h: (i, 0)),
                pl.BlockSpec((tile_img, Dp), lambda i, a, h: (i, 0)),
            ),
            scratch_shapes=[
                pltpu.VMEM((tile_img, Fp), jnp.float32),            # pooled-sum acc
                pltpu.VMEM((n_anchors, tile_img, Dp), jnp.float32), # per-anchor logits
            ],
        ),
        compiler_params=pltpu.CompilerParams(
            dimension_semantics=("parallel", "arbitrary", "arbitrary"),
            vmem_limit_bytes=32 * 1024 * 1024),
    )(patches, wc, bc, wf, bf)

    return mu_p[:n_img, :D], std_p[:n_img, :D]


def delta_uq_encoder_forward(x, params, *, anchors=None, n_anchors=1,
                             return_std=False, key=None,
                             tile_img=8, tile_hw=256):
    if n_anchors == 1 and return_std:
        # Mirrors the PyTorch module exactly: `raise Warning(...)` is an
        # exception there too (Warning subclasses Exception).
        raise Warning("Use n_anchor>1, std. dev cannot be computed!")
    if key is None:
        key = jax.random.PRNGKey(0)

    w_conv, b_conv, w_fc, b_fc = params                       # torch-shaped params
    mu, std = _forward_impl(x, w_conv, b_conv, w_fc, b_fc, key, anchors,
                            n_anchors, tile_img, tile_hw)
    if return_std:
        return mu, std
    return mu


# Pure-JAX reference (mirrors the PyTorch semantics) for a correctness check.
def _reference(x, params, key, n_anchors):
    w_conv, b_conv, w_fc, b_fc = params
    a_batch = create_anchored_batch(x, key, n_anchors)
    conv = jax.lax.conv_general_dilated(
        a_batch, w_conv, window_strides=(1, 1), padding="SAME",
        dimension_numbers=("NCHW", "OIHW", "NCHW"))
    act = jnp.maximum(conv + b_conv[None, :, None, None], 0.0)
    pooled = jnp.mean(act, axis=(2, 3))
    p = pooled @ w_fc.T + b_fc
    p = p.reshape(n_anchors, x.shape[0], -1)
    return p.mean(0), p.std(0, ddof=1)


if __name__ == "__main__":
    key = jax.random.PRNGKey(0)
    kx, kw1, kb1, kw2, kb2, kanchor = jax.random.split(key, 6)

    n_img, C, H, W = 2, 3, 16, 16          # base network takes 2*C = 6 input channels
    F, D = 32, 16
    n_anchors = 2

    x = jax.random.normal(kx, (n_img, C, H, W), dtype=jnp.float32)
    w_conv = 0.1 * jax.random.normal(kw1, (F, 2 * C, 3, 3), dtype=jnp.float32)
    b_conv = 0.1 * jax.random.normal(kb1, (F,), dtype=jnp.float32)
    w_fc = 0.1 * jax.random.normal(kw2, (D, F), dtype=jnp.float32)
    b_fc = 0.1 * jax.random.normal(kb2, (D,), dtype=jnp.float32)
    params = (w_conv, b_conv, w_fc, b_fc)

    mu, std = delta_uq_encoder_forward(
        x, params, n_anchors=n_anchors, return_std=True, key=kanchor)
    jax.block_until_ready((mu, std))

    mu_ref, std_ref = _reference(x, params, kanchor, n_anchors)
    np.testing.assert_allclose(np.asarray(mu), np.asarray(mu_ref), rtol=1e-3, atol=1e-3)
    np.testing.assert_allclose(np.asarray(std), np.asarray(std_ref), rtol=1e-3, atol=1e-3)

    print("KERNEL_OK")
</pallas_src>

<mosaic_0001>
module attributes {stable_mosaic.version = 11 : i64} {
  func.func @_encoder_kernel(%arg0: i32, %arg1: i32, %arg2: i32, %arg3: memref<1x8x256x56xf32, #tpu.memory_space<vmem>>, %arg4: memref<56x128xf32, #tpu.memory_space<vmem>>, %arg5: memref<1x128xf32, #tpu.memory_space<vmem>>, %arg6: memref<128x128xf32, #tpu.memory_space<vmem>>, %arg7: memref<1x128xf32, #tpu.memory_space<vmem>>, %arg8: memref<8x128xf32, #tpu.memory_space<vmem>>, %arg9: memref<8x128xf32, #tpu.memory_space<vmem>>, %arg10: memref<8x128xf32, #tpu.memory_space<vmem>>, %arg11: memref<2x8x128xf32, #tpu.memory_space<vmem>>) attributes {dimension_semantics = [#tpu.dimension_semantics<parallel>, #tpu.dimension_semantics<arbitrary>, #tpu.dimension_semantics<arbitrary>], iteration_bounds = array<i64: 1, 2, 1>, scalar_prefetch = 0 : i64, scratch_operands = 2 : i64, tpu.core_type = #tpu.core_type<tc>, window_params = [{transform_indices = @transform_0, window_bounds = array<i64: 1, 8, 256, 56>}, {pipeline_mode = #tpu.pipeline_mode<synchronous>, transform_indices = @transform_1, window_bounds = array<i64: 56, 128>}, {pipeline_mode = #tpu.pipeline_mode<synchronous>, transform_indices = @transform_2, window_bounds = array<i64: 1, 128>}, {pipeline_mode = #tpu.pipeline_mode<synchronous>, transform_indices = @transform_3, window_bounds = array<i64: 128, 128>}, {pipeline_mode = #tpu.pipeline_mode<synchronous>, transform_indices = @transform_4, window_bounds = array<i64: 1, 128>}, {transform_indices = @transform_5, window_bounds = array<i64: 8, 128>}, {transform_indices = @transform_6, window_bounds = array<i64: 8, 128>}]} {
    %c0_i32 = arith.constant 0 : i32
    %0 = arith.cmpi eq, %arg2, %c0_i32 : i32
    %1 = arith.extui %0 : i1 to i32
    %c0_i32_0 = arith.constant 0 : i32
    %2 = arith.cmpi ne, %1, %c0_i32_0 : i32
    scf.if %2 {
      %cst_18 = arith.constant 0.000000e+00 : f32
      %26 = vector.broadcast %cst_18 : f32 to vector<8x128xf32>
      %c0_19 = arith.constant 0 : index
      %c0_20 = arith.constant 0 : index
      %27 = vector.load %arg10[%c0_19, %c0_20] : memref<8x128xf32, #tpu.memory_space<vmem>>, vector<8x128xf32>
      tpu.vector_store %arg10[%c0_19, %c0_20], %26 {strides = array<i32>} : memref<8x128xf32, #tpu.memory_space<vmem>>, vector<8x128xf32>,
    } else {
    }
    %c0 = arith.constant 0 : index
    %c0_1 = arith.constant 0 : index
    %c0_2 = arith.constant 0 : index
    %c0_3 = arith.constant 0 : index
    %3 = vector.load %arg3[%c0, %c0_1, %c0_2, %c0_3] : memref<1x8x256x56xf32, #tpu.memory_space<vmem>>, vector<1x8x256x56xf32>
    %4 = vector.shape_cast %3 : vector<1x8x256x56xf32> to vector<8x256x56xf32>
    %5 = vector.shape_cast %4 : vector<8x256x56xf32> to vector<2048x56xf32>
    %c0_4 = arith.constant 0 : index
    %c0_5 = arith.constant 0 : index
    %6 = vector.load %arg4[%c0_4, %c0_5] : memref<56x128xf32, #tpu.memory_space<vmem>>, vector<56x128xf32>
    %cst = arith.constant dense<0.000000e+00> : vector<2048x128xf32>
    %7 = tpu.matmul %5, %6, %cst {dimension_numbers = #tpu.dot_dimension_numbers<[1], [0], [0], [1], [0, 0, 1, 1], [], []>} : vector<2048x56xf32>, vector<56x128xf32>, vector<2048x128xf32> -> vector<2048x128xf32>
    %c0_6 = arith.constant 0 : index
    %c0_7 = arith.constant 0 : index
    %8 = vector.load %arg5[%c0_6, %c0_7] : memref<1x128xf32, #tpu.memory_space<vmem>>, vector<1x128xf32>
    %9 = vector.broadcast %8 : vector<1x128xf32> to vector<2048x128xf32>
    %10 = arith.addf %7, %9 : vector<2048x128xf32>
    %cst_8 = arith.constant 0.000000e+00 : f32
    %11 = vector.broadcast %cst_8 : f32 to vector<2048x128xf32>
    %12 = arith.maximumf %10, %11 : vector<2048x128xf32>
    %c0_9 = arith.constant 0 : index
    %c0_10 = arith.constant 0 : index
    %13 = vector.load %arg10[%c0_9, %c0_10] : memref<8x128xf32, #tpu.memory_space<vmem>>, vector<8x128xf32>
    %14 = vector.shape_cast %12 : vector<2048x128xf32> to vector<8x256x128xf32>
    %cst_11 = arith.constant dense<0.000000e+00> : vector<8x128xf32>
    %15 = vector.multi_reduction <add>, %14, %cst_11 [1] : vector<8x256x128xf32> to vector<8x128xf32>
    %16 = arith.addf %13, %15 : vector<8x128xf32>
    %c0_12 = arith.constant 0 : index
    %c0_13 = arith.constant 0 : index
    %17 = vector.load %arg10[%c0_12, %c0_13] : memref<8x128xf32, #tpu.memory_space<vmem>>, vector<8x128xf32>
    tpu.vector_store %arg10[%c0_12, %c0_13], %16 {strides = array<i32>} : memref<8x128xf32, #tpu.memory_space<vmem>>, vector<8x128xf32>,
    %c0_i32_14 = arith.constant 0 : i32
    %18 = arith.cmpi eq, %arg2, %c0_i32_14 : i32
    %19 = arith.extui %18 : i1 to i32
    %c0_i32_15 = arith.constant 0 : i32
    %20 = arith.cmpi ne, %19, %c0_i32_15 : i32
    scf.if %20 {
      %c0_18 = arith.constant 0 : index
      %c0_19 = arith.constant 0 : index
      %26 = vector.load %arg10[%c0_18, %c0_19] : memref<8x128xf32, #tpu.memory_space<vmem>>, vector<8x128xf32>
      %cst_20 = arith.constant 3.906250e-03 : f32
      %27 = vector.broadcast %cst_20 : f32 to vector<8x128xf32>
      %28 = arith.mulf %26, %27 : vector<8x128xf32>
      %c0_21 = arith.constant 0 : index
      %c0_22 = arith.constant 0 : index
      %29 = vector.load %arg6[%c0_21, %c0_22] : memref<128x128xf32, #tpu.memory_space<vmem>>, vector<128x128xf32>
      %cst_23 = arith.constant dense<0.000000e+00> : vector<8x128xf32>
      %30 = tpu.matmul %28, %29, %cst_23 {dimension_numbers = #tpu.dot_dimension_numbers<[1], [0], [0], [1], [0, 0, 1, 1], [], []>} : vector<8x128xf32>, vector<128x128xf32>, vector<8x128xf32> -> vector<8x128xf32>
      %c0_24 = arith.constant 0 : index
      %c0_25 = arith.constant 0 : index
      %31 = vector.load %arg7[%c0_24, %c0_25] : memref<1x128xf32, #tpu.memory_space<vmem>>, vector<1x128xf32>
      %32 = vector.broadcast %31 : vector<1x128xf32> to vector<8x128xf32>
      %33 = arith.addf %30, %32 : vector<8x128xf32>
      %34 = arith.index_cast %arg1 : i32 to index
      %c0_26 = arith.constant 0 : index
      %c0_27 = arith.constant 0 : index
      %35 = vector.load %arg11[%34, %c0_26, %c0_27] : memref<2x8x128xf32, #tpu.memory_space<vmem>>, vector<1x8x128xf32>
      %36 = vector.shape_cast %35 : vector<1x8x128xf32> to vector<8x128xf32>
      %37 = vector.shape_cast %33 : vector<8x128xf32> to vector<1x8x128xf32>
      tpu.vector_store %arg11[%34, %c0_26, %c0_27], %37 {strides = array<i32>} : memref<2x8x128xf32, #tpu.memory_space<vmem>>, vector<1x8x128xf32>,
    } else {
    }
    %c0_i32_16 = arith.constant 0 : i32
    %21 = arith.cmpi eq, %arg2, %c0_i32_16 : i32
    %c1_i32 = arith.constant 1 : i32
    %22 = arith.cmpi eq, %arg1, %c1_i32 : i32
    %23 = arith.andi %21, %22 : i1
    %24 = arith.extui %23 : i1 to i32
    %c0_i32_17 = arith.constant 0 : i32
    %25 = arith.cmpi ne, %24, %c0_i32_17 : i32
    scf.if %25 {
      %c0_18 = arith.constant 0 : index
      %c0_19 = arith.constant 0 : index
      %c0_20 = arith.constant 0 : index
      %26 = vector.load %arg11[%c0_18, %c0_19, %c0_20] : memref<2x8x128xf32, #tpu.memory_space<vmem>>, vector<2x8x128xf32>
      %cst_21 = arith.constant dense<0.000000e+00> : vector<8x128xf32>
      %27 = vector.multi_reduction <add>, %26, %cst_21 [0] : vector<2x8x128xf32> to vector<8x128xf32>
      %cst_22 = arith.constant 2.000000e+00 : f32
      %28 = vector.broadcast %cst_22 : f32 to vector<8x128xf32>
      %29 = arith.divf %27, %28 : vector<8x128xf32>
      %c0_23 = arith.constant 0 : index
      %c0_24 = arith.constant 0 : index
      %30 = vector.load %arg8[%c0_23, %c0_24] : memref<8x128xf32, #tpu.memory_space<vmem>>, vector<8x128xf32>
      tpu.vector_store %arg8[%c0_23, %c0_24], %29 {strides = array<i32>} : memref<8x128xf32, #tpu.memory_space<vmem>>, vector<8x128xf32>,
      %31 = vector.shape_cast %29 : vector<8x128xf32> to vector<1x8x128xf32>
      %32 = vector.broadcast %31 : vector<1x8x128xf32> to vector<2x8x128xf32>
      %33 = arith.subf %26, %32 : vector<2x8x128xf32>
      %34 = arith.mulf %33, %33 : vector<2x8x128xf32>
      %cst_25 = arith.constant dense<0.000000e+00> : vector<8x128xf32>
      %35 = vector.multi_reduction <add>, %34, %cst_25 [0] : vector<2x8x128xf32> to vector<8x128xf32>
      %cst_26 = arith.constant 1.000000e+00 : f32
      %36 = vector.broadcast %cst_26 : f32 to vector<8x128xf32>
      %37 = arith.mulf %35, %36 : vector<8x128xf32>
      %38 = math.sqrt %37 : vector<8x128xf32>
      %c0_27 = arith.constant 0 : index
      %c0_28 = arith.constant 0 : index
      %39 = vector.load %arg9[%c0_27, %c0_28] : memref<8x128xf32, #tpu.memory_space<vmem>>, vector<8x128xf32>
      tpu.vector_store %arg9[%c0_27, %c0_28], %38 {strides = array<i32>} : memref<8x128xf32, #tpu.memory_space<vmem>>, vector<8x128xf32>,
    } else {
    }
    return
  }
  func.func @transform_0(%arg0: i32, %arg1: i32, %arg2: i32) -> (i32, i32, i32, i32) {
    %c0_i32 = arith.constant 0 : i32
    %c0_i32_0 = arith.constant 0 : i32
    return %arg1, %arg0, %arg2, %c0_i32 : i32, i32, i32, i32
  }
  func.func @transform_1(%arg0: i32, %arg1: i32, %arg2: i32) -> (i32, i32) {
    %c0_i32 = arith.constant 0 : i32
    %c0_i32_0 = arith.constant 0 : i32
    %c0_i32_1 = arith.constant 0 : i32
    return %c0_i32, %c0_i32_0 : i32, i32
  }
  func.func @transform_2(%arg0: i32, %arg1: i32, %arg2: i32) -> (i32, i32) {
    %c0_i32 = arith.constant 0 : i32
    %c0_i32_0 = arith.constant 0 : i32
    %c0_i32_1 = arith.constant 0 : i32
    return %c0_i32, %c0_i32_0 : i32, i32
  }
  func.func @transform_3(%arg0: i32, %arg1: i32, %arg2: i32) -> (i32, i32) {
    %c0_i32 = arith.constant 0 : i32
    %c0_i32_0 = arith.constant 0 : i32
    %c0_i32_1 = arith.constant 0 : i32
    return %c0_i32, %c0_i32_0 : i32, i32
  }
  func.func @transform_4(%arg0: i32, %arg1: i32, %arg2: i32) -> (i32, i32) {
    %c0_i32 = arith.constant 0 : i32
    %c0_i32_0 = arith.constant 0 : i32
    %c0_i32_1 = arith.constant 0 : i32
    return %c0_i32, %c0_i32_0 : i32, i32
  }
  func.func @transform_5(%arg0: i32, %arg1: i32, %arg2: i32) -> (i32, i32) {
    %c0_i32 = arith.constant 0 : i32
    %c0_i32_0 = arith.constant 0 : i32
    return %arg0, %c0_i32 : i32, i32
  }
  func.func @transform_6(%arg0: i32, %arg1: i32, %arg2: i32) -> (i32, i32) {
    %c0_i32 = arith.constant 0 : i32
    %c0_i32_0 = arith.constant 0 : i32
    return %arg0, %c0_i32 : i32, i32
  }
}

</mosaic_0001>

<llo_original>
// kernel: sub.1
$region0: #{sub.1}
  #allocation0 [shape = 's32[1]{0}', space=sflag, size = 0x4, scoped, tag = 'scoped memory for sub.1']
  %s0 = inlined_call_operand.vmem [shape: f32[4,3,16,16], index: 0, kind: input, shape index: {}]
  %s1 = inlined_call_operand.vmem [shape: f32[4,3,16,16], index: 1, kind: input, shape index: {}]
  %s2 = inlined_call_operand.vmem [shape: f32[4,3,16,16], index: 2, kind: output, shape index: {}]
  %v3 = vld [vmem:[%s0] sm:$0xff]
  %v4 = vld [vmem:[%s1] sm:$0xff]
  %5 = xla_tuple %v3, %v4
  %6 = xla_tuple %5
  %v7 = vsub.f32 %v3, %v4
  %8 = xla_tuple %v7
  %9 = vst [vmem:[%s2] sm:$0xff] %v7
  %s10 = scalar_lea.vmem %s0, 48
  %v11 = vld [vmem:[%s10] sm:$0xff]
  %s12 = scalar_lea.vmem %s1, 48
  %v13 = vld [vmem:[%s12] sm:$0xff]
  %14 = xla_tuple %v11, %v13
  %15 = xla_tuple %14
  %v16 = vsub.f32 %v11, %v13
  %17 = xla_tuple %v16
  %s18 = scalar_lea.vmem %s2, 48
  %19 = vst [vmem:[%s18] sm:$0xff] %v16
  %s20 = scalar_lea.vmem %s0, 96
  %v21 = vld [vmem:[%s20] sm:$0xff]
  %s22 = scalar_lea.vmem %s1, 96
  %v23 = vld [vmem:[%s22] sm:$0xff]
  %24 = xla_tuple %v21, %v23
  %25 = xla_tuple %24
  %v26 = vsub.f32 %v21, %v23
  %27 = xla_tuple %v26
  %s28 = scalar_lea.vmem %s2, 96
  %29 = vst [vmem:[%s28] sm:$0xff] %v26
  %s30 = scalar_lea.vmem %s0, 144
  %v31 = vld [vmem:[%s30] sm:$0xff]
  %s32 = scalar_lea.vmem %s1, 144
  %v33 = vld [vmem:[%s32] sm:$0xff]
  %34 = xla_tuple %v31, %v33
  %35 = xla_tuple %34
  %v36 = vsub.f32 %v31, %v33
  %37 = xla_tuple %v36
  %s38 = scalar_lea.vmem %s2, 144
  %39 = vst [vmem:[%s38] sm:$0xff] %v36
  %s40 = scalar_lea.vmem %s0, 16
  %v41 = vld [vmem:[%s40] sm:$0xff]
  %s42 = scalar_lea.vmem %s1, 16
  %v43 = vld [vmem:[%s42] sm:$0xff]
  %44 = xla_tuple %v41, %v43
  %45 = xla_tuple %44
  %v46 = vsub.f32 %v41, %v43
  %47 = xla_tuple %v46
  %s48 = scalar_lea.vmem %s2, 16
  %49 = vst [vmem:[%s48] sm:$0xff] %v46
  %s50 = scalar_lea.vmem %s0, 64
  %v51 = vld [vmem:[%s50] sm:$0xff]
  %s52 = scalar_lea.vmem %s1, 64
  %v53 = vld [vmem:[%s52] sm:$0xff]
  %54 = xla_tuple %v51, %v53
  %55 = xla_tuple %54
  %v56 = vsub.f32 %v51, %v53
  %57 = xla_tuple %v56
  %s58 = scalar_lea.vmem %s2, 64
  %59 = vst [vmem:[%s58] sm:$0xff] %v56
  %s60 = scalar_lea.vmem %s0, 112
  %v61 = vld [vmem:[%s60] sm:$0xff]
  %s62 = scalar_lea.vmem %s1, 112
  %v63 = vld [vmem:[%s62] sm:$0xff]
  %64 = xla_tuple %v61, %v63
  %65 = xla_tuple %64
  %v66 = vsub.f32 %v61, %v63
  %67 = xla_tuple %v66
  %s68 = scalar_lea.vmem %s2, 112
  %69 = vst [vmem:[%s68] sm:$0xff] %v66
  %s70 = scalar_lea.vmem %s0, 160
  %v71 = vld [vmem:[%s70] sm:$0xff]
  %s72 = scalar_lea.vmem %s1, 160
  %v73 = vld [vmem:[%s72] sm:$0xff]
  %74 = xla_tuple %v71, %v73
  %75 = xla_tuple %74
  %v76 = vsub.f32 %v71, %v73
  %77 = xla_tuple %v76
  %s78 = scalar_lea.vmem %s2, 160
  %79 = vst [vmem:[%s78] sm:$0xff] %v76
  %s80 = scalar_lea.vmem %s0, 32
  %v81 = vld [vmem:[%s80] sm:$0xff]
  %s82 = scalar_lea.vmem %s1, 32
  %v83 = vld [vmem:[%s82] sm:$0xff]
  %84 = xla_tuple %v81, %v83
  %85 = xla_tuple %84
  %v86 = vsub.f32 %v81, %v83
  %87 = xla_tuple %v86
  %s88 = scalar_lea.vmem %s2, 32
  %89 = vst [vmem:[%s88] sm:$0xff] %v86
  %s90 = scalar_lea.vmem %s0, 80
  %v91 = vld [vmem:[%s90] sm:$0xff]
  %s92 = scalar_lea.vmem %s1, 80
  %v93 = vld [vmem:[%s92] sm:$0xff]
  %94 = xla_tuple %v91, %v93
  %95 = xla_tuple %94
  %v96 = vsub.f32 %v91, %v93
  %97 = xla_tuple %v96
  %s98 = scalar_lea.vmem %s2, 80
  %99 = vst [vmem:[%s98] sm:$0xff] %v96
  %s100 = scalar_lea.vmem %s0, 128
  %v101 = vld [vmem:[%s100] sm:$0xff]
  %s102 = scalar_lea.vmem %s1, 128
  %v103 = vld [vmem:[%s102] sm:$0xff]
  %104 = xla_tuple %v101, %v103
  %105 = xla_tuple %104
  %v106 = vsub.f32 %v101, %v103
  %107 = xla_tuple %v106
  %s108 = scalar_lea.vmem %s2, 128
  %109 = vst [vmem:[%s108] sm:$0xff] %v106
  %s110 = scalar_lea.vmem %s0, 176
  %v111 = vld [vmem:[%s110] sm:$0xff]
  %s112 = scalar_lea.vmem %s1, 176
  %v113 = vld [vmem:[%s112] sm:$0xff]
  %114 = xla_tuple %v111, %v113
  %115 = xla_tuple %114
  %v116 = vsub.f32 %v111, %v113
  %117 = xla_tuple %v116
  %s118 = scalar_lea.vmem %s2, 176
  %119 = vst [vmem:[%s118] sm:$0xff] %v116
  %s120 = scalar_lea.vmem %s0, 8
  %v121 = vld [vmem:[%s120] sm:$0xff]
  %s122 = scalar_lea.vmem %s1, 8
  %v123 = vld [vmem:[%s122] sm:$0xff]
  %124 = xla_tuple %v121, %v123
  %125 = xla_tuple %124
  %v126 = vsub.f32 %v121, %v123
  %127 = xla_tuple %v126
  %s128 = scalar_lea.vmem %s2, 8
  %129 = vst [vmem:[%s128] sm:$0xff] %v126
  %s130 = scalar_lea.vmem %s0, 56
  %v131 = vld [vmem:[%s130] sm:$0xff]
  %s132 = scalar_lea.vmem %s1, 56
  %v133 = vld [vmem:[%s132] sm:$0xff]
  %134 = xla_tuple %v131, %v133
  %135 = xla_tuple %134
  %v136 = vsub.f32 %v131, %v133
  %137 = xla_tuple %v136
  %s138 = scalar_lea.vmem %s2, 56
  %139 = vst [vmem:[%s138] sm:$0xff] %v136
  %s140 = scalar_lea.vmem %s0, 104
  %v141 = vld [vmem:[%s140] sm:$0xff]
  %s142 = scalar_lea.vmem %s1, 104
  %v143 = vld [vmem:[%s142] sm:$0xff]
  %144 = xla_tuple %v141, %v143
  %145 = xla_tuple %144
  %v146 = vsub.f32 %v141, %v143
  %147 = xla_tuple %v146
  %s148 = scalar_lea.vmem %s2, 104
  %149 = vst [vmem:[%s148] sm:$0xff] %v146
  %s150 = scalar_lea.vmem %s0, 152
  %v151 = vld [vmem:[%s150] sm:$0xff]
  %s152 = scalar_lea.vmem %s1, 152
  %v153 = vld [vmem:[%s152] sm:$0xff]
  %154 = xla_tuple %v151, %v153
  %155 = xla_tuple %154
  %v156 = vsub.f32 %v151, %v153
  %157 = xla_tuple %v156
  %s158 = scalar_lea.vmem %s2, 152
  %159 = vst [vmem:[%s158] sm:$0xff] %v156
  %s160 = scalar_lea.vmem %s0, 24
  %v161 = vld [vmem:[%s160] sm:$0xff]
  %s162 = scalar_lea.vmem %s1, 24
  %v163 = vld [vmem:[%s162] sm:$0xff]
  %164 = xla_tuple %v161, %v163
  %165 = xla_tuple %164
  %v166 = vsub.f32 %v161, %v163
  %167 = xla_tuple %v166
  %s168 = scalar_lea.vmem %s2, 24
  %169 = vst [vmem:[%s168] sm:$0xff] %v166
  %s170 = scalar_lea.vmem %s0, 72
  %v171 = vld [vmem:[%s170] sm:$0xff]
  %s172 = scalar_lea.vmem %s1, 72
  %v173 = vld [vmem:[%s172] sm:$0xff]
  %174 = xla_tuple %v171, %v173
  %175 = xla_tuple %174
  %v176 = vsub.f32 %v171, %v173
  %177 = xla_tuple %v176
  %s178 = scalar_lea.vmem %s2, 72
  %179 = vst [vmem:[%s178] sm:$0xff] %v176
  %s180 = scalar_lea.vmem %s0, 120
  %v181 = vld [vmem:[%s180] sm:$0xff]
  %s182 = scalar_lea.vmem %s1, 120
  %v183 = vld [vmem:[%s182] sm:$0xff]
  %184 = xla_tuple %v181, %v183
  %185 = xla_tuple %184
  %v186 = vsub.f32 %v181, %v183
  %187 = xla_tuple %v186
  %s188 = scalar_lea.vmem %s2, 120
  %189 = vst [vmem:[%s188] sm:$0xff] %v186
  %s190 = scalar_lea.vmem %s0, 168
  %v191 = vld [vmem:[%s190] sm:$0xff]
  %s192 = scalar_lea.vmem %s1, 168
  %v193 = vld [vmem:[%s192] sm:$0xff]
  %194 = xla_tuple %v191, %v193
  %195 = xla_tuple %194
  %v196 = vsub.f32 %v191, %v193
  %197 = xla_tuple %v196
  %s198 = scalar_lea.vmem %s2, 168
  %199 = vst [vmem:[%s198] sm:$0xff] %v196
  %s200 = scalar_lea.vmem %s0, 40
  %v201 = vld [vmem:[%s200] sm:$0xff]
  %s202 = scalar_lea.vmem %s1, 40
  %v203 = vld [vmem:[%s202] sm:$0xff]
  %204 = xla_tuple %v201, %v203
  %205 = xla_tuple %204
  %v206 = vsub.f32 %v201, %v203
  %207 = xla_tuple %v206
  %s208 = scalar_lea.vmem %s2, 40
  %209 = vst [vmem:[%s208] sm:$0xff] %v206
  %s210 = scalar_lea.vmem %s0, 88
  %v211 = vld [vmem:[%s210] sm:$0xff]
  %s212 = scalar_lea.vmem %s1, 88
  %v213 = vld [vmem:[%s212] sm:$0xff]
  %214 = xla_tuple %v211, %v213
  %215 = xla_tuple %214
  %v216 = vsub.f32 %v211, %v213
  %217 = xla_tuple %v216
  %s218 = scalar_lea.vmem %s2, 88
  %219 = vst [vmem:[%s218] sm:$0xff] %v216
  %s220 = scalar_lea.vmem %s0, 136
  %v221 = vld [vmem:[%s220] sm:$0xff]
  %s222 = scalar_lea.vmem %s1, 136
  %v223 = vld [vmem:[%s222] sm:$0xff]
  %224 = xla_tuple %v221, %v223
  %225 = xla_tuple %224
  %v226 = vsub.f32 %v221, %v223
  %227 = xla_tuple %v226
  %s228 = scalar_lea.vmem %s2, 136
  %229 = vst [vmem:[%s228] sm:$0xff] %v226
  %s230 = scalar_lea.vmem %s0, 184
  %v231 = vld [vmem:[%s230] sm:$0xff]
  %s232 = scalar_lea.vmem %s1, 184
  %v233 = vld [vmem:[%s232] sm:$0xff]
  %234 = xla_tuple %v231, %v233
  %235 = xla_tuple %234
  %v236 = vsub.f32 %v231, %v233
  %237 = xla_tuple %v236
  %s238 = scalar_lea.vmem %s2, 184
  %239 = vst [vmem:[%s238] sm:$0xff] %v236

// kernel: _forward_impl.1
$region0: #{_forward_impl.1}
  #allocation0 [shape = 'u32[]', space=smem, size = 0x4, offset = 0x4, fixed_abs, tag = 'smem constant byte address 0x4 - core index']
  #allocation1 [shape = 'u32[144,128]{1,0:T(1,128)}', space=vmem, size = 0x12000, scoped, tag = 'internal scratch']
  #allocation2 [shape = 'f32[8,128]{1,0:T(8,128)}', space=vmem, size = 0x1000, scoped, tag = 'scratch operand']
  #allocation3 [shape = 'f32[2,8,128]{2,1,0:T(8,128)}', space=vmem, size = 0x2000, scoped, tag = 'scratch operand']
  %s0 = inlined_call_operand.vmem [shape: f32[2,8,256,56], index: 0, kind: input, shape index: {}]
  %s1 = inlined_call_operand.vmem [shape: f32[56,128], index: 1, kind: input, shape index: {}]
  %s2 = inlined_call_operand.vmem [shape: f32[1,128], index: 2, kind: input, shape index: {}]
  %s3 = inlined_call_operand.vmem [shape: f32[128,128], index: 3, kind: input, shape index: {}]
  %s4 = inlined_call_operand.vmem [shape: f32[1,128], index: 4, kind: input, shape index: {}]
  %s5 = inlined_call_operand.vmem [shape: f32[8,128], index: 5, kind: output, shape index: {0}]
  %s6 = inlined_call_operand.vmem [shape: f32[8,128], index: 6, kind: output, shape index: {1}]
  %7 = xla_tuple %s5, %s6
  %s8 = sld [smem:[#allocation0]]
  $region73: #{_forward_impl.1} parent=0
    _
  %s10 = ssub.s32 1, %s8
  %s11 = scalar_select 0, %s10, %s8
  loop: start=0, step=1, limit=4
  $region2: #{_forward_impl.1} parent=0 // loop_pre_header
    _
  $region3: #{_forward_impl.1} parent=0 // loop_header
    %s13 = sphi 0, %s17
    %p14 = scmp.ge.s32.totalorder %s13, 4
    %s20 = sphi 0, %s39
    %s21 = sphi 0, %s35
    %s22 = sphi 0, %s31
    %s23 = sphi 0, %s20
    %s24 = sphi 0, %s21
    %s25 = sphi 0, %s22
    %s26 = sphi 0, %s23
    %s27 = sphi 0, %s24
    %s28 = sphi 0, %s25
    %s46 = sphi 0, %s48
    %s49 = sphi 0, %s46
    %s50 = sphi 0, %s49
    %s66 = sphi 0, %s50
    %s70 = sphi 0, %s70
    %s72 = sphi 0, %s70
    %s73 = sphi 0, %s72
    %s87 = sphi 0, %s73
    %s91 = sphi 0, %s91
    %s93 = sphi 0, %s91
    %s94 = sphi 0, %s93
    %s108 = sphi 0, %s94
    %s112 = sphi 0, %s112
    %s114 = sphi 0, %s112
    %s115 = sphi 0, %s114
    %s129 = sphi 0, %s115
    %s133 = sphi 0, %s133
    %s135 = sphi 0, %s133
    %s136 = sphi 0, %s135
    %s150 = sphi 0, %s136
    %s156 = sphi 0, %s158
    %s159 = sphi 0, %s156
    %s160 = sphi 0, %s159
    %s176 = sphi 0, %s160
    %s182 = sphi 0, %s184
    %s185 = sphi 0, %s182
    %s186 = sphi 0, %s185
    %s202 = sphi 0, %s186
  $region4: #{_forward_impl.1} parent=0 // loop_header_branch
    %16 = sbr.rel (%p14) target = $region8
  $region5: #{_forward_impl.1} parent=0 // loop_body
    %s18 = ssub.s32 %s13, 1
    %s19 = ssub.s32 %s13, 2
    %s29 = sadd.s32 1, %s22
    %p30 = scmp.ge.s32.totalorder %s29, 1
    %s31 = scalar_select %p30, 0, %s29
    %s32 = sadd.s32 1, %s21
    %s33 = scalar_select %p30, %s32, %s21
    %p34 = scmp.ge.s32.totalorder %s33, 2
    %s35 = scalar_select %p34, 0, %s33
    %s36 = sadd.s32 1, %s20
    %s37 = scalar_select %p34, %s36, %s20
    %p38 = scmp.ge.s32.totalorder %s37, 1
    %s39 = scalar_select %p38, 0, %s37
    %s40 = ssub.s32 %s21, %s35
    %s41 = ssub.s32 %s20, %s39
    %s42 = sor.u32 %s40, %s41
    %s43 = ssub.s32 %s22, %s31
    %s44 = sor.u32 %s42, %s43
    %p45 = scmp.eq.s32.totalorder %s44, 0
    %s47 = sadd.s32 %s46, 1
    %s48 = scalar_select %p45, %s46, %s47
    %p51 = pneg %p45
    %p52 = scmp.eq.s32.totalorder %s13, 1
    %p53 = por %p51, %p52
    %p54 = scmp.ne.s32.totalorder %s46, %s49
    %p55 = scmp.eq.s32.totalorder %s13, 0
    %p56 = por %p54, %p55
    %p57 = scmp.ne.s32.totalorder %s46, %s49
    %p58 = scmp.eq.s32.totalorder %s18, 1
    %p59 = por %p57, %p58
    %p60 = scmp.ne.s32.totalorder %s49, %s50
    %p61 = scmp.eq.s32.totalorder %s18, 0
    %p62 = por %p60, %p61
    %p63 = scmp.ne.s32.totalorder %s49, %s50
    %p64 = scmp.eq.s32.totalorder %s19, 1
    %p65 = por %p63, %p64
    %p67 = scmp.ne.s32.totalorder %s50, %s66
    %p68 = scmp.eq.s32.totalorder %s19, 0
    %p69 = por %p67, %p68
    %s71 = sadd.s32 %s70, 1
    %p74 = scmp.eq.s32.totalorder %s13, 1
    %p75 = scmp.ne.s32.totalorder %s70, %s72
    %p76 = scmp.eq.s32.totalorder %s13, 0
    %p77 = por %p75, %p76
    %p78 = scmp.ne.s32.totalorder %s70, %s72
    %p79 = scmp.eq.s32.totalorder %s18, 1
    %p80 = por %p78, %p79
    %p81 = scmp.ne.s32.totalorder %s72, %s73
    %p82 = scmp.eq.s32.totalorder %s18, 0
    %p83 = por %p81, %p82
    %p84 = scmp.ne.s32.totalorder %s72, %s73
    %p85 = scmp.eq.s32.totalorder %s19, 1
    %p86 = por %p84, %p85
    %p88 = scmp.ne.s32.totalorder %s73, %s87
    %p89 = scmp.eq.s32.totalorder %s19, 0
    %p90 = por %p88, %p89
    %s92 = sadd.s32 %s91, 1
    %p95 = scmp.eq.s32.totalorder %s13, 1
    %p96 = scmp.ne.s32.totalorder %s91, %s93
    %p97 = scmp.eq.s32.totalorder %s13, 0
    %p98 = por %p96, %p97
    %p99 = scmp.ne.s32.totalorder %s91, %s93
    %p100 = scmp.eq.s32.totalorder %s18, 1
    %p101 = por %p99, %p100
    %p102 = scmp.ne.s32.totalorder %s93, %s94
    %p103 = scmp.eq.s32.totalorder %s18, 0
    %p104 = por %p102, %p103
    %p105 = scmp.ne.s32.totalorder %s93, %s94
    %p106 = scmp.eq.s32.totalorder %s19, 1
    %p107 = por %p105, %p106
    %p109 = scmp.ne.s32.totalorder %s94, %s108
    %p110 = scmp.eq.s32.totalorder %s19, 0
    %p111 = por %p109, %p110
    %s113 = sadd.s32 %s112, 1
    %p116 = scmp.eq.s32.totalorder %s13, 1
    %p117 = scmp.ne.s32.totalorder %s112, %s114
    %p118 = scmp.eq.s32.totalorder %s13, 0
    %p119 = por %p117, %p118
    %p120 = scmp.ne.s32.totalorder %s112, %s114
    %p121 = scmp.eq.s32.totalorder %s18, 1
    %p122 = por %p120, %p121
    %p123 = scmp.ne.s32.totalorder %s114, %s115
    %p124 = scmp.eq.s32.totalorder %s18, 0
    %p125 = por %p123, %p124
    %p126 = scmp.ne.s32.totalorder %s114, %s115
    %p127 = scmp.eq.s32.totalorder %s19, 1
    %p128 = por %p126, %p127
    %p130 = scmp.ne.s32.totalorder %s115, %s129
    %p131 = scmp.eq.s32.totalorder %s19, 0
    %p132 = por %p130, %p131
    %s134 = sadd.s32 %s133, 1
    %p137 = scmp.eq.s32.totalorder %s13, 1
    %p138 = scmp.ne.s32.totalorder %s133, %s135
    %p139 = scmp.eq.s32.totalorder %s13, 0
    %p140 = por %p138, %p139
    %p141 = scmp.ne.s32.totalorder %s133, %s135
    %p142 = scmp.eq.s32.totalorder %s18, 1
    %p143 = por %p141, %p142
    %p144 = scmp.ne.s32.totalorder %s135, %s136
    %p145 = scmp.eq.s32.totalorder %s18, 0
    %p146 = por %p144, %p145
    %p147 = scmp.ne.s32.totalorder %s135, %s136
    %p148 = scmp.eq.s32.totalorder %s19, 1
    %p149 = por %p147, %p148
    %p151 = scmp.ne.s32.totalorder %s136, %s150
    %p152 = scmp.eq.s32.totalorder %s19, 0
    %p153 = por %p151, %p152
    %s154 = ssub.s32 %s20, %s39
    %p155 = scmp.eq.s32.totalorder %s154, 0
    %s157 = sadd.s32 %s156, 1
    %s158 = scalar_select %p155, %s156, %s157
    %p161 = pneg %p155
    %p162 = scmp.eq.s32.totalorder %s13, 1
    %p163 = por %p161, %p162
    %p164 = scmp.ne.s32.totalorder %s156, %s159
    %p165 = scmp.eq.s32.totalorder %s13, 0
    %p166 = por %p164, %p165
    %p167 = scmp.ne.s32.totalorder %s156, %s159
    %p168 = scmp.eq.s32.totalorder %s18, 1
    %p169 = por %p167, %p168
    %p170 = scmp.ne.s32.totalorder %s159, %s160
    %p171 = scmp.eq.s32.totalorder %s18, 0
    %p172 = por %p170, %p171
    %p173 = scmp.ne.s32.totalorder %s159, %s160
    %p174 = scmp.eq.s32.totalorder %s19, 1
    %p175 = por %p173, %p174
    %p177 = scmp.ne.s32.totalorder %s160, %s176
    %p178 = scmp.eq.s32.totalorder %s19, 0
    %p179 = por %p177, %p178
    %s180 = ssub.s32 %s20, %s39
    %p181 = scmp.eq.s32.totalorder %s180, 0
    %s183 = sadd.s32 %s182, 1
    %s184 = scalar_select %p181, %s182, %s183
    %p187 = pneg %p181
    %p188 = scmp.eq.s32.totalorder %s13, 1
    %p189 = por %p187, %p188
    %p190 = scmp.ne.s32.totalorder %s182, %s185
    %p191 = scmp.eq.s32.totalorder %s13, 0
    %p192 = por %p190, %p191
    %p193 = scmp.ne.s32.totalorder %s182, %s185
    %p194 = scmp.eq.s32.totalorder %s18, 1
    %p195 = por %p193, %p194
    %p196 = scmp.ne.s32.totalorder %s185, %s186
    %p197 = scmp.eq.s32.totalorder %s18, 0
    %p198 = por %p196, %p197
    %p199 = scmp.ne.s32.totalorder %s185, %s186
    %p200 = scmp.eq.s32.totalorder %s19, 1
    %p201 = por %p199, %p200
    %p203 = scmp.ne.s32.totalorder %s186, %s202
    %p204 = scmp.eq.s32.totalorder %s19, 0
    %p205 = por %p203, %p204
    %p206 = scmp.le.s32.totalorder 1, %s13
    %p207 = scmp.lt.s32.totalorder %s13, 3
    %p208 = pnand %p206, %p207
    %p209 = pneg %p208
    // Predicated region
    $region9: #{_forward_impl.1} parent=5 // pred_check
      _
    $region10: #{_forward_impl.1} parent=5 // pred_check_branch
      %211 = sbr.rel (%p208) target = $region12
    $region11: #{_forward_impl.1} parent=5 // pred_region
      %s212 = ssub.s32 %s13, 1
      // Predicated region
      $region13: #{_forward_impl.1} parent=11 // pred_check
        %p213 = pneg %p83
      $region14: #{_forward_impl.1} parent=11 // pred_check_branch
        %215 = sbr.rel (%p213) target = $region16
      $region15: #{_forward_impl.1} parent=11 // pred_region
        _
      $region16: #{_forward_impl.1} parent=11 // pred_fallthru
        _
      // Predicated region
      $region17: #{_forward_impl.1} parent=11 // pred_check
        %p216 = pneg %p104
      $region18: #{_forward_impl.1} parent=11 // pred_check_branch
        %218 = sbr.rel (%p216) target = $region20
      $region19: #{_forward_impl.1} parent=11 // pred_region
        _
      $region20: #{_forward_impl.1} parent=11 // pred_fallthru
        _
      // Predicated region
      $region21: #{_forward_impl.1} parent=11 // pred_check
        %p219 = pneg %p125
      $region22: #{_forward_impl.1} parent=11 // pred_check_branch
        %221 = sbr.rel (%p219) target = $region24
      $region23: #{_forward_impl.1} parent=11 // pred_region
        _
      $region24: #{_forward_impl.1} parent=11 // pred_fallthru
        _
      // Predicated region
      $region25: #{_forward_impl.1} parent=11 // pred_check
        %p222 = pneg %p146
      $region26: #{_forward_impl.1} parent=11 // pred_check_branch
        %224 = sbr.rel (%p222) target = $region28
      $region27: #{_forward_impl.1} parent=11 // pred_region
        _
      $region28: #{_forward_impl.1} parent=11 // pred_fallthru
        _
    $region12: #{_forward_impl.1} parent=5 // pred_fallthru
      _
    %p225 = scmp.lt.s32.totalorder %s13, 2
    // Predicated region
    $region29: #{_forward_impl.1} parent=5 // pred_check
      %p226 = pneg %p225
    $region30: #{_forward_impl.1} parent=5 // pred_check_branch
      %228 = sbr.rel (%p226) target = $region32
    $region31: #{_forward_impl.1} parent=5 // pred_region
      // Predicated region
      $region33: #{_forward_impl.1} parent=31 // pred_check
        %p229 = pneg %p56
      $region34: #{_forward_impl.1} parent=31 // pred_check_branch
        %231 = sbr.rel (%p229) target = $region36
      $region35: #{_forward_impl.1} parent=31 // pred_region
        %s232 = smul.u32 8, %s20
        %s233 = smul.u32 32, %s22
        %p234 = scmp.lt.s32.totalorder %s21, 1
        %s235 = scalar_select %p234, %s21, 1
        %p236 = scmp.lt.s32.totalorder %s232, 7
        %s237 = scalar_select %p236, %s232, 7
        %p238 = scmp.lt.s32.totalorder %s233, 31
        %s239 = scalar_select %p238, %s233, 31
        %s240 = smul.addr %s237, 32
        %s241 = sadd.s32 %s239, %s240
        %s242 = smul.addr %s235, 256
        %s243 = sadd.s32 %s241, %s242
        %s244 = smul.addr %s243, 8
        %s245 = scalar_lea.vmem %s0, %s244
        %s246 = smul.u32 8, %s20
        %s247 = smul.u32 32, %s22
      $region36: #{_forward_impl.1} parent=31 // pred_fallthru
        _
    $region32: #{_forward_impl.1} parent=5 // pred_fallthru
      _
    %p248 = scmp.le.s32.totalorder 1, %s13
    %p249 = scmp.lt.s32.totalorder %s13, 3
    %p250 = pnand %p248, %p249
    %p251 = pneg %p250
    // Predicated region
    $region37: #{_forward_impl.1} parent=5 // pred_check
      _
    $region38: #{_forward_impl.1} parent=5 // pred_check_branch
      %253 = sbr.rel (%p250) target = $region40
    $region39: #{_forward_impl.1} parent=5 // pred_region
      %s254 = ssub.s32 %s13, 1
      %s255 = smul.u32 8, %s23
      %s256 = smul.u32 32, %s25
      %p257 = scmp.lt.s32.totalorder %s24, 1
      %s258 = scalar_select %p257, %s24, 1
      %p259 = scmp.lt.s32.totalorder %s255, 7
      %s260 = scalar_select %p259, %s255, 7
      %p261 = scmp.lt.s32.totalorder %s256, 31
      %s262 = scalar_select %p261, %s256, 31
      %s263 = smul.addr %s260, 32
      %s264 = sadd.s32 %s262, %s263
      %s265 = smul.addr %s258, 256
      %s266 = sadd.s32 %s264, %s265
      %s267 = smul.addr %s266, 8
      %s268 = scalar_lea.vmem %s0, %s267
      %p269 = pneg %p62
      %p270 = pneg %p59
      %p271 = pneg %p83
      %p272 = pneg %p80
      %p273 = pneg %p104
      %p274 = pneg %p101
      %p275 = pneg %p125
      %p276 = pneg %p122
      %p277 = pneg %p146
      %p278 = pneg %p143
      %p279 = pneg %p172
      %p280 = pneg %p169
      %p281 = scmp.lt.s32.totalorder %s23, 0
      %s282 = scalar_select %p281, %s23, 0
      %s283 = smul.addr %s282, 8
      %s284 = scalar_lea.vmem %s5, %s283
      %p285 = pneg %p198
      %p286 = pneg %p195
      %p287 = scmp.lt.s32.totalorder %s23, 0
      %s288 = scalar_select %p287, %s23, 0
      %s289 = smul.addr %s288, 8
      %s290 = scalar_lea.vmem %s6, %s289
      %s291 = smul.u32 8, %s23
      %s292 = smul.u32 32, %s25
      %p293 = scmp.lt.s32.totalorder %s24, 1
      %s294 = scalar_select %p293, %s24, 1
      %p295 = scmp.lt.s32.totalorder %s291, 7
      %s296 = scalar_select %p295, %s291, 7
      %p297 = scmp.lt.s32.totalorder %s292, 31
      %s298 = scalar_select %p297, %s292, 31
      %s299 = smul.addr %s296, 32
      %s300 = sadd.s32 %s298, %s299
      %s301 = smul.addr %s294, 256
      %s302 = sadd.s32 %s300, %s301
      %s303 = smul.addr %s302, 8
      %s304 = scalar_lea.vmem %s0, %s303
      %s305 = smul.u32 8, %s23
      %s306 = smul.u32 32, %s25
      %p307 = scmp.lt.s32.totalorder %s23, 0
      %s308 = scalar_select %p307, %s23, 0
      %s309 = smul.addr %s308, 8
      %s310 = scalar_lea.vmem %s5, %s309
      %p311 = scmp.lt.s32.totalorder %s23, 0
      %s312 = scalar_select %p311, %s23, 0
      %s313 = smul.addr %s312, 8
      %s314 = scalar_lea.vmem %s6, %s313
      %p315 = scmp.eq.s32.totalorder %s25, 0
      // Predicated region
      $region41: #{_forward_impl.1} parent=39 // pred_check
        %p316 = pneg %p315
      $region42: #{_forward_impl.1} parent=39 // pred_check_branch
        %318 = sbr.rel (%p316) target = $region44
      $region43: #{_forward_impl.1} parent=39 // pred_region
        %319 = vst [vmem:[#allocation2] sm:$0xff] 0.0
      $region44: #{_forward_impl.1} parent=39 // pred_fallthru
        _
      %v320 = vld [vmem:[%s304] sm:$0xff]
      %v321 = vld [vmem:[%s304 + $0x8] sm:$0xff]
      %v322 = vld [vmem:[%s304 + $0x10] sm:$0xff]
      %v323 = vld [vmem:[%s304 + $0x18] sm:$0xff]
      %v324 = vld [vmem:[%s304 + $0x20] sm:$0xff]
      %v325 = vld [vmem:[%s304 + $0x28] sm:$0xff]
      %v326 = vld [vmem:[%s304 + $0x30] sm:$0xff]
      %v327 = vld [vmem:[%s304 + $0x38] sm:$0xff]
      %v328 = vld [vmem:[%s304 + $0x40] sm:$0xff]
      %v329 = vld [vmem:[%s304 + $0x48] sm:$0xff]
      %v330 = vld [vmem:[%s304 + $0x50] sm:$0xff]
      %v331 = vld [vmem:[%s304 + $0x58] sm:$0xff]
      %v332 = vld [vmem:[%s304 + $0x60] sm:$0xff]
      %v333 = vld [vmem:[%s304 + $0x68] sm:$0xff]
      %v334 = vld [vmem:[%s304 + $0x70] sm:$0xff]
      %v335 = vld [vmem:[%s304 + $0x78] sm:$0xff]
      %v336 = vld [vmem:[%s304 + $0x80] sm:$0xff]
      %v337 = vld [vmem:[%s304 + $0x88] sm:$0xff]
      %v338 = vld [vmem:[%s304 + $0x90] sm:$0xff]
      %v339 = vld [vmem:[%s304 + $0x98] sm:$0xff]
      %v340 = vld [vmem:[%s304 + $0xa0] sm:$0xff]
      %v341 = vld [vmem:[%s304 + $0xa8] sm:$0xff]
      %v342 = vld [vmem:[%s304 + $0xb0] sm:$0xff]
      %v343 = vld [vmem:[%s304 + $0xb8] sm:$0xff]
      %v344 = vld [vmem:[%s304 + $0xc0] sm:$0xff]
      %v345 = vld [vmem:[%s304 + $0xc8] sm:$0xff]
      %v346 = vld [vmem:[%s304 + $0xd0] sm:$0xff]
      %v347 = vld [vmem:[%s304 + $0xd8] sm:$0xff]
      %v348 = vld [vmem:[%s304 + $0xe0] sm:$0xff]
      %v349 = vld [vmem:[%s304 + $0xe8] sm:$0xff]
      %v350 = vld [vmem:[%s304 + $0xf0] sm:$0xff]
      %v351 = vld [vmem:[%s304 + $0xf8] sm:$0xff]
      %v352 = vld [vmem:[%s304 + $0x100] sm:$0xff]
      %v353 = vld [vmem:[%s304 + $0x108] sm:$0xff]
      %v354 = vld [vmem:[%s304 + $0x110] sm:$0xff]
      %v355 = vld [vmem:[%s304 + $0x118] sm:$0xff]
      %v356 = vld [vmem:[%s304 + $0x120] sm:$0xff]
      %v357 = vld [vmem:[%s304 + $0x128] sm:$0xff]
      %v358 = vld [vmem:[%s304 + $0x130] sm:$0xff]
      %v359 = vld [vmem:[%s304 + $0x138] sm:$0xff]
      %v360 = vld [vmem:[%s304 + $0x140] sm:$0xff]
      %v361 = vld [vmem:[%s304 + $0x148] sm:$0xff]
      %v362 = vld [vmem:[%s304 + $0x150] sm:$0xff]
      %v363 = vld [vmem:[%s304 + $0x158] sm:$0xff]
      %v364 = vld [vmem:[%s304 + $0x160] sm:$0xff]
      %v365 = vld [vmem:[%s304 + $0x168] sm:$0xff]
      %v366 = vld [vmem:[%s304 + $0x170] sm:$0xff]
      %v367 = vld [vmem:[%s304 + $0x178] sm:$0xff]
      %v368 = vld [vmem:[%s304 + $0x180] sm:$0xff]
      %v369 = vld [vmem:[%s304 + $0x188] sm:$0xff]
      %v370 = vld [vmem:[%s304 + $0x190] sm:$0xff]
      %v371 = vld [vmem:[%s304 + $0x198] sm:$0xff]
      %v372 = vld [vmem:[%s304 + $0x1a0] sm:$0xff]
      %v373 = vld [vmem:[%s304 + $0x1a8] sm:$0xff]
      %v374 = vld [vmem:[%s304 + $0x1b0] sm:$0xff]
      %v375 = vld [vmem:[%s304 + $0x1b8] sm:$0xff]
      %v376 = vld [vmem:[%s304 + $0x1c0] sm:$0xff]
      %v377 = vld [vmem:[%s304 + $0x1c8] sm:$0xff]
      %v378 = vld [vmem:[%s304 + $0x1d0] sm:$0xff]
      %v379 = vld [vmem:[%s304 + $0x1d8] sm:$0xff]
      %v380 = vld [vmem:[%s304 + $0x1e0] sm:$0xff]
      %v381 = vld [vmem:[%s304 + $0x1e8] sm:$0xff]
      %v382 = vld [vmem:[%s304 + $0x1f0] sm:$0xff]
      %v383 = vld [vmem:[%s304 + $0x1f8] sm:$0xff]
      %v384 = vld [vmem:[%s304 + $0x200] sm:$0xff]
      %v385 = vld [vmem:[%s304 + $0x208] sm:$0xff]
      %v386 = vld [vmem:[%s304 + $0x210] sm:$0xff]
      %v387 = vld [vmem:[%s304 + $0x218] sm:$0xff]
      %v388 = vld [vmem:[%s304 + $0x220] sm:$0xff]
      %v389 = vld [vmem:[%s304 + $0x228] sm:$0xff]
      %v390 = vld [vmem:[%s304 + $0x230] sm:$0xff]
      %v391 = vld [vmem:[%s304 + $0x238] sm:$0xff]
      %v392 = vld [vmem:[%s304 + $0x240] sm:$0xff]
      %v393 = vld [vmem:[%s304 + $0x248] sm:$0xff]
      %v394 = vld [vmem:[%s304 + $0x250] sm:$0xff]
      %v395 = vld [vmem:[%s304 + $0x258] sm:$0xff]
      %v396 = vld [vmem:[%s304 + $0x260] sm:$0xff]
      %v397 = vld [vmem:[%s304 + $0x268] sm:$0xff]
      %v398 = vld [vmem:[%s304 + $0x270] sm:$0xff]
      %v399 = vld [vmem:[%s304 + $0x278] sm:$0xff]
      %v400 = vld [vmem:[%s304 + $0x280] sm:$0xff]
      %v401 = vld [vmem:[%s304 + $0x288] sm:$0xff]
      %v402 = vld [vmem:[%s304 + $0x290] sm:$0xff]
      %v403 = vld [vmem:[%s304 + $0x298] sm:$0xff]
      %v404 = vld [vmem:[%s304 + $0x2a0] sm:$0xff]
      %v405 = vld [vmem:[%s304 + $0x2a8] sm:$0xff]
      %v406 = vld [vmem:[%s304 + $0x2b0] sm:$0xff]
      %v407 = vld [vmem:[%s304 + $0x2b8] sm:$0xff]
      %v408 = vld [vmem:[%s304 + $0x2c0] sm:$0xff]
      %v409 = vld [vmem:[%s304 + $0x2c8] sm:$0xff]
      %v410 = vld [vmem:[%s304 + $0x2d0] sm:$0xff]
      %v411 = vld [vmem:[%s304 + $0x2d8] sm:$0xff]
      %v412 = vld [vmem:[%s304 + $0x2e0] sm:$0xff]
      %v413 = vld [vmem:[%s304 + $0x2e8] sm:$0xff]
      %v414 = vld [vmem:[%s304 + $0x2f0] sm:$0xff]
      %v415 = vld [vmem:[%s304 + $0x2f8] sm:$0xff]
      %v416 = vld [vmem:[%s304 + $0x300] sm:$0xff]
      %v417 = vld [vmem:[%s304 + $0x308] sm:$0xff]
      %v418 = vld [vmem:[%s304 + $0x310] sm:$0xff]
      %v419 = vld [vmem:[%s304 + $0x318] sm:$0xff]
      %v420 = vld [vmem:[%s304 + $0x320] sm:$0xff]
      %v421 = vld [vmem:[%s304 + $0x328] sm:$0xff]
      %v422 = vld [vmem:[%s304 + $0x330] sm:$0xff]
      %v423 = vld [vmem:[%s304 + $0x338] sm:$0xff]
      %v424 = vld [vmem:[%s304 + $0x340] sm:$0xff]
      %v425 = vld [vmem:[%s304 + $0x348] sm:$0xff]
      %v426 = vld [vmem:[%s304 + $0x350] sm:$0xff]
      %v427 = vld [vmem:[%s304 + $0x358] sm:$0xff]
      %v428 = vld [vmem:[%s304 + $0x360] sm:$0xff]
      %v429 = vld [vmem:[%s304 + $0x368] sm:$0xff]
      %v430 = vld [vmem:[%s304 + $0x370] sm:$0xff]
      %v431 = vld [vmem:[%s304 + $0x378] sm:$0xff]
      %v432 = vld [vmem:[%s304 + $0x380] sm:$0xff]
      %v433 = vld [vmem:[%s304 + $0x388] sm:$0xff]
      %v434 = vld [vmem:[%s304 + $0x390] sm:$0xff]
      %v435 = vld [vmem:[%s304 + $0x398] sm:$0xff]
      %v436 = vld [vmem:[%s304 + $0x3a0] sm:$0xff]
      %v437 = vld [vmem:[%s304 + $0x3a8] sm:$0xff]
      %v438 = vld [vmem:[%s304 + $0x3b0] sm:$0xff]
      %v439 = vld [vmem:[%s304 + $0x3b8] sm:$0xff]
      %v440 = vld [vmem:[%s304 + $0x3c0] sm:$0xff]
      %v441 = vld [vmem:[%s304 + $0x3c8] sm:$0xff]
      %v442 = vld [vmem:[%s304 + $0x3d0] sm:$0xff]
      %v443 = vld [vmem:[%s304 + $0x3d8] sm:$0xff]
      %v444 = vld [vmem:[%s304 + $0x3e0] sm:$0xff]
      %v445 = vld [vmem:[%s304 + $0x3e8] sm:$0xff]
      %v446 = vld [vmem:[%s304 + $0x3f0] sm:$0xff]
      %v447 = vld [vmem:[%s304 + $0x3f8] sm:$0xff]
      %v448 = vld [vmem:[%s304 + $0x400] sm:$0xff]
      %v449 = vld [vmem:[%s304 + $0x408] sm:$0xff]
      %v450 = vld [vmem:[%s304 + $0x410] sm:$0xff]
      %v451 = vld [vmem:[%s304 + $0x418] sm:$0xff]
      %v452 = vld [vmem:[%s304 + $0x420] sm:$0xff]
      %v453 = vld [vmem:[%s304 + $0x428] sm:$0xff]
      %v454 = vld [vmem:[%s304 + $0x430] sm:$0xff]
      %v455 = vld [vmem:[%s304 + $0x438] sm:$0xff]
      %v456 = vld [vmem:[%s304 + $0x440] sm:$0xff]
      %v457 = vld [vmem:[%s304 + $0x448] sm:$0xff]
      %v458 = vld [vmem:[%s304 + $0x450] sm:$0xff]
      %v459 = vld [vmem:[%s304 + $0x458] sm:$0xff]
      %v460 = vld [vmem:[%s304 + $0x460] sm:$0xff]
      %v461 = vld [vmem:[%s304 + $0x468] sm:$0xff]
      %v462 = vld [vmem:[%s304 + $0x470] sm:$0xff]
      %v463 = vld [vmem:[%s304 + $0x478] sm:$0xff]
      %v464 = vld [vmem:[%s304 + $0x480] sm:$0xff]
      %v465 = vld [vmem:[%s304 + $0x488] sm:$0xff]
      %v466 = vld [vmem:[%s304 + $0x490] sm:$0xff]
      %v467 = vld [vmem:[%s304 + $0x498] sm:$0xff]
      %v468 = vld [vmem:[%s304 + $0x4a0] sm:$0xff]
      %v469 = vld [vmem:[%s304 + $0x4a8] sm:$0xff]
      %v470 = vld [vmem:[%s304 + $0x4b0] sm:$0xff]
      %v471 = vld [vmem:[%s304 + $0x4b8] sm:$0xff]
      %v472 = vld [vmem:[%s304 + $0x4c0] sm:$0xff]
      %v473 = vld [vmem:[%s304 + $0x4c8] sm:$0xff]
      %v474 = vld [vmem:[%s304 + $0x4d0] sm:$0xff]
      %v475 = vld [vmem:[%s304 + $0x4d8] sm:$0xff]
      %v476 = vld [vmem:[%s304 + $0x4e0] sm:$0xff]
      %v477 = vld [vmem:[%s304 + $0x4e8] sm:$0xff]
      %v478 = vld [vmem:[%s304 + $0x4f0] sm:$0xff]
      %v479 = vld [vmem:[%s304 + $0x4f8] sm:$0xff]
      %v480 = vld [vmem:[%s304 + $0x500] sm:$0xff]
      %v481 = vld [vmem:[%s304 + $0x508] sm:$0xff]
      %v482 = vld [vmem:[%s304 + $0x510] sm:$0xff]
      %v483 = vld [vmem:[%s304 + $0x518] sm:$0xff]
      %v484 = vld [vmem:[%s304 + $0x520] sm:$0xff]
      %v485 = vld [vmem:[%s304 + $0x528] sm:$0xff]
      %v486 = vld [vmem:[%s304 + $0x530] sm:$0xff]
      %v487 = vld [vmem:[%s304 + $0x538] sm:$0xff]
      %v488 = vld [vmem:[%s304 + $0x540] sm:$0xff]
      %v489 = vld [vmem:[%s304 + $0x548] sm:$0xff]
      %v490 = vld [vmem:[%s304 + $0x550] sm:$0xff]
      %v491 = vld [vmem:[%s304 + $0x558] sm:$0xff]
      %v492 = vld [vmem:[%s304 + $0x560] sm:$0xff]
      %v493 = vld [vmem:[%s304 + $0x568] sm:$0xff]
      %v494 = vld [vmem:[%s304 + $0x570] sm:$0xff]
      %v495 = vld [vmem:[%s304 + $0x578] sm:$0xff]
      %v496 = vld [vmem:[%s304 + $0x580] sm:$0xff]
      %v497 = vld [vmem:[%s304 + $0x588] sm:$0xff]
      %v498 = vld [vmem:[%s304 + $0x590] sm:$0xff]
      %v499 = vld [vmem:[%s304 + $0x598] sm:$0xff]
      %v500 = vld [vmem:[%s304 + $0x5a0] sm:$0xff]
      %v501 = vld [vmem:[%s304 + $0x5a8] sm:$0xff]
      %v502 = vld [vmem:[%s304 + $0x5b0] sm:$0xff]
      %v503 = vld [vmem:[%s304 + $0x5b8] sm:$0xff]
      %v504 = vld [vmem:[%s304 + $0x5c0] sm:$0xff]
      %v505 = vld [vmem:[%s304 + $0x5c8] sm:$0xff]
      %v506 = vld [vmem:[%s304 + $0x5d0] sm:$0xff]
      %v507 = vld [vmem:[%s304 + $0x5d8] sm:$0xff]
      %v508 = vld [vmem:[%s304 + $0x5e0] sm:$0xff]
      %v509 = vld [vmem:[%s304 + $0x5e8] sm:$0xff]
      %v510 = vld [vmem:[%s304 + $0x5f0] sm:$0xff]
      %v511 = vld [vmem:[%s304 + $0x5f8] sm:$0xff]
      %v512 = vld [vmem:[%s304 + $0x600] sm:$0xff]
      %v513 = vld [vmem:[%s304 + $0x608] sm:$0xff]
      %v514 = vld [vmem:[%s304 + $0x610] sm:$0xff]
      %v515 = vld [vmem:[%s304 + $0x618] sm:$0xff]
      %v516 = vld [vmem:[%s304 + $0x620] sm:$0xff]
      %v517 = vld [vmem:[%s304 + $0x628] sm:$0xff]
      %v518 = vld [vmem:[%s304 + $0x630] sm:$0xff]
      %v519 = vld [vmem:[%s304 + $0x638] sm:$0xff]
      %v520 = vld [vmem:[%s304 + $0x640] sm:$0xff]
      %v521 = vld [vmem:[%s304 + $0x648] sm:$0xff]
      %v522 = vld [vmem:[%s304 + $0x650] sm:$0xff]
      %v523 = vld [vmem:[%s304 + $0x658] sm:$0xff]
      %v524 = vld [vmem:[%s304 + $0x660] sm:$0xff]
      %v525 = vld [vmem:[%s304 + $0x668] sm:$0xff]
      %v526 = vld [vmem:[%s304 + $0x670] sm:$0xff]
      %v527 = vld [vmem:[%s304 + $0x678] sm:$0xff]
      %v528 = vld [vmem:[%s304 + $0x680] sm:$0xff]
      %v529 = vld [vmem:[%s304 + $0x688] sm:$0xff]
      %v530 = vld [vmem:[%s304 + $0x690] sm:$0xff]
      %v531 = vld [vmem:[%s304 + $0x698] sm:$0xff]
      %v532 = vld [vmem:[%s304 + $0x6a0] sm:$0xff]
      %v533 = vld [vmem:[%s304 + $0x6a8] sm:$0xff]
      %v534 = vld [vmem:[%s304 + $0x6b0] sm:$0xff]
      %v535 = vld [vmem:[%s304 + $0x6b8] sm:$0xff]
      %v536 = vld [vmem:[%s304 + $0x6c0] sm:$0xff]
      %v537 = vld [vmem:[%s304 + $0x6c8] sm:$0xff]
      %v538 = vld [vmem:[%s304 + $0x6d0] sm:$0xff]
      %v539 = vld [vmem:[%s304 + $0x6d8] sm:$0xff]
      %v540 = vld [vmem:[%s304 + $0x6e0] sm:$0xff]
      %v541 = vld [vmem:[%s304 + $0x6e8] sm:$0xff]
      %v542 = vld [vmem:[%s304 + $0x6f0] sm:$0xff]
      %v543 = vld [vmem:[%s304 + $0x6f8] sm:$0xff]
      %v544 = vld [vmem:[%s304 + $0x700] sm:$0xff]
      %v545 = vld [vmem:[%s304 + $0x708] sm:$0xff]
      %v546 = vld [vmem:[%s304 + $0x710] sm:$0xff]
      %v547 = vld [vmem:[%s304 + $0x718] sm:$0xff]
      %v548 = vld [vmem:[%s304 + $0x720] sm:$0xff]
      %v549 = vld [vmem:[%s304 + $0x728] sm:$0xff]
      %v550 = vld [vmem:[%s304 + $0x730] sm:$0xff]
      %v551 = vld [vmem:[%s304 + $0x738] sm:$0xff]
      %v552 = vld [vmem:[%s304 + $0x740] sm:$0xff]
      %v553 = vld [vmem:[%s304 + $0x748] sm:$0xff]
      %v554 = vld [vmem:[%s304 + $0x750] sm:$0xff]
      %v555 = vld [vmem:[%s304 + $0x758] sm:$0xff]
      %v556 = vld [vmem:[%s304 + $0x760] sm:$0xff]
      %v557 = vld [vmem:[%s304 + $0x768] sm:$0xff]
      %v558 = vld [vmem:[%s304 + $0x770] sm:$0xff]
      %v559 = vld [vmem:[%s304 + $0x778] sm:$0xff]
      %v560 = vld [vmem:[%s304 + $0x780] sm:$0xff]
      %v561 = vld [vmem:[%s304 + $0x788] sm:$0xff]
      %v562 = vld [vmem:[%s304 + $0x790] sm:$0xff]
      %v563 = vld [vmem:[%s304 + $0x798] sm:$0xff]
      %v564 = vld [vmem:[%s304 + $0x7a0] sm:$0xff]
      %v565 = vld [vmem:[%s304 + $0x7a8] sm:$0xff]
      %v566 = vld [vmem:[%s304 + $0x7b0] sm:$0xff]
      %v567 = vld [vmem:[%s304 + $0x7b8] sm:$0xff]
      %v568 = vld [vmem:[%s304 + $0x7c0] sm:$0xff]
      %v569 = vld [vmem:[%s304 + $0x7c8] sm:$0xff]
      %v570 = vld [vmem:[%s304 + $0x7d0] sm:$0xff]
      %v571 = vld [vmem:[%s304 + $0x7d8] sm:$0xff]
      %v572 = vld [vmem:[%s304 + $0x7e0] sm:$0xff]
      %v573 = vld [vmem:[%s304 + $0x7e8] sm:$0xff]
      %v574 = vld [vmem:[%s304 + $0x7f0] sm:$0xff]
      %v575 = vld [vmem:[%s304 + $0x7f8] sm:$0xff]
      %v576 = vld [vmem:[%s1] sm:$0xff]
      %v577 = vld [vmem:[%s1 + $0x8] sm:$0xff]
      %v578 = vld [vmem:[%s1 + $0x10] sm:$0xff]
      %v579 = vld [vmem:[%s1 + $0x18] sm:$0xff]
      %v580 = vld [vmem:[%s1 + $0x20] sm:$0xff]
      %v581 = vld [vmem:[%s1 + $0x28] sm:$0xff]
      %v582 = vld [vmem:[%s1 + $0x30] sm:$0xff]
      %v583 = vld [vmem:[%s2] sm:$0x1]
      %v585 = vlaneseq
      %v586 = vshrl.u32 %v585, 7
      %v587 = vsub.s32 0, %v586
      %v588 = vrot.slane %v583, %v587
      %vm590 = vcmask 457728
      %v592 = vsel %vm590, %v320, 0
      %v595 = vsel %vm590, %v321, 0
      %v598 = vsel %vm590, %v322, 0
      %v601 = vsel %vm590, %v323, 0
      %v604 = vsel %vm590, %v324, 0
      %v607 = vsel %vm590, %v325, 0
      %v610 = vsel %vm590, %v326, 0
      %v613 = vsel %vm590, %v327, 0
      %v616 = vsel %vm590, %v328, 0
      %v619 = vsel %vm590, %v329, 0
      %v622 = vsel %vm590, %v330, 0
      %v625 = vsel %vm590, %v331, 0
      %v628 = vsel %vm590, %v332, 0
      %v631 = vsel %vm590, %v333, 0
      %v634 = vsel %vm590, %v334, 0
      %v637 = vsel %vm590, %v335, 0
      %v640 = vsel %vm590, %v336, 0
      %v643 = vsel %vm590, %v337, 0
      %v646 = vsel %vm590, %v338, 0
      %v649 = vsel %vm590, %v339, 0
      %v652 = vsel %vm590, %v340, 0
      %v655 = vsel %vm590, %v341, 0
      %v658 = vsel %vm590, %v342, 0
      %v661 = vsel %vm590, %v343, 0
      %v664 = vsel %vm590, %v344, 0
      %v667 = vsel %vm590, %v345, 0
      %v670 = vsel %vm590, %v346, 0
      %v673 = vsel %vm590, %v347, 0
      %v676 = vsel %vm590, %v348, 0
      %v679 = vsel %vm590, %v349, 0
      %v682 = vsel %vm590, %v350, 0
      %v685 = vsel %vm590, %v351, 0
      %v688 = vsel %vm590, %v352, 0
      %v691 = vsel %vm590, %v353, 0
      %v694 = vsel %vm590, %v354, 0
      %v697 = vsel %vm590, %v355, 0
      %v700 = vsel %vm590, %v356, 0
      %v703 = vsel %vm590, %v357, 0
      %v706 = vsel %vm590, %v358, 0
      %v709 = vsel %vm590, %v359, 0
      %v712 = vsel %vm590, %v360, 0
      %v715 = vsel %vm590, %v361, 0
      %v718 = vsel %vm590, %v362, 0
      %v721 = vsel %vm590, %v363, 0
      %v724 = vsel %vm590, %v364, 0
      %v727 = vsel %vm590, %v365, 0
      %v730 = vsel %vm590, %v366, 0
      %v733 = vsel %vm590, %v367, 0
      %v736 = vsel %vm590, %v368, 0
      %v739 = vsel %vm590, %v369, 0
      %v742 = vsel %vm590, %v370, 0
      %v745 = vsel %vm590, %v371, 0
      %v748 = vsel %vm590, %v372, 0
      %v751 = vsel %vm590, %v373, 0
      %v754 = vsel %vm590, %v374, 0
      %v757 = vsel %vm590, %v375, 0
      %v760 = vsel %vm590, %v376, 0
      %v763 = vsel %vm590, %v377, 0
      %v766 = vsel %vm590, %v378, 0
      %v769 = vsel %vm590, %v379, 0
      %v772 = vsel %vm590, %v380, 0
      %v775 = vsel %vm590, %v381, 0
      %v778 = vsel %vm590, %v382, 0
      %v781 = vsel %vm590, %v383, 0
      %v784 = vsel %vm590, %v384, 0
      %v787 = vsel %vm590, %v385, 0
      %v790 = vsel %vm590, %v386, 0
      %v793 = vsel %vm590, %v387, 0
      %v796 = vsel %vm590, %v388, 0
      %v799 = vsel %vm590, %v389, 0
      %v802 = vsel %vm590, %v390, 0
      %v805 = vsel %vm590, %v391, 0
      %v808 = vsel %vm590, %v392, 0
      %v811 = vsel %vm590, %v393, 0
      %v814 = vsel %vm590, %v394, 0
      %v817 = vsel %vm590, %v395, 0
      %v820 = vsel %vm590, %v396, 0
      %v823 = vsel %vm590, %v397, 0
      %v826 = vsel %vm590, %v398, 0
      %v829 = vsel %vm590, %v399, 0
      %v832 = vsel %vm590, %v400, 0
      %v835 = vsel %vm590, %v401, 0
      %v838 = vsel %vm590, %v402, 0
      %v841 = vsel %vm590, %v403, 0
      %v844 = vsel %vm590, %v404, 0
      %v847 = vsel %vm590, %v405, 0
      %v850 = vsel %vm590, %v406, 0
      %v853 = vsel %vm590, %v407, 0
      %v856 = vsel %vm590, %v408, 0
      %v859 = vsel %vm590, %v409, 0
      %v862 = vsel %vm590, %v410, 0
      %v865 = vsel %vm590, %v411, 0
      %v868 = vsel %vm590, %v412, 0
      %v871 = vsel %vm590, %v413, 0
      %v874 = vsel %vm590, %v414, 0
      %v877 = vsel %vm590, %v415, 0
      %v880 = vsel %vm590, %v416, 0
      %v883 = vsel %vm590, %v417, 0
      %v886 = vsel %vm590, %v418, 0
      %v889 = vsel %vm590, %v419, 0
      %v892 = vsel %vm590, %v420, 0
      %v895 = vsel %vm590, %v421, 0
      %v898 = vsel %vm590, %v422, 0
      %v901 = vsel %vm590, %v423, 0
      %v904 = vsel %vm590, %v424, 0
      %v907 = vsel %vm590, %v425, 0
      %v910 = vsel %vm590, %v426, 0
      %v913 = vsel %vm590, %v427, 0
      %v916 = vsel %vm590, %v428, 0
      %v919 = vsel %vm590, %v429, 0
      %v922 = vsel %vm590, %v430, 0
      %v925 = vsel %vm590, %v431, 0
      %v928 = vsel %vm590, %v432, 0
      %v931 = vsel %vm590, %v433, 0
      %v934 = vsel %vm590, %v434, 0
      %v937 = vsel %vm590, %v435, 0
      %v940 = vsel %vm590, %v436, 0
      %v943 = vsel %vm590, %v437, 0
      %v946 = vsel %vm590, %v438, 0
      %v949 = vsel %vm590, %v439, 0
      %v952 = vsel %vm590, %v440, 0
      %v955 = vsel %vm590, %v441, 0
      %v958 = vsel %vm590, %v442, 0
      %v961 = vsel %vm590, %v443, 0
      %v964 = vsel %vm590, %v444, 0
      %v967 = vsel %vm590, %v445, 0
      %v970 = vsel %vm590, %v446, 0
      %v973 = vsel %vm590, %v447, 0
      %v976 = vsel %vm590, %v448, 0
      %v979 = vsel %vm590, %v449, 0
      %v982 = vsel %vm590, %v450, 0
      %v985 = vsel %vm590, %v451, 0
      %v988 = vsel %vm590, %v452, 0
      %v991 = vsel %vm590, %v453, 0
      %v994 = vsel %vm590, %v454, 0
      %v997 = vsel %vm590, %v455, 0
      %v1000 = vsel %vm590, %v456, 0
      %v1003 = vsel %vm590, %v457, 0
      %v1006 = vsel %vm590, %v458, 0
      %v1009 = vsel %vm590, %v459, 0
      %v1012 = vsel %vm590, %v460, 0
      %v1015 = vsel %vm590, %v461, 0
      %v1018 = vsel %vm590, %v462, 0
      %v1021 = vsel %vm590, %v463, 0
      %v1024 = vsel %vm590, %v464, 0
      %v1027 = vsel %vm590, %v465, 0
      %v1030 = vsel %vm590, %v466, 0
      %v1033 = vsel %vm590, %v467, 0
      %v1036 = vsel %vm590, %v468, 0
      %v1039 = vsel %vm590, %v469, 0
      %v1042 = vsel %vm590, %v470, 0
      %v1045 = vsel %vm590, %v471, 0
      %v1048 = vsel %vm590, %v472, 0
      %v1051 = vsel %vm590, %v473, 0
      %v1054 = vsel %vm590, %v474, 0
      %v1057 = vsel %vm590, %v475, 0
      %v1060 = vsel %vm590, %v476, 0
      %v1063 = vsel %vm590, %v477, 0
      %v1066 = vsel %vm590, %v478, 0
      %v1069 = vsel %vm590, %v479, 0
      %v1072 = vsel %vm590, %v480, 0
      %v1075 = vsel %vm590, %v481, 0
      %v1078 = vsel %vm590, %v482, 0
      %v1081 = vsel %vm590, %v483, 0
      %v1084 = vsel %vm590, %v484, 0
      %v1087 = vsel %vm590, %v485, 0
      %v1090 = vsel %vm590, %v486, 0
      %v1093 = vsel %vm590, %v487, 0
      %v1096 = vsel %vm590, %v488, 0
      %v1099 = vsel %vm590, %v489, 0
      %v1102 = vsel %vm590, %v490, 0
      %v1105 = vsel %vm590, %v491, 0
      %v1108 = vsel %vm590, %v492, 0
      %v1111 = vsel %vm590, %v493, 0
      %v1114 = vsel %vm590, %v494, 0
      %v1117 = vsel %vm590, %v495, 0
      %v1120 = vsel %vm590, %v496, 0
      %v1123 = vsel %vm590, %v497, 0
      %v1126 = vsel %vm590, %v498, 0
      %v1129 = vsel %vm590, %v499, 0
      %v1132 = vsel %vm590, %v500, 0
      %v1135 = vsel %vm590, %v501, 0
      %v1138 = vsel %vm590, %v502, 0
      %v1141 = vsel %vm590, %v503, 0
      %v1144 = vsel %vm590, %v504, 0
      %v1147 = vsel %vm590, %v505, 0
      %v1150 = vsel %vm590, %v506, 0
      %v1153 = vsel %vm590, %v507, 0
      %v1156 = vsel %vm590, %v508, 0
      %v1159 = vsel %vm590, %v509, 0
      %v1162 = vsel %vm590, %v510, 0
      %v1165 = vsel %vm590, %v511, 0
      %v1168 = vsel %vm590, %v512, 0
      %v1171 = vsel %vm590, %v513, 0
      %v1174 = vsel %vm590, %v514, 0
      %v1177 = vsel %vm590, %v515, 0
      %v1180 = vsel %vm590, %v516, 0
      %v1183 = vsel %vm590, %v517, 0
      %v1186 = vsel %vm590, %v518, 0
      %v1189 = vsel %vm590, %v519, 0
      %v1192 = vsel %vm590, %v520, 0
      %v1195 = vsel %vm590, %v521, 0
      %v1198 = vsel %vm590, %v522, 0
      %v1201 = vsel %vm590, %v523, 0
      %v1204 = vsel %vm590, %v524, 0
      %v1207 = vsel %vm590, %v525, 0
      %v1210 = vsel %vm590, %v526, 0
      %v1213 = vsel %vm590, %v527, 0
      %v1216 = vsel %vm590, %v528, 0
      %v1219 = vsel %vm590, %v529, 0
      %v1222 = vsel %vm590, %v530, 0
      %v1225 = vsel %vm590, %v531, 0
      %v1228 = vsel %vm590, %v532, 0
      %v1231 = vsel %vm590, %v533, 0
      %v1234 = vsel %vm590, %v534, 0
      %v1237 = vsel %vm590, %v535, 0
      %v1240 = vsel %vm590, %v536, 0
      %v1243 = vsel %vm590, %v537, 0
      %v1246 = vsel %vm590, %v538, 0
      %v1249 = vsel %vm590, %v539, 0
      %v1252 = vsel %vm590, %v540, 0
      %v1255 = vsel %vm590, %v541, 0
      %v1258 = vsel %vm590, %v542, 0
      %v1261 = vsel %vm590, %v543, 0
      %v1264 = vsel %vm590, %v544, 0
      %v1267 = vsel %vm590, %v545, 0
      %v1270 = vsel %vm590, %v546, 0
      %v1273 = vsel %vm590, %v547, 0
      %v1276 = vsel %vm590, %v548, 0
      %v1279 = vsel %vm590, %v549, 0
      %v1282 = vsel %vm590, %v550, 0
      %v1285 = vsel %vm590, %v551, 0
      %v1288 = vsel %vm590, %v552, 0
      %v1291 = vsel %vm590, %v553, 0
      %v1294 = vsel %vm590, %v554, 0
      %v1297 = vsel %vm590, %v555, 0
      %v1300 = vsel %vm590, %v556, 0
      %v1303 = vsel %vm590, %v557, 0
      %v1306 = vsel %vm590, %v558, 0
      %v1309 = vsel %vm590, %v559, 0
      %v1312 = vsel %vm590, %v560, 0
      %v1315 = vsel %vm590, %v561, 0
      %v1318 = vsel %vm590, %v562, 0
      %v1321 = vsel %vm590, %v563, 0
      %v1324 = vsel %vm590, %v564, 0
      %v1327 = vsel %vm590, %v565, 0
      %v1330 = vsel %vm590, %v566, 0
      %v1333 = vsel %vm590, %v567, 0
      %v1336 = vsel %vm590, %v568, 0
      %v1339 = vsel %vm590, %v569, 0
      %v1342 = vsel %vm590, %v570, 0
      %v1345 = vsel %vm590, %v571, 0
      %v1348 = vsel %vm590, %v572, 0
      %v1351 = vsel %vm590, %v573, 0
      %v1354 = vsel %vm590, %v574, 0
      %v1357 = vsel %vm590, %v575, 0
      %1359 = vmatprep.subr.mxu0 0.0
      %1360 = vmatpush1.msra.mxu0 %v576
      %1361 = vmatprep.subr.mxu0 0.0
      %1362 = vmatpush1.msra.mxu0 %v577
      %1363 = vmatprep.subr.mxu0 0.0
      %1364 = vmatpush1.msra.mxu0 %v578
      %1365 = vmatprep.subr.mxu0 0.0
      %1366 = vmatpush1.msra.mxu0 %v579
      %1367 = vmatprep.subr.mxu0 0.0
      %1368 = vmatpush1.msra.mxu0 %v580
      %1369 = vmatprep.subr.mxu0 0.0
      %1370 = vmatpush1.msra.mxu0 %v581
      %1371 = vmatprep.subr.mxu0 0.0
      %1372 = vmatpush1.msra.mxu0 %v582
      %1373 = vmatprep.subr.mxu0 0.0
      %1374 = vmatpush1.msra.mxu0 0.0
      %1375 = vmatprep.subr.mxu0 0.0
      %1376 = vmatpush1.msra.mxu0 0.0
      %1377 = vmatprep.subr.mxu0 0.0
      %1378 = vmatpush1.msra.mxu0 0.0
      %1379 = vmatprep.subr.mxu0 0.0
      %1380 = vmatpush1.msra.mxu0 0.0
      %1381 = vmatprep.subr.mxu0 0.0
      %1382 = vmatpush1.msra.mxu0 0.0
      %1383 = vmatprep.subr.mxu0 0.0
      %1384 = vmatpush1.msra.mxu0 0.0
      %1385 = vmatprep.subr.mxu0 0.0
      %1386 = vmatpush1.msra.mxu0 0.0
      %1387 = vmatprep.subr.mxu0 0.0
      %1388 = vmatpush1.msra.mxu0 0.0
      %1389 = vmatprep.subr.mxu0 0.0
      %1390 = vmatpush1.msra.mxu0 0.0
      %1391 = vmatprep.subr.mxu0 0.0
      %1392 = vmatpush1.msra.mxu0 0.0
      %1393 = vmatprep.subr.mxu0 0.0
      %1394 = vmatpush1.msra.mxu0 0.0
      %1395 = vmatprep.subr.mxu0 0.0
      %1396 = vmatpush1.msra.mxu0 0.0
      %1397 = vmatprep.subr.mxu0 0.0
      %1398 = vmatpush1.msra.mxu0 0.0
      %1399 = vmatprep.subr.mxu0 0.0
      %1400 = vmatpush1.msra.mxu0 0.0
      %1401 = vmatprep.subr.mxu0 0.0
      %1402 = vmatpush1.msra.mxu0 0.0
      %1403 = vmatprep.subr.mxu0 0.0
      %1404 = vmatpush1.msra.mxu0 0.0
      %1405 = vmatprep.subr.mxu0 0.0
      %1406 = vmatpush1.msra.mxu0 0.0
      %1407 = vmatprep.subr.mxu0 0.0
      %1408 = vmatpush1.msra.mxu0 0.0
      %1409 = vmatprep.subr.mxu0 0.0
      %1410 = vmatpush1.msra.mxu0 0.0
      %1411 = vmatprep.subr.mxu0 0.0
      %1412 = vmatpush1.msra.mxu0 0.0
      %1413 = vmatprep.subr.mxu0 0.0
      %1414 = vmatpush1.msra.mxu0 0.0
      %1415 = vmatprep.subr.mxu0 0.0
      %1416 = vmatpush1.msra.mxu0 0.0
      %1417 = vmatprep.subr.mxu0 0.0
      %1418 = vmatpush1.msra.mxu0 0.0
      %1419 = vmatprep.subr.mxu0 0.0
      %1420 = vmatpush1.msra.mxu0 0.0
      %1421 = vmatprep.subr.mxu0 0.0
      %1422 = vmatpush1.msra.mxu0 0.0
      %1423 = vmatprep.mubr.f32.mxu0 0.0
      %1424 = vmatmul.mubr.f32.gmra.mrb[0].mxu0 %v592
      %v1425 = vpop.f32.mrb[0].mxu0
      %v1426 = vadd.f32 %v588, %v1425
      %v1427 = vpop.f32.mrb[0].mxu0
      %1428 = vmatprep.mubr.f32.mxu0 0.0
      %1429 = vmatmul.mubr.f32.gmra.mrb[0].mxu0 %v595
      %v1430 = vpop.f32.mrb[0].mxu0
      %v1431 = vadd.f32 %v588, %v1430
      %v1432 = vpop.f32.mrb[0].mxu0
      %1433 = vmatprep.mubr.f32.mxu0 0.0
      %1434 = vmatmul.mubr.f32.gmra.mrb[0].mxu0 %v598
      %v1435 = vpop.f32.mrb[0].mxu0
      %v1436 = vadd.f32 %v588, %v1435
      %v1437 = vpop.f32.mrb[0].mxu0
      %1438 = vmatprep.mubr.f32.mxu0 0.0
      %1439 = vmatmul.mubr.f32.gmra.mrb[0].mxu0 %v601
      %v1440 = vpop.f32.mrb[0].mxu0
      %v1441 = vadd.f32 %v588, %v1440
      %v1442 = vpop.f32.mrb[0].mxu0
      %1443 = vmatprep.mubr.f32.mxu0 0.0
      %1444 = vmatmul.mubr.f32.gmra.mrb[0].mxu0 %v604
      %v1445 = vpop.f32.mrb[0].mxu0
      %v1446 = vadd.f32 %v588, %v1445
      %v1447 = vpop.f32.mrb[0].mxu0
      %1448 = vmatprep.mubr.f32.mxu0 0.0
      %1449 = vmatmul.mubr.f32.gmra.mrb[0].mxu0 %v607
      %v1450 = vpop.f32.mrb[0].mxu0
      %v1451 = vadd.f32 %v588, %v1450
      %v1452 = vpop.f32.mrb[0].mxu0
      %1453 = vmatprep.mubr.f32.mxu0 0.0
      %1454 = vmatmul.mubr.f32.gmra.mrb[0].mxu0 %v610
      %v1455 = vpop.f32.mrb[0].mxu0
      %v1456 = vadd.f32 %v588, %v1455
      %v1457 = vpop.f32.mrb[0].mxu0
      %1458 = vmatprep.mubr.f32.mxu0 0.0
      %1459 = vmatmul.mubr.f32.gmra.mrb[0].mxu0 %v613
      %v1460 = vpop.f32.mrb[0].mxu0
      %v1461 = vadd.f32 %v588, %v1460
      %v1462 = vpop.f32.mrb[0].mxu0
      %1463 = vmatprep.mubr.f32.mxu0 0.0
      %1464 = vmatmul.mubr.f32.gmra.mrb[0].mxu0 %v616
      %v1465 = vpop.f32.mrb[0].mxu0
      %v1466 = vadd.f32 %v588, %v1465
      %v1467 = vpop.f32.mrb[0].mxu0
      %1468 = vmatprep.mubr.f32.mxu0 0.0
      %1469 = vmatmul.mubr.f32.gmra.mrb[0].mxu0 %v619
      %v1470 = vpop.f32.mrb[0].mxu0
      %v1471 = vadd.f32 %v588, %v1470
      %v1472 = vpop.f32.mrb[0].mxu0
      %1473 = vmatprep.mubr.f32.mxu0 0.0
      %1474 = vmatmul.mubr.f32.gmra.mrb[0].mxu0 %v622
      %v1475 = vpop.f32.mrb[0].mxu0
      %v1476 = vadd.f32 %v588, %v1475
      %v1477 = vpop.f32.mrb[0].mxu0
      %1478 = vmatprep.mubr.f32.mxu0 0.0
      %1479 = vmatmul.mubr.f32.gmra.mrb[0].mxu0 %v625
      %v1480 = vpop.f32.mrb[0].mxu0
      %v1481 = vadd.f32 %v588, %v1480
      %v1482 = vpop.f32.mrb[0].mxu0
      %1483 = vmatprep.mubr.f32.mxu0 0.0
      %1484 = vmatmul.mubr.f32.gmra.mrb[0].mxu0 %v628
      %v1485 = vpop.f32.mrb[0].mxu0
      %v1486 = vadd.f32 %v588, %v1485
      %v1487 = vpop.f32.mrb[0].mxu0
      %1488 = vmatprep.mubr.f32.mxu0 0.0
      %1489 = vmatmul.mubr.f32.gmra.mrb[0].mxu0 %v631
      %v1490 = vpop.f32.mrb[0].mxu0
      %v1491 = vadd.f32 %v588, %v1490
      %v1492 = vpop.f32.mrb[0].mxu0
      %1493 = vmatprep.mubr.f32.mxu0 0.0
      %1494 = vmatmul.mubr.f32.gmra.mrb[0].mxu0 %v634
      %v1495 = vpop.f32.mrb[0].mxu0
      %v1496 = vadd.f32 %v588, %v1495
      %v1497 = vpop.f32.mrb[0].mxu0
      %1498 = vmatprep.mubr.f32.mxu0 0.0
      %1499 = vmatmul.mubr.f32.gmra.mrb[0].mxu0 %v637
      %v1500 = vpop.f32.mrb[0].mxu0
      %v1501 = vadd.f32 %v588, %v1500
      %v1502 = vpop.f32.mrb[0].mxu0
      %1503 = vmatprep.mubr.f32.mxu0 0.0
      %1504 = vmatmul.mubr.f32.gmra.mrb[0].mxu0 %v640
      %v1505 = vpop.f32.mrb[0].mxu0
      %v1506 = vadd.f32 %v588, %v1505
      %v1507 = vpop.f32.mrb[0].mxu0
      %1508 = vmatprep.mubr.f32.mxu0 0.0
      %1509 = vmatmul.mubr.f32.gmra.mrb[0].mxu0 %v643
      %v1510 = vpop.f32.mrb[0].mxu0
      %v1511 = vadd.f32 %v588, %v1510
      %v1512 = vpop.f32.mrb[0].mxu0
      %1513 = vmatprep.mubr.f32.mxu0 0.0
      %1514 = vmatmul.mubr.f32.gmra.mrb[0].mxu0 %v646
      %v1515 = vpop.f32.mrb[0].mxu0
      %v1516 = vadd.f32 %v588, %v1515
      %v1517 = vpop.f32.mrb[0].mxu0
      %1518 = vmatprep.mubr.f32.mxu0 0.0
      %1519 = vmatmul.mubr.f32.gmra.mrb[0].mxu0 %v649
      %v1520 = vpop.f32.mrb[0].mxu0
      %v1521 = vadd.f32 %v588, %v1520
      %v1522 = vpop.f32.mrb[0].mxu0
      %1523 = vmatprep.mubr.f32.mxu0 0.0
      %1524 = vmatmul.mubr.f32.gmra.mrb[0].mxu0 %v652
      %v1525 = vpop.f32.mrb[0].mxu0
      %v1526 = vadd.f32 %v588, %v1525
      %v1527 = vpop.f32.mrb[0].mxu0
      %1528 = vmatprep.mubr.f32.mxu0 0.0
      %1529 = vmatmul.mubr.f32.gmra.mrb[0].mxu0 %v655
      %v1530 = vpop.f32.mrb[0].mxu0
      %v1531 = vadd.f32 %v588, %v1530
      %v1532 = vpop.f32.mrb[0].mxu0
      %1533 = vmatprep.mubr.f32.mxu0 0.0
      %1534 = vmatmul.mubr.f32.gmra.mrb[0].mxu0 %v658
      %v1535 = vpop.f32.mrb[0].mxu0
      %v1536 = vadd.f32 %v588, %v1535
      %v1537 = vpop.f32.mrb[0].mxu0
      %1538 = vmatprep.mubr.f32.mxu0 0.0
      %1539 = vmatmul.mubr.f32.gmra.mrb[0].mxu0 %v661
      %v1540 = vpop.f32.mrb[0].mxu0
      %v1541 = vadd.f32 %v588, %v1540
      %v1542 = vpop.f32.mrb[0].mxu0
      %1543 = vmatprep.mubr.f32.mxu0 0.0
      %1544 = vmatmul.mubr.f32.gmra.mrb[0].mxu0 %v664
      %v1545 = vpop.f32.mrb[0].mxu0
      %v1546 = vadd.f32 %v588, %v1545
      %v1547 = vpop.f32.mrb[0].mxu0
      %1548 = vmatprep.mubr.f32.mxu0 0.0
      %1549 = vmatmul.mubr.f32.gmra.mrb[0].mxu0 %v667
      %v1550 = vpop.f32.mrb[0].mxu0
      %v1551 = vadd.f32 %v588, %v1550
      %v1552 = vpop.f32.mrb[0].mxu0
      %1553 = vmatprep.mubr.f32.mxu0 0.0
      %1554 = vmatmul.mubr.f32.gmra.mrb[0].mxu0 %v670
      %v1555 = vpop.f32.mrb[0].mxu0
      %v1556 = vadd.f32 %v588, %v1555
      %v1557 = vpop.f32.mrb[0].mxu0
      %1558 = vmatprep.mubr.f32.mxu0 0.0
      %1559 = vmatmul.mubr.f32.gmra.mrb[0].mxu0 %v673
      %v1560 = vpop.f32.mrb[0].mxu0
      %v1561 = vadd.f32 %v588, %v1560
      %v1562 = vpop.f32.mrb[0].mxu0
      %1563 = vmatprep.mubr.f32.mxu0 0.0
      %1564 = vmatmul.mubr.f32.gmra.mrb[0].mxu0 %v676
      %v1565 = vpop.f32.mrb[0].mxu0
      %v1566 = vadd.f32 %v588, %v1565
      %v1567 = vpop.f32.mrb[0].mxu0
      %1568 = vmatprep.mubr.f32.mxu0 0.0
      %1569 = vmatmul.mubr.f32.gmra.mrb[0].mxu0 %v679
      %v1570 = vpop.f32.mrb[0].mxu0
      %v1571 = vadd.f32 %v588, %v1570
      %v1572 = vpop.f32.mrb[0].mxu0
      %1573 = vmatprep.mubr.f32.mxu0 0.0
      %1574 = vmatmul.mubr.f32.gmra.mrb[0].mxu0 %v682
      %v1575 = vpop.f32.mrb[0].mxu0
      %v1576 = vadd.f32 %v588, %v1575
      %v1577 = vpop.f32.mrb[0].mxu0
      %1578 = vmatprep.mubr.f32.mxu0 0.0
      %1579 = vmatmul.mubr.f32.gmra.mrb[0].mxu0 %v685
      %v1580 = vpop.f32.mrb[0].mxu0
      %v1581 = vadd.f32 %v588, %v1580
      %v1582 = vpop.f32.mrb[0].mxu0
      %1583 = vmatprep.mubr.f32.mxu0 0.0
      %1584 = vmatmul.mubr.f32.gmra.mrb[0].mxu0 %v688
      %v1585 = vpop.f32.mrb[0].mxu0
      %v1586 = vadd.f32 %v588, %v1585
      %v1587 = vpop.f32.mrb[0].mxu0
      %1588 = vmatprep.mubr.f32.mxu0 0.0
      %1589 = vmatmul.mubr.f32.gmra.mrb[0].mxu0 %v691
      %v1590 = vpop.f32.mrb[0].mxu0
      %v1591 = vadd.f32 %v588, %v1590
      %v1592 = vpop.f32.mrb[0].mxu0
      %1593 = vmatprep.mubr.f32.mxu0 0.0
      %1594 = vmatmul.mubr.f32.gmra.mrb[0].mxu0 %v694
      %v1595 = vpop.f32.mrb[0].mxu0
      %v1596 = vadd.f32 %v588, %v1595
      %v1597 = vpop.f32.mrb[0].mxu0
      %1598 = vmatprep.mubr.f32.mxu0 0.0
      %1599 = vmatmul.mubr.f32.gmra.mrb[0].mxu0 %v697
      %v1600 = vpop.f32.mrb[0].mxu0
      %v1601 = vadd.f32 %v588, %v1600
      %v1602 = vpop.f32.mrb[0].mxu0
      %1603 = vmatprep.mubr.f32.mxu0 0.0
      %1604 = vmatmul.mubr.f32.gmra.mrb[0].mxu0 %v700
      %v1605 = vpop.f32.mrb[0].mxu0
      %v1606 = vadd.f32 %v588, %v1605
      %v1607 = vpop.f32.mrb[0].mxu0
      %1608 = vmatprep.mubr.f32.mxu0 0.0
      %1609 = vmatmul.mubr.f32.gmra.mrb[0].mxu0 %v703
      %v1610 = vpop.f32.mrb[0].mxu0
      %v1611 = vadd.f32 %v588, %v1610
      %v1612 = vpop.f32.mrb[0].mxu0
      %1613 = vmatprep.mubr.f32.mxu0 0.0
      %1614 = vmatmul.mubr.f32.gmra.mrb[0].mxu0 %v706
      %v1615 = vpop.f32.mrb[0].mxu0
      %v1616 = vadd.f32 %v588, %v1615
      %v1617 = vpop.f32.mrb[0].mxu0
      %1618 = vmatprep.mubr.f32.mxu0 0.0
      %1619 = vmatmul.mubr.f32.gmra.mrb[0].mxu0 %v709
      %v1620 = vpop.f32.mrb[0].mxu0
      %v1621 = vadd.f32 %v588, %v1620
      %v1622 = vpop.f32.mrb[0].mxu0
      %1623 = vmatprep.mubr.f32.mxu0 0.0
      %1624 = vmatmul.mubr.f32.gmra.mrb[0].mxu0 %v712
      %v1625 = vpop.f32.mrb[0].mxu0
      %v1626 = vadd.f32 %v588, %v1625
      %v1627 = vpop.f32.mrb[0].mxu0
      %1628 = vmatprep.mubr.f32.mxu0 0.0
      %1629 = vmatmul.mubr.f32.gmra.mrb[0].mxu0 %v715
      %v1630 = vpop.f32.mrb[0].mxu0
      %v1631 = vadd.f32 %v588, %v1630
      %v1632 = vpop.f32.mrb[0].mxu0
      %1633 = vmatprep.mubr.f32.mxu0 0.0
      %1634 = vmatmul.mubr.f32.gmra.mrb[0].mxu0 %v718
      %v1635 = vpop.f32.mrb[0].mxu0
      %v1636 = vadd.f32 %v588, %v1635
      %v1637 = vpop.f32.mrb[0].mxu0
      %1638 = vmatprep.mubr.f32.mxu0 0.0
      %1639 = vmatmul.mubr.f32.gmra.mrb[0].mxu0 %v721
      %v1640 = vpop.f32.mrb[0].mxu0
      %v1641 = vadd.f32 %v588, %v1640
      %v1642 = vpop.f32.mrb[0].mxu0
      %1643 = vmatprep.mubr.f32.mxu0 0.0
      %1644 = vmatmul.mubr.f32.gmra.mrb[0].mxu0 %v724
      %v1645 = vpop.f32.mrb[0].mxu0
      %v1646 = vadd.f32 %v588, %v1645
      %v1647 = vpop.f32.mrb[0].mxu0
      %1648 = vmatprep.mubr.f32.mxu0 0.0
      %1649 = vmatmul.mubr.f32.gmra.mrb[0].mxu0 %v727
      %v1650 = vpop.f32.mrb[0].mxu0
      %v1651 = vadd.f32 %v588, %v1650
      %v1652 = vpop.f32.mrb[0].mxu0
      %1653 = vmatprep.mubr.f32.mxu0 0.0
      %1654 = vmatmul.mubr.f32.gmra.mrb[0].mxu0 %v730
      %v1655 = vpop.f32.mrb[0].mxu0
      %v1656 = vadd.f32 %v588, %v1655
      %v1657 = vpop.f32.mrb[0].mxu0
      %1658 = vmatprep.mubr.f32.mxu0 0.0
      %1659 = vmatmul.mubr.f32.gmra.mrb[0].mxu0 %v733
      %v1660 = vpop.f32.mrb[0].mxu0
      %v1661 = vadd.f32 %v588, %v1660
      %v1662 = vpop.f32.mrb[0].mxu0
      %1663 = vmatprep.mubr.f32.mxu0 0.0
      %1664 = vmatmul.mubr.f32.gmra.mrb[0].mxu0 %v736
      %v1665 = vpop.f32.mrb[0].mxu0
      %v1666 = vadd.f32 %v588, %v1665
      %v1667 = vpop.f32.mrb[0].mxu0
      %1668 = vmatprep.mubr.f32.mxu0 0.0
      %1669 = vmatmul.mubr.f32.gmra.mrb[0].mxu0 %v739
      %v1670 = vpop.f32.mrb[0].mxu0
      %v1671 = vadd.f32 %v588, %v1670
      %v1672 = vpop.f32.mrb[0].mxu0
      %1673 = vmatprep.mubr.f32.mxu0 0.0
      %1674 = vmatmul.mubr.f32.gmra.mrb[0].mxu0 %v742
      %v1675 = vpop.f32.mrb[0].mxu0
      %v1676 = vadd.f32 %v588, %v1675
      %v1677 = vpop.f32.mrb[0].mxu0
      %1678 = vmatprep.mubr.f32.mxu0 0.0
      %1679 = vmatmul.mubr.f32.gmra.mrb[0].mxu0 %v745
      %v1680 = vpop.f32.mrb[0].mxu0
      %v1681 = vadd.f32 %v588, %v1680
      %v1682 = vpop.f32.mrb[0].mxu0
      %1683 = vmatprep.mubr.f32.mxu0 0.0
      %1684 = vmatmul.mubr.f32.gmra.mrb[0].mxu0 %v748
      %v1685 = vpop.f32.mrb[0].mxu0
      %v1686 = vadd.f32 %v588, %v1685
      %v1687 = vpop.f32.mrb[0].mxu0
      %1688 = vmatprep.mubr.f32.mxu0 0.0
      %1689 = vmatmul.mubr.f32.gmra.mrb[0].mxu0 %v751
      %v1690 = vpop.f32.mrb[0].mxu0
      %v1691 = vadd.f32 %v588, %v1690
      %v1692 = vpop.f32.mrb[0].mxu0
      %1693 = vmatprep.mubr.f32.mxu0 0.0
      %1694 = vmatmul.mubr.f32.gmra.mrb[0].mxu0 %v754
      %v1695 = vpop.f32.mrb[0].mxu0
      %v1696 = vadd.f32 %v588, %v1695
      %v1697 = vpop.f32.mrb[0].mxu0
      %1698 = vmatprep.mubr.f32.mxu0 0.0
      %1699 = vmatmul.mubr.f32.gmra.mrb[0].mxu0 %v757
      %v1700 = vpop.f32.mrb[0].mxu0
      %v1701 = vadd.f32 %v588, %v1700
      %v1702 = vpop.f32.mrb[0].mxu0
      %1703 = vmatprep.mubr.f32.mxu0 0.0
      %1704 = vmatmul.mubr.f32.gmra.mrb[0].mxu0 %v760
      %v1705 = vpop.f32.mrb[0].mxu0
      %v1706 = vadd.f32 %v588, %v1705
      %v1707 = vpop.f32.mrb[0].mxu0
      %1708 = vmatprep.mubr.f32.mxu0 0.0
      %1709 = vmatmul.mubr.f32.gmra.mrb[0].mxu0 %v763
      %v1710 = vpop.f32.mrb[0].mxu0
      %v1711 = vadd.f32 %v588, %v1710
      %v1712 = vpop.f32.mrb[0].mxu0
      %1713 = vmatprep.mubr.f32.mxu0 0.0
      %1714 = vmatmul.mubr.f32.gmra.mrb[0].mxu0 %v766
      %v1715 = vpop.f32.mrb[0].mxu0
      %v1716 = vadd.f32 %v588, %v1715
      %v1717 = vpop.f32.mrb[0].mxu0
      %1718 = vmatprep.mubr.f32.mxu0 0.0
      %1719 = vmatmul.mubr.f32.gmra.mrb[0].mxu0 %v769
      %v1720 = vpop.f32.mrb[0].mxu0
      %v1721 = vadd.f32 %v588, %v1720
      %v1722 = vpop.f32.mrb[0].mxu0
      %1723 = vmatprep.mubr.f32.mxu0 0.0
      %1724 = vmatmul.mubr.f32.gmra.mrb[0].mxu0 %v772
      %v1725 = vpop.f32.mrb[0].mxu0
      %v1726 = vadd.f32 %v588, %v1725
      %v1727 = vpop.f32.mrb[0].mxu0
      %1728 = vmatprep.mubr.f32.mxu0 0.0
      %1729 = vmatmul.mubr.f32.gmra.mrb[0].mxu0 %v775
      %v1730 = vpop.f32.mrb[0].mxu0
      %v1731 = vadd.f32 %v588, %v1730
      %v1732 = vpop.f32.mrb[0].mxu0
      %1733 = vmatprep.mubr.f32.mxu0 0.0
      %1734 = vmatmul.mubr.f32.gmra.mrb[0].mxu0 %v778
      %v1735 = vpop.f32.mrb[0].mxu0
      %v1736 = vadd.f32 %v588, %v1735
      %v1737 = vpop.f32.mrb[0].mxu0
      %1738 = vmatprep.mubr.f32.mxu0 0.0
      %1739 = vmatmul.mubr.f32.gmra.mrb[0].mxu0 %v781
      %v1740 = vpop.f32.mrb[0].mxu0
      %v1741 = vadd.f32 %v588, %v1740
      %v1742 = vpop.f32.mrb[0].mxu0
      %1743 = vmatprep.mubr.f32.mxu0 0.0
      %1744 = vmatmul.mubr.f32.gmra.mrb[0].mxu0 %v784
      %v1745 = vpop.f32.mrb[0].mxu0
      %v1746 = vadd.f32 %v588, %v1745
      %v1747 = vpop.f32.mrb[0].mxu0
      %1748 = vmatprep.mubr.f32.mxu0 0.0
      %1749 = vmatmul.mubr.f32.gmra.mrb[0].mxu0 %v787
      %v1750 = vpop.f32.mrb[0].mxu0
      %v1751 = vadd.f32 %v588, %v1750
      %v1752 = vpop.f32.mrb[0].mxu0
      %1753 = vmatprep.mubr.f32.mxu0 0.0
      %1754 = vmatmul.mubr.f32.gmra.mrb[0].mxu0 %v790
      %v1755 = vpop.f32.mrb[0].mxu0
      %v1756 = vadd.f32 %v588, %v1755
      %v1757 = vpop.f32.mrb[0].mxu0
      %1758 = vmatprep.mubr.f32.mxu0 0.0
      %1759 = vmatmul.mubr.f32.gmra.mrb[0].mxu0 %v793
      %v1760 = vpop.f32.mrb[0].mxu0
      %v1761 = vadd.f32 %v588, %v1760
      %v1762 = vpop.f32.mrb[0].mxu0
      %1763 = vmatprep.mubr.f32.mxu0 0.0
      %1764 = vmatmul.mubr.f32.gmra.mrb[0].mxu0 %v796
      %v1765 = vpop.f32.mrb[0].mxu0
      %v1766 = vadd.f32 %v588, %v1765
      %v1767 = vpop.f32.mrb[0].mxu0
      %1768 = vmatprep.mubr.f32.mxu0 0.0
      %1769 = vmatmul.mubr.f32.gmra.mrb[0].mxu0 %v799
      %v1770 = vpop.f32.mrb[0].mxu0
      %v1771 = vadd.f32 %v588, %v1770
      %v1772 = vpop.f32.mrb[0].mxu0
      %1773 = vmatprep.mubr.f32.mxu0 0.0
      %1774 = vmatmul.mubr.f32.gmra.mrb[0].mxu0 %v802
      %v1775 = vpop.f32.mrb[0].mxu0
      %v1776 = vadd.f32 %v588, %v1775
      %v1777 = vpop.f32.mrb[0].mxu0
      %1778 = vmatprep.mubr.f32.mxu0 0.0
      %1779 = vmatmul.mubr.f32.gmra.mrb[0].mxu0 %v805
      %v1780 = vpop.f32.mrb[0].mxu0
      %v1781 = vadd.f32 %v588, %v1780
      %v1782 = vpop.f32.mrb[0].mxu0
      %1783 = vmatprep.mubr.f32.mxu0 0.0
      %1784 = vmatmul.mubr.f32.gmra.mrb[0].mxu0 %v808
      %v1785 = vpop.f32.mrb[0].mxu0
      %v1786 = vadd.f32 %v588, %v1785
      %v1787 = vpop.f32.mrb[0].mxu0
      %1788 = vmatprep.mubr.f32.mxu0 0.0
      %1789 = vmatmul.mubr.f32.gmra.mrb[0].mxu0 %v811
      %v1790 = vpop.f32.mrb[0].mxu0
      %v1791 = vadd.f32 %v588, %v1790
      %v1792 = vpop.f32.mrb[0].mxu0
      %1793 = vmatprep.mubr.f32.mxu0 0.0
      %1794 = vmatmul.mubr.f32.gmra.mrb[0].mxu0 %v814
      %v1795 = vpop.f32.mrb[0].mxu0
      %v1796 = vadd.f32 %v588, %v1795
      %v1797 = vpop.f32.mrb[0].mxu0
      %1798 = vmatprep.mubr.f32.mxu0 0.0
      %1799 = vmatmul.mubr.f32.gmra.mrb[0].mxu0 %v817
      %v1800 = vpop.f32.mrb[0].mxu0
      %v1801 = vadd.f32 %v588, %v1800
      %v1802 = vpop.f32.mrb[0].mxu0
      %1803 = vmatprep.mubr.f32.mxu0 0.0
      %1804 = vmatmul.mubr.f32.gmra.mrb[0].mxu0 %v820
      %v1805 = vpop.f32.mrb[0].mxu0
      %v1806 = vadd.f32 %v588, %v1805
      %v1807 = vpop.f32.mrb[0].mxu0
      %1808 = vmatprep.mubr.f32.mxu0 0.0
      %1809 = vmatmul.mubr.f32.gmra.mrb[0].mxu0 %v823
      %v1810 = vpop.f32.mrb[0].mxu0
      %v1811 = vadd.f32 %v588, %v1810
      %v1812 = vpop.f32.mrb[0].mxu0
      %1813 = vmatprep.mubr.f32.mxu0 0.0
      %1814 = vmatmul.mubr.f32.gmra.mrb[0].mxu0 %v826
      %v1815 = vpop.f32.mrb[0].mxu0
      %v1816 = vadd.f32 %v588, %v1815
      %v1817 = vpop.f32.mrb[0].mxu0
      %1818 = vmatprep.mubr.f32.mxu0 0.0
      %1819 = vmatmul.mubr.f32.gmra.mrb[0].mxu0 %v829
      %v1820 = vpop.f32.mrb[0].mxu0
      %v1821 = vadd.f32 %v588, %v1820
      %v1822 = vpop.f32.mrb[0].mxu0
      %1823 = vmatprep.mubr.f32.mxu0 0.0
      %1824 = vmatmul.mubr.f32.gmra.mrb[0].mxu0 %v832
      %v1825 = vpop.f32.mrb[0].mxu0
      %v1826 = vadd.f32 %v588, %v1825
      %v1827 = vpop.f32.mrb[0].mxu0
      %1828 = vmatprep.mubr.f32.mxu0 0.0
      %1829 = vmatmul.mubr.f32.gmra.mrb[0].mxu0 %v835
      %v1830 = vpop.f32.mrb[0].mxu0
      %v1831 = vadd.f32 %v588, %v1830
      %v1832 = vpop.f32.mrb[0].mxu0
      %1833 = vmatprep.mubr.f32.mxu0 0.0
      %1834 = vmatmul.mubr.f32.gmra.mrb[0].mxu0 %v838
      %v1835 = vpop.f32.mrb[0].mxu0
      %v1836 = vadd.f32 %v588, %v1835
      %v1837 = vpop.f32.mrb[0].mxu0
      %1838 = vmatprep.mubr.f32.mxu0 0.0
      %1839 = vmatmul.mubr.f32.gmra.mrb[0].mxu0 %v841
      %v1840 = vpop.f32.mrb[0].mxu0
      %v1841 = vadd.f32 %v588, %v1840
      %v1842 = vpop.f32.mrb[0].mxu0
      %1843 = vmatprep.mubr.f32.mxu0 0.0
      %1844 = vmatmul.mubr.f32.gmra.mrb[0].mxu0 %v844
      %v1845 = vpop.f32.mrb[0].mxu0
      %v1846 = vadd.f32 %v588, %v1845
      %v1847 = vpop.f32.mrb[0].mxu0
      %1848 = vmatprep.mubr.f32.mxu0 0.0
      %1849 = vmatmul.mubr.f32.gmra.mrb[0].mxu0 %v847
      %v1850 = vpop.f32.mrb[0].mxu0
      %v1851 = vadd.f32 %v588, %v1850
      %v1852 = vpop.f32.mrb[0].mxu0
      %1853 = vmatprep.mubr.f32.mxu0 0.0
      %1854 = vmatmul.mubr.f32.gmra.mrb[0].mxu0 %v850
      %v1855 = vpop.f32.mrb[0].mxu0
      %v1856 = vadd.f32 %v588, %v1855
      %v1857 = vpop.f32.mrb[0].mxu0
      %1858 = vmatprep.mubr.f32.mxu0 0.0
      %1859 = vmatmul.mubr.f32.gmra.mrb[0].mxu0 %v853
      %v1860 = vpop.f32.mrb[0].mxu0
      %v1861 = vadd.f32 %v588, %v1860
      %v1862 = vpop.f32.mrb[0].mxu0
      %1863 = vmatprep.mubr.f32.mxu0 0.0
      %1864 = vmatmul.mubr.f32.gmra.mrb[0].mxu0 %v856
      %v1865 = vpop.f32.mrb[0].mxu0
      %v1866 = vadd.f32 %v588, %v1865
      %v1867 = vpop.f32.mrb[0].mxu0
      %1868 = vmatprep.mubr.f32.mxu0 0.0
      %1869 = vmatmul.mubr.f32.gmra.mrb[0].mxu0 %v859
      %v1870 = vpop.f32.mrb[0].mxu0
      %v1871 = vadd.f32 %v588, %v1870
      %v1872 = vpop.f32.mrb[0].mxu0
      %1873 = vmatprep.mubr.f32.mxu0 0.0
      %1874 = vmatmul.mubr.f32.gmra.mrb[0].mxu0 %v862
      %v1875 = vpop.f32.mrb[0].mxu0
      %v1876 = vadd.f32 %v588, %v1875
      %v1877 = vpop.f32.mrb[0].mxu0
      %1878 = vmatprep.mubr.f32.mxu0 0.0
      %1879 = vmatmul.mubr.f32.gmra.mrb[0].mxu0 %v865
      %v1880 = vpop.f32.mrb[0].mxu0
      %v1881 = vadd.f32 %v588, %v1880
      %v1882 = vpop.f32.mrb[0].mxu0
      %1883 = vmatprep.mubr.f32.mxu0 0.0
      %1884 = vmatmul.mubr.f32.gmra.mrb[0].mxu0 %v868
      %v1885 = vpop.f32.mrb[0].mxu0
      %v1886 = vadd.f32 %v588, %v1885
      %v1887 = vpop.f32.mrb[0].mxu0
      %1888 = vmatprep.mubr.f32.mxu0 0.0
      %1889 = vmatmul.mubr.f32.gmra.mrb[0].mxu0 %v871
      %v1890 = vpop.f32.mrb[0].mxu0
      %v1891 = vadd.f32 %v588, %v1890
      %v1892 = vpop.f32.mrb[0].mxu0
      %1893 = vmatprep.mubr.f32.mxu0 0.0
      %1894 = vmatmul.mubr.f32.gmra.mrb[0].mxu0 %v874
      %v1895 = vpop.f32.mrb[0].mxu0
      %v1896 = vadd.f32 %v588, %v1895
      %v1897 = vpop.f32.mrb[0].mxu0
      %1898 = vmatprep.mubr.f32.mxu0 0.0
      %1899 = vmatmul.mubr.f32.gmra.mrb[0].mxu0 %v877
      %v1900 = vpop.f32.mrb[0].mxu0
      %v1901 = vadd.f32 %v588, %v1900
      %v1902 = vpop.f32.mrb[0].mxu0
      %1903 = vmatprep.mubr.f32.mxu0 0.0
      %1904 = vmatmul.mubr.f32.gmra.mrb[0].mxu0 %v880
      %v1905 = vpop.f32.mrb[0].mxu0
      %v1906 = vadd.f32 %v588, %v1905
      %v1907 = vpop.f32.mrb[0].mxu0
      %1908 = vmatprep.mubr.f32.mxu0 0.0
      %1909 = vmatmul.mubr.f32.gmra.mrb[0].mxu0 %v883
      %v1910 = vpop.f32.mrb[0].mxu0
      %v1911 = vadd.f32 %v588, %v1910
      %v1912 = vpop.f32.mrb[0].mxu0
      %1913 = vmatprep.mubr.f32.mxu0 0.0
      %1914 = vmatmul.mubr.f32.gmra.mrb[0].mxu0 %v886
      %v1915 = vpop.f32.mrb[0].mxu0
      %v1916 = vadd.f32 %v588, %v1915
      %v1917 = vpop.f32.mrb[0].mxu0
      %1918 = vmatprep.mubr.f32.mxu0 0.0
      %1919 = vmatmul.mubr.f32.gmra.mrb[0].mxu0 %v889
      %v1920 = vpop.f32.mrb[0].mxu0
      %v1921 = vadd.f32 %v588, %v1920
      %v1922 = vpop.f32.mrb[0].mxu0
      %1923 = vmatprep.mubr.f32.mxu0 0.0
      %1924 = vmatmul.mubr.f32.gmra.mrb[0].mxu0 %v892
      %v1925 = vpop.f32.mrb[0].mxu0
      %v1926 = vadd.f32 %v588, %v1925
      %v1927 = vpop.f32.mrb[0].mxu0
      %1928 = vmatprep.mubr.f32.mxu0 0.0
      %1929 = vmatmul.mubr.f32.gmra.mrb[0].mxu0 %v895
      %v1930 = vpop.f32.mrb[0].mxu0
      %v1931 = vadd.f32 %v588, %v1930
      %v1932 = vpop.f32.mrb[0].mxu0
      %1933 = vmatprep.mubr.f32.mxu0 0.0
      %1934 = vmatmul.mubr.f32.gmra.mrb[0].mxu0 %v898
      %v1935 = vpop.f32.mrb[0].mxu0
      %v1936 = vadd.f32 %v588, %v1935
      %v1937 = vpop.f32.mrb[0].mxu0
      %1938 = vmatprep.mubr.f32.mxu0 0.0
      %1939 = vmatmul.mubr.f32.gmra.mrb[0].mxu0 %v901
      %v1940 = vpop.f32.mrb[0].mxu0
      %v1941 = vadd.f32 %v588, %v1940
      %v1942 = vpop.f32.mrb[0].mxu0
      %1943 = vmatprep.mubr.f32.mxu0 0.0
      %1944 = vmatmul.mubr.f32.gmra.mrb[0].mxu0 %v904
      %v1945 = vpop.f32.mrb[0].mxu0
      %v1946 = vadd.f32 %v588, %v1945
      %v1947 = vpop.f32.mrb[0].mxu0
      %1948 = vmatprep.mubr.f32.mxu0 0.0
      %1949 = vmatmul.mubr.f32.gmra.mrb[0].mxu0 %v907
      %v1950 = vpop.f32.mrb[0].mxu0
      %v1951 = vadd.f32 %v588, %v1950
      %v1952 = vpop.f32.mrb[0].mxu0
      %1953 = vmatprep.mubr.f32.mxu0 0.0
      %1954 = vmatmul.mubr.f32.gmra.mrb[0].mxu0 %v910
      %v1955 = vpop.f32.mrb[0].mxu0
      %v1956 = vadd.f32 %v588, %v1955
      %v1957 = vpop.f32.mrb[0].mxu0
      %1958 = vmatprep.mubr.f32.mxu0 0.0
      %1959 = vmatmul.mubr.f32.gmra.mrb[0].mxu0 %v913
      %v1960 = vpop.f32.mrb[0].mxu0
      %v1961 = vadd.f32 %v588, %v1960
      %v1962 = vpop.f32.mrb[0].mxu0
      %1963 = vmatprep.mubr.f32.mxu0 0.0
      %1964 = vmatmul.mubr.f32.gmra.mrb[0].mxu0 %v916
      %v1965 = vpop.f32.mrb[0].mxu0
      %v1966 = vadd.f32 %v588, %v1965
      %v1967 = vpop.f32.mrb[0].mxu0
      %1968 = vmatprep.mubr.f32.mxu0 0.0
      %1969 = vmatmul.mubr.f32.gmra.mrb[0].mxu0 %v919
      %v1970 = vpop.f32.mrb[0].mxu0
      %v1971 = vadd.f32 %v588, %v1970
      %v1972 = vpop.f32.mrb[0].mxu0
      %1973 = vmatprep.mubr.f32.mxu0 0.0
      %1974 = vmatmul.mubr.f32.gmra.mrb[0].mxu0 %v922
      %v1975 = vpop.f32.mrb[0].mxu0
      %v1976 = vadd.f32 %v588, %v1975
      %v1977 = vpop.f32.mrb[0].mxu0
      %1978 = vmatprep.mubr.f32.mxu0 0.0
      %1979 = vmatmul.mubr.f32.gmra.mrb[0].mxu0 %v925
      %v1980 = vpop.f32.mrb[0].mxu0
      %v1981 = vadd.f32 %v588, %v1980
      %v1982 = vpop.f32.mrb[0].mxu0
      %1983 = vmatprep.mubr.f32.mxu0 0.0
      %1984 = vmatmul.mubr.f32.gmra.mrb[0].mxu0 %v928
      %v1985 = vpop.f32.mrb[0].mxu0
      %v1986 = vadd.f32 %v588, %v1985
      %v1987 = vpop.f32.mrb[0].mxu0
      %1988 = vmatprep.mubr.f32.mxu0 0.0
      %1989 = vmatmul.mubr.f32.gmra.mrb[0].mxu0 %v931
      %v1990 = vpop.f32.mrb[0].mxu0
      %v1991 = vadd.f32 %v588, %v1990
      %v1992 = vpop.f32.mrb[0].mxu0
      %1993 = vmatprep.mubr.f32.mxu0 0.0
      %1994 = vmatmul.mubr.f32.gmra.mrb[0].mxu0 %v934
      %v1995 = vpop.f32.mrb[0].mxu0
      %v1996 = vadd.f32 %v588, %v1995
      %v1997 = vpop.f32.mrb[0].mxu0
      %1998 = vmatprep.mubr.f32.mxu0 0.0
      %1999 = vmatmul.mubr.f32.gmra.mrb[0].mxu0 %v937
      %v2000 = vpop.f32.mrb[0].mxu0
      %v2001 = vadd.f32 %v588, %v2000
      %v2002 = vpop.f32.mrb[0].mxu0
      %2003 = vmatprep.mubr.f32.mxu0 0.0
      %2004 = vmatmul.mubr.f32.gmra.mrb[0].mxu0 %v940
      %v2005 = vpop.f32.mrb[0].mxu0
      %v2006 = vadd.f32 %v588, %v2005
      %v2007 = vpop.f32.mrb[0].mxu0
      %2008 = vmatprep.mubr.f32.mxu0 0.0
      %2009 = vmatmul.mubr.f32.gmra.mrb[0].mxu0 %v943
      %v2010 = vpop.f32.mrb[0].mxu0
      %v2011 = vadd.f32 %v588, %v2010
      %v2012 = vpop.f32.mrb[0].mxu0
      %2013 = vmatprep.mubr.f32.mxu0 0.0
      %2014 = vmatmul.mubr.f32.gmra.mrb[0].mxu0 %v946
      %v2015 = vpop.f32.mrb[0].mxu0
      %v2016 = vadd.f32 %v588, %v2015
      %v2017 = vpop.f32.mrb[0].mxu0
      %2018 = vmatprep.mubr.f32.mxu0 0.0
      %2019 = vmatmul.mubr.f32.gmra.mrb[0].mxu0 %v949
      %v2020 = vpop.f32.mrb[0].mxu0
      %v2021 = vadd.f32 %v588, %v2020
      %v2022 = vpop.f32.mrb[0].mxu0
      %2023 = vmatprep.mubr.f32.mxu0 0.0
      %2024 = vmatmul.mubr.f32.gmra.mrb[0].mxu0 %v952
      %v2025 = vpop.f32.mrb[0].mxu0
      %v2026 = vadd.f32 %v588, %v2025
      %v2027 = vpop.f32.mrb[0].mxu0
      %2028 = vmatprep.mubr.f32.mxu0 0.0
      %2029 = vmatmul.mubr.f32.gmra.mrb[0].mxu0 %v955
      %v2030 = vpop.f32.mrb[0].mxu0
      %v2031 = vadd.f32 %v588, %v2030
      %v2032 = vpop.f32.mrb[0].mxu0
      %2033 = vmatprep.mubr.f32.mxu0 0.0
      %2034 = vmatmul.mubr.f32.gmra.mrb[0].mxu0 %v958
      %v2035 = vpop.f32.mrb[0].mxu0
      %v2036 = vadd.f32 %v588, %v2035
      %v2037 = vpop.f32.mrb[0].mxu0
      %2038 = vmatprep.mubr.f32.mxu0 0.0
      %2039 = vmatmul.mubr.f32.gmra.mrb[0].mxu0 %v961
      %v2040 = vpop.f32.mrb[0].mxu0
      %v2041 = vadd.f32 %v588, %v2040
      %v2042 = vpop.f32.mrb[0].mxu0
      %2043 = vmatprep.mubr.f32.mxu0 0.0
      %2044 = vmatmul.mubr.f32.gmra.mrb[0].mxu0 %v964
      %v2045 = vpop.f32.mrb[0].mxu0
      %v2046 = vadd.f32 %v588, %v2045
      %v2047 = vpop.f32.mrb[0].mxu0
      %2048 = vmatprep.mubr.f32.mxu0 0.0
      %2049 = vmatmul.mubr.f32.gmra.mrb[0].mxu0 %v967
      %v2050 = vpop.f32.mrb[0].mxu0
      %v2051 = vadd.f32 %v588, %v2050
      %v2052 = vpop.f32.mrb[0].mxu0
      %2053 = vmatprep.mubr.f32.mxu0 0.0
      %2054 = vmatmul.mubr.f32.gmra.mrb[0].mxu0 %v970
      %v2055 = vpop.f32.mrb[0].mxu0
      %v2056 = vadd.f32 %v588, %v2055
      %v2057 = vpop.f32.mrb[0].mxu0
      %2058 = vmatprep.mubr.f32.mxu0 0.0
      %2059 = vmatmul.mubr.f32.gmra.mrb[0].mxu0 %v973
      %v2060 = vpop.f32.mrb[0].mxu0
      %v2061 = vadd.f32 %v588, %v2060
      %v2062 = vpop.f32.mrb[0].mxu0
      %2063 = vmatprep.mubr.f32.mxu0 0.0
      %2064 = vmatmul.mubr.f32.gmra.mrb[0].mxu0 %v976
      %v2065 = vpop.f32.mrb[0].mxu0
      %v2066 = vadd.f32 %v588, %v2065
      %v2067 = vpop.f32.mrb[0].mxu0
      %2068 = vmatprep.mubr.f32.mxu0 0.0
      %2069 = vmatmul.mubr.f32.gmra.mrb[0].mxu0 %v979
      %v2070 = vpop.f32.mrb[0].mxu0
      %v2071 = vadd.f32 %v588, %v2070
      %v2072 = vpop.f32.mrb[0].mxu0
      %2073 = vmatprep.mubr.f32.mxu0 0.0
      %2074 = vmatmul.mubr.f32.gmra.mrb[0].mxu0 %v982
      %v2075 = vpop.f32.mrb[0].mxu0
      %v2076 = vadd.f32 %v588, %v2075
      %v2077 = vpop.f32.mrb[0].mxu0
      %2078 = vmatprep.mubr.f32.mxu0 0.0
      %2079 = vmatmul.mubr.f32.gmra.mrb[0].mxu0 %v985
      %v2080 = vpop.f32.mrb[0].mxu0
      %v2081 = vadd.f32 %v588, %v2080
      %v2082 = vpop.f32.mrb[0].mxu0
      %2083 = vmatprep.mubr.f32.mxu0 0.0
      %2084 = vmatmul.mubr.f32.gmra.mrb[0].mxu0 %v988
      %v2085 = vpop.f32.mrb[0].mxu0
      %v2086 = vadd.f32 %v588, %v2085
      %v2087 = vpop.f32.mrb[0].mxu0
      %2088 = vmatprep.mubr.f32.mxu0 0.0
      %2089 = vmatmul.mubr.f32.gmra.mrb[0].mxu0 %v991
      %v2090 = vpop.f32.mrb[0].mxu0
      %v2091 = vadd.f32 %v588, %v2090
      %v2092 = vpop.f32.mrb[0].mxu0
      %2093 = vmatprep.mubr.f32.mxu0 0.0
      %2094 = vmatmul.mubr.f32.gmra.mrb[0].mxu0 %v994
      %v2095 = vpop.f32.mrb[0].mxu0
      %v2096 = vadd.f32 %v588, %v2095
      %v2097 = vpop.f32.mrb[0].mxu0
      %2098 = vmatprep.mubr.f32.mxu0 0.0
      %2099 = vmatmul.mubr.f32.gmra.mrb[0].mxu0 %v997
      %v2100 = vpop.f32.mrb[0].mxu0
      %v2101 = vadd.f32 %v588, %v2100
      %v2102 = vpop.f32.mrb[0].mxu0
      %2103 = vmatprep.mubr.f32.mxu0 0.0
      %2104 = vmatmul.mubr.f32.gmra.mrb[0].mxu0 %v1000
      %v2105 = vpop.f32.mrb[0].mxu0
      %v2106 = vadd.f32 %v588, %v2105
      %v2107 = vpop.f32.mrb[0].mxu0
      %2108 = vmatprep.mubr.f32.mxu0 0.0
      %2109 = vmatmul.mubr.f32.gmra.mrb[0].mxu0 %v1003
      %v2110 = vpop.f32.mrb[0].mxu0
      %v2111 = vadd.f32 %v588, %v2110
      %v2112 = vpop.f32.mrb[0].mxu0
      %2113 = vmatprep.mubr.f32.mxu0 0.0
      %2114 = vmatmul.mubr.f32.gmra.mrb[0].mxu0 %v1006
      %v2115 = vpop.f32.mrb[0].mxu0
      %v2116 = vadd.f32 %v588, %v2115
      %v2117 = vpop.f32.mrb[0].mxu0
      %2118 = vmatprep.mubr.f32.mxu0 0.0
      %2119 = vmatmul.mubr.f32.gmra.mrb[0].mxu0 %v1009
      %v2120 = vpop.f32.mrb[0].mxu0
      %v2121 = vadd.f32 %v588, %v2120
      %v2122 = vpop.f32.mrb[0].mxu0
      %2123 = vmatprep.mubr.f32.mxu0 0.0
      %2124 = vmatmul.mubr.f32.gmra.mrb[0].mxu0 %v1012
      %v2125 = vpop.f32.mrb[0].mxu0
      %v2126 = vadd.f32 %v588, %v2125
      %v2127 = vpop.f32.mrb[0].mxu0
      %2128 = vmatprep.mubr.f32.mxu0 0.0
      %2129 = vmatmul.mubr.f32.gmra.mrb[0].mxu0 %v1015
      %v2130 = vpop.f32.mrb[0].mxu0
      %v2131 = vadd.f32 %v588, %v2130
      %v2132 = vpop.f32.mrb[0].mxu0
      %2133 = vmatprep.mubr.f32.mxu0 0.0
      %2134 = vmatmul.mubr.f32.gmra.mrb[0].mxu0 %v1018
      %v2135 = vpop.f32.mrb[0].mxu0
      %v2136 = vadd.f32 %v588, %v2135
      %v2137 = vpop.f32.mrb[0].mxu0
      %2138 = vmatprep.mubr.f32.mxu0 0.0
      %2139 = vmatmul.mubr.f32.gmra.mrb[0].mxu0 %v1021
      %v2140 = vpop.f32.mrb[0].mxu0
      %v2141 = vadd.f32 %v588, %v2140
      %v2142 = vpop.f32.mrb[0].mxu0
      %2143 = vmatprep.mubr.f32.mxu0 0.0
      %2144 = vmatmul.mubr.f32.gmra.mrb[0].mxu0 %v1024
      %v2145 = vpop.f32.mrb[0].mxu0
      %v2146 = vadd.f32 %v588, %v2145
      %v2147 = vpop.f32.mrb[0].mxu0
      %2148 = vmatprep.mubr.f32.mxu0 0.0
      %2149 = vmatmul.mubr.f32.gmra.mrb[0].mxu0 %v1027
      %v2150 = vpop.f32.mrb[0].mxu0
      %v2151 = vadd.f32 %v588, %v2150
      %v2152 = vpop.f32.mrb[0].mxu0
      %2153 = vmatprep.mubr.f32.mxu0 0.0
      %2154 = vmatmul.mubr.f32.gmra.mrb[0].mxu0 %v1030
      %v2155 = vpop.f32.mrb[0].mxu0
      %v2156 = vadd.f32 %v588, %v2155
      %v2157 = vpop.f32.mrb[0].mxu0
      %2158 = vmatprep.mubr.f32.mxu0 0.0
      %2159 = vmatmul.mubr.f32.gmra.mrb[0].mxu0 %v1033
      %v2160 = vpop.f32.mrb[0].mxu0
      %v2161 = vadd.f32 %v588, %v2160
      %v2162 = vpop.f32.mrb[0].mxu0
      %2163 = vmatprep.mubr.f32.mxu0 0.0
      %2164 = vmatmul.mubr.f32.gmra.mrb[0].mxu0 %v1036
      %v2165 = vpop.f32.mrb[0].mxu0
      %v2166 = vadd.f32 %v588, %v2165
      %v2167 = vpop.f32.mrb[0].mxu0
      %2168 = vmatprep.mubr.f32.mxu0 0.0
      %2169 = vmatmul.mubr.f32.gmra.mrb[0].mxu0 %v1039
      %v2170 = vpop.f32.mrb[0].mxu0
      %v2171 = vadd.f32 %v588, %v2170
      %v2172 = vpop.f32.mrb[0].mxu0
      %2173 = vmatprep.mubr.f32.mxu0 0.0
      %2174 = vmatmul.mubr.f32.gmra.mrb[0].mxu0 %v1042
      %v2175 = vpop.f32.mrb[0].mxu0
      %v2176 = vadd.f32 %v588, %v2175
      %v2177 = vpop.f32.mrb[0].mxu0
      %2178 = vmatprep.mubr.f32.mxu0 0.0
      %2179 = vmatmul.mubr.f32.gmra.mrb[0].mxu0 %v1045
      %v2180 = vpop.f32.mrb[0].mxu0
      %v2181 = vadd.f32 %v588, %v2180
      %v2182 = vpop.f32.mrb[0].mxu0
      %2183 = vmatprep.mubr.f32.mxu0 0.0
      %2184 = vmatmul.mubr.f32.gmra.mrb[0].mxu0 %v1048
      %v2185 = vpop.f32.mrb[0].mxu0
      %v2186 = vadd.f32 %v588, %v2185
      %v2187 = vpop.f32.mrb[0].mxu0
      %2188 = vmatprep.mubr.f32.mxu0 0.0
      %2189 = vmatmul.mubr.f32.gmra.mrb[0].mxu0 %v1051
      %v2190 = vpop.f32.mrb[0].mxu0
      %v2191 = vadd.f32 %v588, %v2190
      %v2192 = vpop.f32.mrb[0].mxu0
      %2193 = vmatprep.mubr.f32.mxu0 0.0
      %2194 = vmatmul.mubr.f32.gmra.mrb[0].mxu0 %v1054
      %v2195 = vpop.f32.mrb[0].mxu0
      %v2196 = vadd.f32 %v588, %v2195
      %v2197 = vpop.f32.mrb[0].mxu0
      %2198 = vmatprep.mubr.f32.mxu0 0.0
      %2199 = vmatmul.mubr.f32.gmra.mrb[0].mxu0 %v1057
      %v2200 = vpop.f32.mrb[0].mxu0
      %v2201 = vadd.f32 %v588, %v2200
      %v2202 = vpop.f32.mrb[0].mxu0
      %2203 = vmatprep.mubr.f32.mxu0 0.0
      %2204 = vmatmul.mubr.f32.gmra.mrb[0].mxu0 %v1060
      %v2205 = vpop.f32.mrb[0].mxu0
      %v2206 = vadd.f32 %v588, %v2205
      %v2207 = vpop.f32.mrb[0].mxu0
      %2208 = vmatprep.mubr.f32.mxu0 0.0
      %2209 = vmatmul.mubr.f32.gmra.mrb[0].mxu0 %v1063
      %v2210 = vpop.f32.mrb[0].mxu0
      %v2211 = vadd.f32 %v588, %v2210
      %v2212 = vpop.f32.mrb[0].mxu0
      %2213 = vmatprep.mubr.f32.mxu0 0.0
      %2214 = vmatmul.mubr.f32.gmra.mrb[0].mxu0 %v1066
      %v2215 = vpop.f32.mrb[0].mxu0
      %v2216 = vadd.f32 %v588, %v2215
      %v2217 = vpop.f32.mrb[0].mxu0
      %2218 = vmatprep.mubr.f32.mxu0 0.0
      %2219 = vmatmul.mubr.f32.gmra.mrb[0].mxu0 %v1069
      %v2220 = vpop.f32.mrb[0].mxu0
      %v2221 = vadd.f32 %v588, %v2220
      %v2222 = vpop.f32.mrb[0].mxu0
      %2223 = vmatprep.mubr.f32.mxu0 0.0
      %2224 = vmatmul.mubr.f32.gmra.mrb[0].mxu0 %v1072
      %v2225 = vpop.f32.mrb[0].mxu0
      %v2226 = vadd.f32 %v588, %v2225
      %v2227 = vpop.f32.mrb[0].mxu0
      %2228 = vmatprep.mubr.f32.mxu0 0.0
      %2229 = vmatmul.mubr.f32.gmra.mrb[0].mxu0 %v1075
      %v2230 = vpop.f32.mrb[0].mxu0
      %v2231 = vadd.f32 %v588, %v2230
      %v2232 = vpop.f32.mrb[0].mxu0
      %2233 = vmatprep.mubr.f32.mxu0 0.0
      %2234 = vmatmul.mubr.f32.gmra.mrb[0].mxu0 %v1078
      %v2235 = vpop.f32.mrb[0].mxu0
      %v2236 = vadd.f32 %v588, %v2235
      %v2237 = vpop.f32.mrb[0].mxu0
      %2238 = vmatprep.mubr.f32.mxu0 0.0
      %2239 = vmatmul.mubr.f32.gmra.mrb[0].mxu0 %v1081
      %v2240 = vpop.f32.mrb[0].mxu0
      %v2241 = vadd.f32 %v588, %v2240
      %v2242 = vpop.f32.mrb[0].mxu0
      %2243 = vmatprep.mubr.f32.mxu0 0.0
      %2244 = vmatmul.mubr.f32.gmra.mrb[0].mxu0 %v1084
      %v2245 = vpop.f32.mrb[0].mxu0
      %v2246 = vadd.f32 %v588, %v2245
      %v2247 = vpop.f32.mrb[0].mxu0
      %2248 = vmatprep.mubr.f32.mxu0 0.0
      %2249 = vmatmul.mubr.f32.gmra.mrb[0].mxu0 %v1087
      %v2250 = vpop.f32.mrb[0].mxu0
      %v2251 = vadd.f32 %v588, %v2250
      %v2252 = vpop.f32.mrb[0].mxu0
      %2253 = vmatprep.mubr.f32.mxu0 0.0
      %2254 = vmatmul.mubr.f32.gmra.mrb[0].mxu0 %v1090
      %v2255 = vpop.f32.mrb[0].mxu0
      %v2256 = vadd.f32 %v588, %v2255
      %v2257 = vpop.f32.mrb[0].mxu0
      %2258 = vmatprep.mubr.f32.mxu0 0.0
      %2259 = vmatmul.mubr.f32.gmra.mrb[0].mxu0 %v1093
      %v2260 = vpop.f32.mrb[0].mxu0
      %v2261 = vadd.f32 %v588, %v2260
      %v2262 = vpop.f32.mrb[0].mxu0
      %2263 = vmatprep.mubr.f32.mxu0 0.0
      %2264 = vmatmul.mubr.f32.gmra.mrb[0].mxu0 %v1096
      %v2265 = vpop.f32.mrb[0].mxu0
      %v2266 = vadd.f32 %v588, %v2265
      %v2267 = vpop.f32.mrb[0].mxu0
      %2268 = vmatprep.mubr.f32.mxu0 0.0
      %2269 = vmatmul.mubr.f32.gmra.mrb[0].mxu0 %v1099
      %v2270 = vpop.f32.mrb[0].mxu0
      %v2271 = vadd.f32 %v588, %v2270
      %v2272 = vpop.f32.mrb[0].mxu0
      %2273 = vmatprep.mubr.f32.mxu0 0.0
      %2274 = vmatmul.mubr.f32.gmra.mrb[0].mxu0 %v1102
      %v2275 = vpop.f32.mrb[0].mxu0
      %v2276 = vadd.f32 %v588, %v2275
      %v2277 = vpop.f32.mrb[0].mxu0
      %2278 = vmatprep.mubr.f32.mxu0 0.0
      %2279 = vmatmul.mubr.f32.gmra.mrb[0].mxu0 %v1105
      %v2280 = vpop.f32.mrb[0].mxu0
      %v2281 = vadd.f32 %v588, %v2280
      %v2282 = vpop.f32.mrb[0].mxu0
      %2283 = vmatprep.mubr.f32.mxu0 0.0
      %2284 = vmatmul.mubr.f32.gmra.mrb[0].mxu0 %v1108
      %v2285 = vpop.f32.mrb[0].mxu0
      %v2286 = vadd.f32 %v588, %v2285
      %v2287 = vpop.f32.mrb[0].mxu0
      %2288 = vmatprep.mubr.f32.mxu0 0.0
      %2289 = vmatmul.mubr.f32.gmra.mrb[0].mxu0 %v1111
      %v2290 = vpop.f32.mrb[0].mxu0
      %v2291 = vadd.f32 %v588, %v2290
      %v2292 = vpop.f32.mrb[0].mxu0
      %2293 = vmatprep.mubr.f32.mxu0 0.0
      %2294 = vmatmul.mubr.f32.gmra.mrb[0].mxu0 %v1114
      %v2295 = vpop.f32.mrb[0].mxu0
      %v2296 = vadd.f32 %v588, %v2295
      %v2297 = vpop.f32.mrb[0].mxu0
      %2298 = vmatprep.mubr.f32.mxu0 0.0
      %2299 = vmatmul.mubr.f32.gmra.mrb[0].mxu0 %v1117
      %v2300 = vpop.f32.mrb[0].mxu0
      %v2301 = vadd.f32 %v588, %v2300
      %v2302 = vpop.f32.mrb[0].mxu0
      %2303 = vmatprep.mubr.f32.mxu0 0.0
      %2304 = vmatmul.mubr.f32.gmra.mrb[0].mxu0 %v1120
      %v2305 = vpop.f32.mrb[0].mxu0
      %v2306 = vadd.f32 %v588, %v2305
      %v2307 = vpop.f32.mrb[0].mxu0
      %2308 = vmatprep.mubr.f32.mxu0 0.0
      %2309 = vmatmul.mubr.f32.gmra.mrb[0].mxu0 %v1123
      %v2310 = vpop.f32.mrb[0].mxu0
      %v2311 = vadd.f32 %v588, %v2310
      %v2312 = vpop.f32.mrb[0].mxu0
      %2313 = vmatprep.mubr.f32.mxu0 0.0
      %2314 = vmatmul.mubr.f32.gmra.mrb[0].mxu0 %v1126
      %v2315 = vpop.f32.mrb[0].mxu0
      %v2316 = vadd.f32 %v588, %v2315
      %v2317 = vpop.f32.mrb[0].mxu0
      %2318 = vmatprep.mubr.f32.mxu0 0.0
      %2319 = vmatmul.mubr.f32.gmra.mrb[0].mxu0 %v1129
      %v2320 = vpop.f32.mrb[0].mxu0
      %v2321 = vadd.f32 %v588, %v2320
      %v2322 = vpop.f32.mrb[0].mxu0
      %2323 = vmatprep.mubr.f32.mxu0 0.0
      %2324 = vmatmul.mubr.f32.gmra.mrb[0].mxu0 %v1132
      %v2325 = vpop.f32.mrb[0].mxu0
      %v2326 = vadd.f32 %v588, %v2325
      %v2327 = vpop.f32.mrb[0].mxu0
      %2328 = vmatprep.mubr.f32.mxu0 0.0
      %2329 = vmatmul.mubr.f32.gmra.mrb[0].mxu0 %v1135
      %v2330 = vpop.f32.mrb[0].mxu0
      %v2331 = vadd.f32 %v588, %v2330
      %v2332 = vpop.f32.mrb[0].mxu0
      %2333 = vmatprep.mubr.f32.mxu0 0.0
      %2334 = vmatmul.mubr.f32.gmra.mrb[0].mxu0 %v1138
      %v2335 = vpop.f32.mrb[0].mxu0
      %v2336 = vadd.f32 %v588, %v2335
      %v2337 = vpop.f32.mrb[0].mxu0
      %2338 = vmatprep.mubr.f32.mxu0 0.0
      %2339 = vmatmul.mubr.f32.gmra.mrb[0].mxu0 %v1141
      %v2340 = vpop.f32.mrb[0].mxu0
      %v2341 = vadd.f32 %v588, %v2340
      %v2342 = vpop.f32.mrb[0].mxu0
      %2343 = vmatprep.mubr.f32.mxu0 0.0
      %2344 = vmatmul.mubr.f32.gmra.mrb[0].mxu0 %v1144
      %v2345 = vpop.f32.mrb[0].mxu0
      %v2346 = vadd.f32 %v588, %v2345
      %v2347 = vpop.f32.mrb[0].mxu0
      %2348 = vmatprep.mubr.f32.mxu0 0.0
      %2349 = vmatmul.mubr.f32.gmra.mrb[0].mxu0 %v1147
      %v2350 = vpop.f32.mrb[0].mxu0
      %v2351 = vadd.f32 %v588, %v2350
      %v2352 = vpop.f32.mrb[0].mxu0
      %2353 = vmatprep.mubr.f32.mxu0 0.0
      %2354 = vmatmul.mubr.f32.gmra.mrb[0].mxu0 %v1150
      %v2355 = vpop.f32.mrb[0].mxu0
      %v2356 = vadd.f32 %v588, %v2355
      %v2357 = vpop.f32.mrb[0].mxu0
      %2358 = vmatprep.mubr.f32.mxu0 0.0
      %2359 = vmatmul.mubr.f32.gmra.mrb[0].mxu0 %v1153
      %v2360 = vpop.f32.mrb[0].mxu0
      %v2361 = vadd.f32 %v588, %v2360
      %v2362 = vpop.f32.mrb[0].mxu0
      %2363 = vmatprep.mubr.f32.mxu0 0.0
      %2364 = vmatmul.mubr.f32.gmra.mrb[0].mxu0 %v1156
      %v2365 = vpop.f32.mrb[0].mxu0
      %v2366 = vadd.f32 %v588, %v2365
      %v2367 = vpop.f32.mrb[0].mxu0
      %2368 = vmatprep.mubr.f32.mxu0 0.0
      %2369 = vmatmul.mubr.f32.gmra.mrb[0].mxu0 %v1159
      %v2370 = vpop.f32.mrb[0].mxu0
      %v2371 = vadd.f32 %v588, %v2370
      %v2372 = vpop.f32.mrb[0].mxu0
      %2373 = vmatprep.mubr.f32.mxu0 0.0
      %2374 = vmatmul.mubr.f32.gmra.mrb[0].mxu0 %v1162
      %v2375 = vpop.f32.mrb[0].mxu0
      %v2376 = vadd.f32 %v588, %v2375
      %v2377 = vpop.f32.mrb[0].mxu0
      %2378 = vmatprep.mubr.f32.mxu0 0.0
      %2379 = vmatmul.mubr.f32.gmra.mrb[0].mxu0 %v1165
      %v2380 = vpop.f32.mrb[0].mxu0
      %v2381 = vadd.f32 %v588, %v2380
      %v2382 = vpop.f32.mrb[0].mxu0
      %2383 = vmatprep.mubr.f32.mxu0 0.0
      %2384 = vmatmul.mubr.f32.gmra.mrb[0].mxu0 %v1168
      %v2385 = vpop.f32.mrb[0].mxu0
      %v2386 = vadd.f32 %v588, %v2385
      %v2387 = vpop.f32.mrb[0].mxu0
      %2388 = vmatprep.mubr.f32.mxu0 0.0
      %2389 = vmatmul.mubr.f32.gmra.mrb[0].mxu0 %v1171
      %v2390 = vpop.f32.mrb[0].mxu0
      %v2391 = vadd.f32 %v588, %v2390
      %v2392 = vpop.f32.mrb[0].mxu0
      %2393 = vmatprep.mubr.f32.mxu0 0.0
      %2394 = vmatmul.mubr.f32.gmra.mrb[0].mxu0 %v1174
      %v2395 = vpop.f32.mrb[0].mxu0
      %v2396 = vadd.f32 %v588, %v2395
      %v2397 = vpop.f32.mrb[0].mxu0
      %2398 = vmatprep.mubr.f32.mxu0 0.0
      %2399 = vmatmul.mubr.f32.gmra.mrb[0].mxu0 %v1177
      %v2400 = vpop.f32.mrb[0].mxu0
      %v2401 = vadd.f32 %v588, %v2400
      %v2402 = vpop.f32.mrb[0].mxu0
      %2403 = vmatprep.mubr.f32.mxu0 0.0
      %2404 = vmatmul.mubr.f32.gmra.mrb[0].mxu0 %v1180
      %v2405 = vpop.f32.mrb[0].mxu0
      %v2406 = vadd.f32 %v588, %v2405
      %v2407 = vpop.f32.mrb[0].mxu0
      %2408 = vmatprep.mubr.f32.mxu0 0.0
      %2409 = vmatmul.mubr.f32.gmra.mrb[0].mxu0 %v1183
      %v2410 = vpop.f32.mrb[0].mxu0
      %v2411 = vadd.f32 %v588, %v2410
      %v2412 = vpop.f32.mrb[0].mxu0
      %2413 = vmatprep.mubr.f32.mxu0 0.0
      %2414 = vmatmul.mubr.f32.gmra.mrb[0].mxu0 %v1186
      %v2415 = vpop.f32.mrb[0].mxu0
      %v2416 = vadd.f32 %v588, %v2415
      %v2417 = vpop.f32.mrb[0].mxu0
      %2418 = vmatprep.mubr.f32.mxu0 0.0
      %2419 = vmatmul.mubr.f32.gmra.mrb[0].mxu0 %v1189
      %v2420 = vpop.f32.mrb[0].mxu0
      %v2421 = vadd.f32 %v588, %v2420
      %v2422 = vpop.f32.mrb[0].mxu0
      %2423 = vmatprep.mubr.f32.mxu0 0.0
      %2424 = vmatmul.mubr.f32.gmra.mrb[0].mxu0 %v1192
      %v2425 = vpop.f32.mrb[0].mxu0
      %v2426 = vadd.f32 %v588, %v2425
      %v2427 = vpop.f32.mrb[0].mxu0
      %2428 = vmatprep.mubr.f32.mxu0 0.0
      %2429 = vmatmul.mubr.f32.gmra.mrb[0].mxu0 %v1195
      %v2430 = vpop.f32.mrb[0].mxu0
      %v2431 = vadd.f32 %v588, %v2430
      %v2432 = vpop.f32.mrb[0].mxu0
      %2433 = vmatprep.mubr.f32.mxu0 0.0
      %2434 = vmatmul.mubr.f32.gmra.mrb[0].mxu0 %v1198
      %v2435 = vpop.f32.mrb[0].mxu0
      %v2436 = vadd.f32 %v588, %v2435
      %v2437 = vpop.f32.mrb[0].mxu0
      %2438 = vmatprep.mubr.f32.mxu0 0.0
      %2439 = vmatmul.mubr.f32.gmra.mrb[0].mxu0 %v1201
      %v2440 = vpop.f32.mrb[0].mxu0
      %v2441 = vadd.f32 %v588, %v2440
      %v2442 = vpop.f32.mrb[0].mxu0
      %2443 = vmatprep.mubr.f32.mxu0 0.0
      %2444 = vmatmul.mubr.f32.gmra.mrb[0].mxu0 %v1204
      %v2445 = vpop.f32.mrb[0].mxu0
      %v2446 = vadd.f32 %v588, %v2445
      %v2447 = vpop.f32.mrb[0].mxu0
      %2448 = vmatprep.mubr.f32.mxu0 0.0
      %2449 = vmatmul.mubr.f32.gmra.mrb[0].mxu0 %v1207
      %v2450 = vpop.f32.mrb[0].mxu0
      %v2451 = vadd.f32 %v588, %v2450
      %v2452 = vpop.f32.mrb[0].mxu0
      %2453 = vmatprep.mubr.f32.mxu0 0.0
      %2454 = vmatmul.mubr.f32.gmra.mrb[0].mxu0 %v1210
      %v2455 = vpop.f32.mrb[0].mxu0
      %v2456 = vadd.f32 %v588, %v2455
      %v2457 = vpop.f32.mrb[0].mxu0
      %2458 = vmatprep.mubr.f32.mxu0 0.0
      %2459 = vmatmul.mubr.f32.gmra.mrb[0].mxu0 %v1213
      %v2460 = vpop.f32.mrb[0].mxu0
      %v2461 = vadd.f32 %v588, %v2460
      %v2462 = vpop.f32.mrb[0].mxu0
      %2463 = vmatprep.mubr.f32.mxu0 0.0
      %2464 = vmatmul.mubr.f32.gmra.mrb[0].mxu0 %v1216
      %v2465 = vpop.f32.mrb[0].mxu0
      %v2466 = vadd.f32 %v588, %v2465
      %v2467 = vpop.f32.mrb[0].mxu0
      %2468 = vmatprep.mubr.f32.mxu0 0.0
      %2469 = vmatmul.mubr.f32.gmra.mrb[0].mxu0 %v1219
      %v2470 = vpop.f32.mrb[0].mxu0
      %v2471 = vadd.f32 %v588, %v2470
      %v2472 = vpop.f32.mrb[0].mxu0
      %2473 = vmatprep.mubr.f32.mxu0 0.0
      %2474 = vmatmul.mubr.f32.gmra.mrb[0].mxu0 %v1222
      %v2475 = vpop.f32.mrb[0].mxu0
      %v2476 = vadd.f32 %v588, %v2475
      %v2477 = vpop.f32.mrb[0].mxu0
      %2478 = vmatprep.mubr.f32.mxu0 0.0
      %2479 = vmatmul.mubr.f32.gmra.mrb[0].mxu0 %v1225
      %v2480 = vpop.f32.mrb[0].mxu0
      %v2481 = vadd.f32 %v588, %v2480
      %v2482 = vpop.f32.mrb[0].mxu0
      %2483 = vmatprep.mubr.f32.mxu0 0.0
      %2484 = vmatmul.mubr.f32.gmra.mrb[0].mxu0 %v1228
      %v2485 = vpop.f32.mrb[0].mxu0
      %v2486 = vadd.f32 %v588, %v2485
      %v2487 = vpop.f32.mrb[0].mxu0
      %2488 = vmatprep.mubr.f32.mxu0 0.0
      %2489 = vmatmul.mubr.f32.gmra.mrb[0].mxu0 %v1231
      %v2490 = vpop.f32.mrb[0].mxu0
      %v2491 = vadd.f32 %v588, %v2490
      %v2492 = vpop.f32.mrb[0].mxu0
      %2493 = vmatprep.mubr.f32.mxu0 0.0
      %2494 = vmatmul.mubr.f32.gmra.mrb[0].mxu0 %v1234
      %v2495 = vpop.f32.mrb[0].mxu0
      %v2496 = vadd.f32 %v588, %v2495
      %v2497 = vpop.f32.mrb[0].mxu0
      %2498 = vmatprep.mubr.f32.mxu0 0.0
      %2499 = vmatmul.mubr.f32.gmra.mrb[0].mxu0 %v1237
      %v2500 = vpop.f32.mrb[0].mxu0
      %v2501 = vadd.f32 %v588, %v2500
      %v2502 = vpop.f32.mrb[0].mxu0
      %2503 = vmatprep.mubr.f32.mxu0 0.0
      %2504 = vmatmul.mubr.f32.gmra.mrb[0].mxu0 %v1240
      %v2505 = vpop.f32.mrb[0].mxu0
      %v2506 = vadd.f32 %v588, %v2505
      %v2507 = vpop.f32.mrb[0].mxu0
      %2508 = vmatprep.mubr.f32.mxu0 0.0
      %2509 = vmatmul.mubr.f32.gmra.mrb[0].mxu0 %v1243
      %v2510 = vpop.f32.mrb[0].mxu0
      %v2511 = vadd.f32 %v588, %v2510
      %v2512 = vpop.f32.mrb[0].mxu0
      %2513 = vmatprep.mubr.f32.mxu0 0.0
      %2514 = vmatmul.mubr.f32.gmra.mrb[0].mxu0 %v1246
      %v2515 = vpop.f32.mrb[0].mxu0
      %v2516 = vadd.f32 %v588, %v2515
      %v2517 = vpop.f32.mrb[0].mxu0
      %2518 = vmatprep.mubr.f32.mxu0 0.0
      %2519 = vmatmul.mubr.f32.gmra.mrb[0].mxu0 %v1249
      %v2520 = vpop.f32.mrb[0].mxu0
      %v2521 = vadd.f32 %v588, %v2520
      %v2522 = vpop.f32.mrb[0].mxu0
      %2523 = vmatprep.mubr.f32.mxu0 0.0
      %2524 = vmatmul.mubr.f32.gmra.mrb[0].mxu0 %v1252
      %v2525 = vpop.f32.mrb[0].mxu0
      %v2526 = vadd.f32 %v588, %v2525
      %v2527 = vpop.f32.mrb[0].mxu0
      %2528 = vmatprep.mubr.f32.mxu0 0.0
      %2529 = vmatmul.mubr.f32.gmra.mrb[0].mxu0 %v1255
      %v2530 = vpop.f32.mrb[0].mxu0
      %v2531 = vadd.f32 %v588, %v2530
      %v2532 = vpop.f32.mrb[0].mxu0
      %2533 = vmatprep.mubr.f32.mxu0 0.0
      %2534 = vmatmul.mubr.f32.gmra.mrb[0].mxu0 %v1258
      %v2535 = vpop.f32.mrb[0].mxu0
      %v2536 = vadd.f32 %v588, %v2535
      %v2537 = vpop.f32.mrb[0].mxu0
      %2538 = vmatprep.mubr.f32.mxu0 0.0
      %2539 = vmatmul.mubr.f32.gmra.mrb[0].mxu0 %v1261
      %v2540 = vpop.f32.mrb[0].mxu0
      %v2541 = vadd.f32 %v588, %v2540
      %v2542 = vpop.f32.mrb[0].mxu0
      %2543 = vmatprep.mubr.f32.mxu0 0.0
      %2544 = vmatmul.mubr.f32.gmra.mrb[0].mxu0 %v1264
      %v2545 = vpop.f32.mrb[0].mxu0
      %v2546 = vadd.f32 %v588, %v2545
      %v2547 = vpop.f32.mrb[0].mxu0
      %2548 = vmatprep.mubr.f32.mxu0 0.0
      %2549 = vmatmul.mubr.f32.gmra.mrb[0].mxu0 %v1267
      %v2550 = vpop.f32.mrb[0].mxu0
      %v2551 = vadd.f32 %v588, %v2550
      %v2552 = vpop.f32.mrb[0].mxu0
      %2553 = vmatprep.mubr.f32.mxu0 0.0
      %2554 = vmatmul.mubr.f32.gmra.mrb[0].mxu0 %v1270
      %v2555 = vpop.f32.mrb[0].mxu0
      %v2556 = vadd.f32 %v588, %v2555
      %v2557 = vpop.f32.mrb[0].mxu0
      %2558 = vmatprep.mubr.f32.mxu0 0.0
      %2559 = vmatmul.mubr.f32.gmra.mrb[0].mxu0 %v1273
      %v2560 = vpop.f32.mrb[0].mxu0
      %v2561 = vadd.f32 %v588, %v2560
      %v2562 = vpop.f32.mrb[0].mxu0
      %2563 = vmatprep.mubr.f32.mxu0 0.0
      %2564 = vmatmul.mubr.f32.gmra.mrb[0].mxu0 %v1276
      %v2565 = vpop.f32.mrb[0].mxu0
      %v2566 = vadd.f32 %v588, %v2565
      %v2567 = vpop.f32.mrb[0].mxu0
      %2568 = vmatprep.mubr.f32.mxu0 0.0
      %2569 = vmatmul.mubr.f32.gmra.mrb[0].mxu0 %v1279
      %v2570 = vpop.f32.mrb[0].mxu0
      %v2571 = vadd.f32 %v588, %v2570
      %v2572 = vpop.f32.mrb[0].mxu0
      %2573 = vmatprep.mubr.f32.mxu0 0.0
      %2574 = vmatmul.mubr.f32.gmra.mrb[0].mxu0 %v1282
      %v2575 = vpop.f32.mrb[0].mxu0
      %v2576 = vadd.f32 %v588, %v2575
      %v2577 = vpop.f32.mrb[0].mxu0
      %2578 = vmatprep.mubr.f32.mxu0 0.0
      %2579 = vmatmul.mubr.f32.gmra.mrb[0].mxu0 %v1285
      %v2580 = vpop.f32.mrb[0].mxu0
      %v2581 = vadd.f32 %v588, %v2580
      %v2582 = vpop.f32.mrb[0].mxu0
      %2583 = vmatprep.mubr.f32.mxu0 0.0
      %2584 = vmatmul.mubr.f32.gmra.mrb[0].mxu0 %v1288
      %v2585 = vpop.f32.mrb[0].mxu0
      %v2586 = vadd.f32 %v588, %v2585
      %v2587 = vpop.f32.mrb[0].mxu0
      %2588 = vmatprep.mubr.f32.mxu0 0.0
      %2589 = vmatmul.mubr.f32.gmra.mrb[0].mxu0 %v1291
      %v2590 = vpop.f32.mrb[0].mxu0
      %v2591 = vadd.f32 %v588, %v2590
      %v2592 = vpop.f32.mrb[0].mxu0
      %2593 = vmatprep.mubr.f32.mxu0 0.0
      %2594 = vmatmul.mubr.f32.gmra.mrb[0].mxu0 %v1294
      %v2595 = vpop.f32.mrb[0].mxu0
      %v2596 = vadd.f32 %v588, %v2595
      %v2597 = vpop.f32.mrb[0].mxu0
      %2598 = vmatprep.mubr.f32.mxu0 0.0
      %2599 = vmatmul.mubr.f32.gmra.mrb[0].mxu0 %v1297
      %v2600 = vpop.f32.mrb[0].mxu0
      %v2601 = vadd.f32 %v588, %v2600
      %v2602 = vpop.f32.mrb[0].mxu0
      %2603 = vmatprep.mubr.f32.mxu0 0.0
      %2604 = vmatmul.mubr.f32.gmra.mrb[0].mxu0 %v1300
      %v2605 = vpop.f32.mrb[0].mxu0
      %v2606 = vadd.f32 %v588, %v2605
      %v2607 = vpop.f32.mrb[0].mxu0
      %2608 = vmatprep.mubr.f32.mxu0 0.0
      %2609 = vmatmul.mubr.f32.gmra.mrb[0].mxu0 %v1303
      %v2610 = vpop.f32.mrb[0].mxu0
      %v2611 = vadd.f32 %v588, %v2610
      %v2612 = vpop.f32.mrb[0].mxu0
      %2613 = vmatprep.mubr.f32.mxu0 0.0
      %2614 = vmatmul.mubr.f32.gmra.mrb[0].mxu0 %v1306
      %v2615 = vpop.f32.mrb[0].mxu0
      %v2616 = vadd.f32 %v588, %v2615
      %v2617 = vpop.f32.mrb[0].mxu0
      %2618 = vmatprep.mubr.f32.mxu0 0.0
      %2619 = vmatmul.mubr.f32.gmra.mrb[0].mxu0 %v1309
      %v2620 = vpop.f32.mrb[0].mxu0
      %v2621 = vadd.f32 %v588, %v2620
      %v2622 = vpop.f32.mrb[0].mxu0
      %2623 = vmatprep.mubr.f32.mxu0 0.0
      %2624 = vmatmul.mubr.f32.gmra.mrb[0].mxu0 %v1312
      %v2625 = vpop.f32.mrb[0].mxu0
      %v2626 = vadd.f32 %v588, %v2625
      %v2627 = vpop.f32.mrb[0].mxu0
      %2628 = vmatprep.mubr.f32.mxu0 0.0
      %2629 = vmatmul.mubr.f32.gmra.mrb[0].mxu0 %v1315
      %v2630 = vpop.f32.mrb[0].mxu0
      %v2631 = vadd.f32 %v588, %v2630
      %v2632 = vpop.f32.mrb[0].mxu0
      %2633 = vmatprep.mubr.f32.mxu0 0.0
      %2634 = vmatmul.mubr.f32.gmra.mrb[0].mxu0 %v1318
      %v2635 = vpop.f32.mrb[0].mxu0
      %v2636 = vadd.f32 %v588, %v2635
      %v2637 = vpop.f32.mrb[0].mxu0
      %2638 = vmatprep.mubr.f32.mxu0 0.0
      %2639 = vmatmul.mubr.f32.gmra.mrb[0].mxu0 %v1321
      %v2640 = vpop.f32.mrb[0].mxu0
      %v2641 = vadd.f32 %v588, %v2640
      %v2642 = vpop.f32.mrb[0].mxu0
      %2643 = vmatprep.mubr.f32.mxu0 0.0
      %2644 = vmatmul.mubr.f32.gmra.mrb[0].mxu0 %v1324
      %v2645 = vpop.f32.mrb[0].mxu0
      %v2646 = vadd.f32 %v588, %v2645
      %v2647 = vpop.f32.mrb[0].mxu0
      %2648 = vmatprep.mubr.f32.mxu0 0.0
      %2649 = vmatmul.mubr.f32.gmra.mrb[0].mxu0 %v1327
      %v2650 = vpop.f32.mrb[0].mxu0
      %v2651 = vadd.f32 %v588, %v2650
      %v2652 = vpop.f32.mrb[0].mxu0
      %2653 = vmatprep.mubr.f32.mxu0 0.0
      %2654 = vmatmul.mubr.f32.gmra.mrb[0].mxu0 %v1330
      %v2655 = vpop.f32.mrb[0].mxu0
      %v2656 = vadd.f32 %v588, %v2655
      %v2657 = vpop.f32.mrb[0].mxu0
      %2658 = vmatprep.mubr.f32.mxu0 0.0
      %2659 = vmatmul.mubr.f32.gmra.mrb[0].mxu0 %v1333
      %v2660 = vpop.f32.mrb[0].mxu0
      %v2661 = vadd.f32 %v588, %v2660
      %v2662 = vpop.f32.mrb[0].mxu0
      %2663 = vmatprep.mubr.f32.mxu0 0.0
      %2664 = vmatmul.mubr.f32.gmra.mrb[0].mxu0 %v1336
      %v2665 = vpop.f32.mrb[0].mxu0
      %v2666 = vadd.f32 %v588, %v2665
      %v2667 = vpop.f32.mrb[0].mxu0
      %2668 = vmatprep.mubr.f32.mxu0 0.0
      %2669 = vmatmul.mubr.f32.gmra.mrb[0].mxu0 %v1339
      %v2670 = vpop.f32.mrb[0].mxu0
      %v2671 = vadd.f32 %v588, %v2670
      %v2672 = vpop.f32.mrb[0].mxu0
      %2673 = vmatprep.mubr.f32.mxu0 0.0
      %2674 = vmatmul.mubr.f32.gmra.mrb[0].mxu0 %v1342
      %v2675 = vpop.f32.mrb[0].mxu0
      %v2676 = vadd.f32 %v588, %v2675
      %v2677 = vpop.f32.mrb[0].mxu0
      %2678 = vmatprep.mubr.f32.mxu0 0.0
      %2679 = vmatmul.mubr.f32.gmra.mrb[0].mxu0 %v1345
      %v2680 = vpop.f32.mrb[0].mxu0
      %v2681 = vadd.f32 %v588, %v2680
      %v2682 = vpop.f32.mrb[0].mxu0
      %2683 = vmatprep.mubr.f32.mxu0 0.0
      %2684 = vmatmul.mubr.f32.gmra.mrb[0].mxu0 %v1348
      %v2685 = vpop.f32.mrb[0].mxu0
      %v2686 = vadd.f32 %v588, %v2685
      %v2687 = vpop.f32.mrb[0].mxu0
      %2688 = vmatprep.mubr.f32.mxu0 0.0
      %2689 = vmatmul.mubr.f32.gmra.mrb[0].mxu0 %v1351
      %v2690 = vpop.f32.mrb[0].mxu0
      %v2691 = vadd.f32 %v588, %v2690
      %v2692 = vpop.f32.mrb[0].mxu0
      %2693 = vmatprep.mubr.f32.mxu0 0.0
      %2694 = vmatmul.mubr.f32.gmra.mrb[0].mxu0 %v1354
      %v2695 = vpop.f32.mrb[0].mxu0
      %v2696 = vadd.f32 %v588, %v2695
      %v2697 = vpop.f32.mrb[0].mxu0
      %2698 = vmatprep.mubr.f32.mxu0 0.0
      %2699 = vmatmul.mubr.f32.gmra.mrb[0].mxu0 %v1357
      %v2700 = vpop.f32.mrb[0].mxu0
      %v2701 = vadd.f32 %v588, %v2700
      %v2702 = vpop.f32.mrb[0].mxu0
      %2703 = vdwg.mxu0
      %v2704 = vmax.f32 %v1426, 0.0
      %v2705 = vmax.f32 %v1431, 0.0
      %v2706 = vmax.f32 %v1436, 0.0
      %v2707 = vmax.f32 %v1441, 0.0
      %v2708 = vmax.f32 %v1446, 0.0
      %v2709 = vmax.f32 %v1451, 0.0
      %v2710 = vmax.f32 %v1456, 0.0
      %v2711 = vmax.f32 %v1461, 0.0
      %v2712 = vmax.f32 %v1466, 0.0
      %v2713 = vmax.f32 %v1471, 0.0
      %v2714 = vmax.f32 %v1476, 0.0
      %v2715 = vmax.f32 %v1481, 0.0
      %v2716 = vmax.f32 %v1486, 0.0
      %v2717 = vmax.f32 %v1491, 0.0
      %v2718 = vmax.f32 %v1496, 0.0
      %v2719 = vmax.f32 %v1501, 0.0
      %v2720 = vmax.f32 %v1506, 0.0
      %v2721 = vmax.f32 %v1511, 0.0
      %v2722 = vmax.f32 %v1516, 0.0
      %v2723 = vmax.f32 %v1521, 0.0
      %v2724 = vmax.f32 %v1526, 0.0
      %v2725 = vmax.f32 %v1531, 0.0
      %v2726 = vmax.f32 %v1536, 0.0
      %v2727 = vmax.f32 %v1541, 0.0
      %v2728 = vmax.f32 %v1546, 0.0
      %v2729 = vmax.f32 %v1551, 0.0
      %v2730 = vmax.f32 %v1556, 0.0
      %v2731 = vmax.f32 %v1561, 0.0
      %v2732 = vmax.f32 %v1566, 0.0
      %v2733 = vmax.f32 %v1571, 0.0
      %v2734 = vmax.f32 %v1576, 0.0
      %v2735 = vmax.f32 %v1581, 0.0
      %v2736 = vmax.f32 %v1586, 0.0
      %v2737 = vmax.f32 %v1591, 0.0
      %v2738 = vmax.f32 %v1596, 0.0
      %v2739 = vmax.f32 %v1601, 0.0
      %v2740 = vmax.f32 %v1606, 0.0
      %v2741 = vmax.f32 %v1611, 0.0
      %v2742 = vmax.f32 %v1616, 0.0
      %v2743 = vmax.f32 %v1621, 0.0
      %v2744 = vmax.f32 %v1626, 0.0
      %v2745 = vmax.f32 %v1631, 0.0
      %v2746 = vmax.f32 %v1636, 0.0
      %v2747 = vmax.f32 %v1641, 0.0
      %v2748 = vmax.f32 %v1646, 0.0
      %v2749 = vmax.f32 %v1651, 0.0
      %v2750 = vmax.f32 %v1656, 0.0
      %v2751 = vmax.f32 %v1661, 0.0
      %v2752 = vmax.f32 %v1666, 0.0
      %v2753 = vmax.f32 %v1671, 0.0
      %v2754 = vmax.f32 %v1676, 0.0
      %v2755 = vmax.f32 %v1681, 0.0
      %v2756 = vmax.f32 %v1686, 0.0
      %v2757 = vmax.f32 %v1691, 0.0
      %v2758 = vmax.f32 %v1696, 0.0
      %v2759 = vmax.f32 %v1701, 0.0
      %v2760 = vmax.f32 %v1706, 0.0
      %v2761 = vmax.f32 %v1711, 0.0
      %v2762 = vmax.f32 %v1716, 0.0
      %v2763 = vmax.f32 %v1721, 0.0
      %v2764 = vmax.f32 %v1726, 0.0
      %v2765 = vmax.f32 %v1731, 0.0
      %v2766 = vmax.f32 %v1736, 0.0
      %v2767 = vmax.f32 %v1741, 0.0
      %v2768 = vmax.f32 %v1746, 0.0
      %v2769 = vmax.f32 %v1751, 0.0
      %v2770 = vmax.f32 %v1756, 0.0
      %v2771 = vmax.f32 %v1761, 0.0
      %v2772 = vmax.f32 %v1766, 0.0
      %v2773 = vmax.f32 %v1771, 0.0
      %v2774 = vmax.f32 %v1776, 0.0
      %v2775 = vmax.f32 %v1781, 0.0
      %v2776 = vmax.f32 %v1786, 0.0
      %v2777 = vmax.f32 %v1791, 0.0
      %v2778 = vmax.f32 %v1796, 0.0
      %v2779 = vmax.f32 %v1801, 0.0
      %v2780 = vmax.f32 %v1806, 0.0
      %v2781 = vmax.f32 %v1811, 0.0
      %v2782 = vmax.f32 %v1816, 0.0
      %v2783 = vmax.f32 %v1821, 0.0
      %v2784 = vmax.f32 %v1826, 0.0
      %v2785 = vmax.f32 %v1831, 0.0
      %v2786 = vmax.f32 %v1836, 0.0
      %v2787 = vmax.f32 %v1841, 0.0
      %v2788 = vmax.f32 %v1846, 0.0
      %v2789 = vmax.f32 %v1851, 0.0
      %v2790 = vmax.f32 %v1856, 0.0
      %v2791 = vmax.f32 %v1861, 0.0
      %v2792 = vmax.f32 %v1866, 0.0
      %v2793 = vmax.f32 %v1871, 0.0
      %v2794 = vmax.f32 %v1876, 0.0
      %v2795 = vmax.f32 %v1881, 0.0
      %v2796 = vmax.f32 %v1886, 0.0
      %v2797 = vmax.f32 %v1891, 0.0
      %v2798 = vmax.f32 %v1896, 0.0
      %v2799 = vmax.f32 %v1901, 0.0
      %v2800 = vmax.f32 %v1906, 0.0
      %v2801 = vmax.f32 %v1911, 0.0
      %v2802 = vmax.f32 %v1916, 0.0
      %v2803 = vmax.f32 %v1921, 0.0
      %v2804 = vmax.f32 %v1926, 0.0
      %v2805 = vmax.f32 %v1931, 0.0
      %v2806 = vmax.f32 %v1936, 0.0
      %v2807 = vmax.f32 %v1941, 0.0
      %v2808 = vmax.f32 %v1946, 0.0
      %v2809 = vmax.f32 %v1951, 0.0
      %v2810 = vmax.f32 %v1956, 0.0
      %v2811 = vmax.f32 %v1961, 0.0
      %v2812 = vmax.f32 %v1966, 0.0
      %v2813 = vmax.f32 %v1971, 0.0
      %v2814 = vmax.f32 %v1976, 0.0
      %v2815 = vmax.f32 %v1981, 0.0
      %v2816 = vmax.f32 %v1986, 0.0
      %v2817 = vmax.f32 %v1991, 0.0
      %v2818 = vmax.f32 %v1996, 0.0
      %v2819 = vmax.f32 %v2001, 0.0
      %v2820 = vmax.f32 %v2006, 0.0
      %v2821 = vmax.f32 %v2011, 0.0
      %v2822 = vmax.f32 %v2016, 0.0
      %v2823 = vmax.f32 %v2021, 0.0
      %v2824 = vmax.f32 %v2026, 0.0
      %v2825 = vmax.f32 %v2031, 0.0
      %v2826 = vmax.f32 %v2036, 0.0
      %v2827 = vmax.f32 %v2041, 0.0
      %v2828 = vmax.f32 %v2046, 0.0
      %v2829 = vmax.f32 %v2051, 0.0
      %v2830 = vmax.f32 %v2056, 0.0
      %v2831 = vmax.f32 %v2061, 0.0
      %v2832 = vmax.f32 %v2066, 0.0
      %v2833 = vmax.f32 %v2071, 0.0
      %v2834 = vmax.f32 %v2076, 0.0
      %v2835 = vmax.f32 %v2081, 0.0
      %v2836 = vmax.f32 %v2086, 0.0
      %v2837 = vmax.f32 %v2091, 0.0
      %v2838 = vmax.f32 %v2096, 0.0
      %v2839 = vmax.f32 %v2101, 0.0
      %v2840 = vmax.f32 %v2106, 0.0
      %v2841 = vmax.f32 %v2111, 0.0
      %v2842 = vmax.f32 %v2116, 0.0
      %v2843 = vmax.f32 %v2121, 0.0
      %v2844 = vmax.f32 %v2126, 0.0
      %v2845 = vmax.f32 %v2131, 0.0
      %v2846 = vmax.f32 %v2136, 0.0
      %v2847 = vmax.f32 %v2141, 0.0
      %v2848 = vmax.f32 %v2146, 0.0
      %v2849 = vmax.f32 %v2151, 0.0
      %v2850 = vmax.f32 %v2156, 0.0
      %v2851 = vmax.f32 %v2161, 0.0
      %v2852 = vmax.f32 %v2166, 0.0
      %v2853 = vmax.f32 %v2171, 0.0
      %v2854 = vmax.f32 %v2176, 0.0
      %v2855 = vmax.f32 %v2181, 0.0
      %v2856 = vmax.f32 %v2186, 0.0
      %v2857 = vmax.f32 %v2191, 0.0
      %v2858 = vmax.f32 %v2196, 0.0
      %v2859 = vmax.f32 %v2201, 0.0
      %v2860 = vmax.f32 %v2206, 0.0
      %v2861 = vmax.f32 %v2211, 0.0
      %v2862 = vmax.f32 %v2216, 0.0
      %v2863 = vmax.f32 %v2221, 0.0
      %v2864 = vmax.f32 %v2226, 0.0
      %v2865 = vmax.f32 %v2231, 0.0
      %v2866 = vmax.f32 %v2236, 0.0
      %v2867 = vmax.f32 %v2241, 0.0
      %v2868 = vmax.f32 %v2246, 0.0
      %v2869 = vmax.f32 %v2251, 0.0
      %v2870 = vmax.f32 %v2256, 0.0
      %v2871 = vmax.f32 %v2261, 0.0
      %v2872 = vmax.f32 %v2266, 0.0
      %v2873 = vmax.f32 %v2271, 0.0
      %v2874 = vmax.f32 %v2276, 0.0
      %v2875 = vmax.f32 %v2281, 0.0
      %v2876 = vmax.f32 %v2286, 0.0
      %v2877 = vmax.f32 %v2291, 0.0
      %v2878 = vmax.f32 %v2296, 0.0
      %v2879 = vmax.f32 %v2301, 0.0
      %v2880 = vmax.f32 %v2306, 0.0
      %v2881 = vmax.f32 %v2311, 0.0
      %v2882 = vmax.f32 %v2316, 0.0
      %v2883 = vmax.f32 %v2321, 0.0
      %v2884 = vmax.f32 %v2326, 0.0
      %v2885 = vmax.f32 %v2331, 0.0
      %v2886 = vmax.f32 %v2336, 0.0
      %v2887 = vmax.f32 %v2341, 0.0
      %v2888 = vmax.f32 %v2346, 0.0
      %v2889 = vmax.f32 %v2351, 0.0
      %v2890 = vmax.f32 %v2356, 0.0
      %v2891 = vmax.f32 %v2361, 0.0
      %v2892 = vmax.f32 %v2366, 0.0
      %v2893 = vmax.f32 %v2371, 0.0
      %v2894 = vmax.f32 %v2376, 0.0
      %v2895 = vmax.f32 %v2381, 0.0
      %v2896 = vmax.f32 %v2386, 0.0
      %v2897 = vmax.f32 %v2391, 0.0
      %v2898 = vmax.f32 %v2396, 0.0
      %v2899 = vmax.f32 %v2401, 0.0
      %v2900 = vmax.f32 %v2406, 0.0
      %v2901 = vmax.f32 %v2411, 0.0
      %v2902 = vmax.f32 %v2416, 0.0
      %v2903 = vmax.f32 %v2421, 0.0
      %v2904 = vmax.f32 %v2426, 0.0
      %v2905 = vmax.f32 %v2431, 0.0
      %v2906 = vmax.f32 %v2436, 0.0
      %v2907 = vmax.f32 %v2441, 0.0
      %v2908 = vmax.f32 %v2446, 0.0
      %v2909 = vmax.f32 %v2451, 0.0
      %v2910 = vmax.f32 %v2456, 0.0
      %v2911 = vmax.f32 %v2461, 0.0
      %v2912 = vmax.f32 %v2466, 0.0
      %v2913 = vmax.f32 %v2471, 0.0
      %v2914 = vmax.f32 %v2476, 0.0
      %v2915 = vmax.f32 %v2481, 0.0
      %v2916 = vmax.f32 %v2486, 0.0
      %v2917 = vmax.f32 %v2491, 0.0
      %v2918 = vmax.f32 %v2496, 0.0
      %v2919 = vmax.f32 %v2501, 0.0
      %v2920 = vmax.f32 %v2506, 0.0
      %v2921 = vmax.f32 %v2511, 0.0
      %v2922 = vmax.f32 %v2516, 0.0
      %v2923 = vmax.f32 %v2521, 0.0
      %v2924 = vmax.f32 %v2526, 0.0
      %v2925 = vmax.f32 %v2531, 0.0
      %v2926 = vmax.f32 %v2536, 0.0
      %v2927 = vmax.f32 %v2541, 0.0
      %v2928 = vmax.f32 %v2546, 0.0
      %v2929 = vmax.f32 %v2551, 0.0
      %v2930 = vmax.f32 %v2556, 0.0
      %v2931 = vmax.f32 %v2561, 0.0
      %v2932 = vmax.f32 %v2566, 0.0
      %v2933 = vmax.f32 %v2571, 0.0
      %v2934 = vmax.f32 %v2576, 0.0
      %v2935 = vmax.f32 %v2581, 0.0
      %v2936 = vmax.f32 %v2586, 0.0
      %v2937 = vmax.f32 %v2591, 0.0
      %v2938 = vmax.f32 %v2596, 0.0
      %v2939 = vmax.f32 %v2601, 0.0
      %v2940 = vmax.f32 %v2606, 0.0
      %v2941 = vmax.f32 %v2611, 0.0
      %v2942 = vmax.f32 %v2616, 0.0
      %v2943 = vmax.f32 %v2621, 0.0
      %v2944 = vmax.f32 %v2626, 0.0
      %v2945 = vmax.f32 %v2631, 0.0
      %v2946 = vmax.f32 %v2636, 0.0
      %v2947 = vmax.f32 %v2641, 0.0
      %v2948 = vmax.f32 %v2646, 0.0
      %v2949 = vmax.f32 %v2651, 0.0
      %v2950 = vmax.f32 %v2656, 0.0
      %v2951 = vmax.f32 %v2661, 0.0
      %v2952 = vmax.f32 %v2666, 0.0
      %v2953 = vmax.f32 %v2671, 0.0
      %v2954 = vmax.f32 %v2676, 0.0
      %v2955 = vmax.f32 %v2681, 0.0
      %v2956 = vmax.f32 %v2686, 0.0
      %v2957 = vmax.f32 %v2691, 0.0
      %v2958 = vmax.f32 %v2696, 0.0
      %v2959 = vmax.f32 %v2701, 0.0
      %v2960 = vld [vmem:[#allocation2] sm:$0xff]
      %v2961 = vadd.f32 %v2704, %v2705
      %v2962 = vadd.f32 %v2961, %v2706
      %v2963 = vadd.f32 %v2962, %v2707
      %v2964 = vadd.f32 %v2963, %v2708
      %v2965 = vadd.f32 %v2964, %v2709
      %v2966 = vadd.f32 %v2965, %v2710
      %v2967 = vadd.f32 %v2966, %v2711
      %v2968 = vadd.f32 %v2967, %v2712
      %v2969 = vadd.f32 %v2968, %v2713
      %v2970 = vadd.f32 %v2969, %v2714
      %v2971 = vadd.f32 %v2970, %v2715
      %v2972 = vadd.f32 %v2971, %v2716
      %v2973 = vadd.f32 %v2972, %v2717
      %v2974 = vadd.f32 %v2973, %v2718
      %v2975 = vadd.f32 %v2974, %v2719
      %v2976 = vadd.f32 %v2975, %v2720
      %v2977 = vadd.f32 %v2976, %v2721
      %v2978 = vadd.f32 %v2977, %v2722
      %v2979 = vadd.f32 %v2978, %v2723
      %v2980 = vadd.f32 %v2979, %v2724
      %v2981 = vadd.f32 %v2980, %v2725
      %v2982 = vadd.f32 %v2981, %v2726
      %v2983 = vadd.f32 %v2982, %v2727
      %v2984 = vadd.f32 %v2983, %v2728
      %v2985 = vadd.f32 %v2984, %v2729
      %v2986 = vadd.f32 %v2985, %v2730
      %v2987 = vadd.f32 %v2986, %v2731
      %v2988 = vadd.f32 %v2987, %v2732
      %v2989 = vadd.f32 %v2988, %v2733
      %v2990 = vadd.f32 %v2989, %v2734
      %v2991 = vadd.f32 %v2990, %v2735
      %v2992 = vrot.slane %v2991, 4
      %v2993 = vadd.f32 %v2991, %v2992
      %v2994 = vrot.slane %v2993, 2
      %v2995 = vadd.f32 %v2993, %v2994
      %v2996 = vrot.slane %v2995, 1
      %v2997 = vadd.f32 %v2995, %v2996
      %v2998 = vadd.f32 %v2736, %v2737
      %v2999 = vadd.f32 %v2998, %v2738
      %v3000 = vadd.f32 %v2999, %v2739
      %v3001 = vadd.f32 %v3000, %v2740
      %v3002 = vadd.f32 %v3001, %v2741
      %v3003 = vadd.f32 %v3002, %v2742
      %v3004 = vadd.f32 %v3003, %v2743
      %v3005 = vadd.f32 %v3004, %v2744
      %v3006 = vadd.f32 %v3005, %v2745
      %v3007 = vadd.f32 %v3006, %v2746
      %v3008 = vadd.f32 %v3007, %v2747
      %v3009 = vadd.f32 %v3008, %v2748
      %v3010 = vadd.f32 %v3009, %v2749
      %v3011 = vadd.f32 %v3010, %v2750
      %v3012 = vadd.f32 %v3011, %v2751
      %v3013 = vadd.f32 %v3012, %v2752
      %v3014 = vadd.f32 %v3013, %v2753
      %v3015 = vadd.f32 %v3014, %v2754
      %v3016 = vadd.f32 %v3015, %v2755
      %v3017 = vadd.f32 %v3016, %v2756
      %v3018 = vadd.f32 %v3017, %v2757
      %v3019 = vadd.f32 %v3018, %v2758
      %v3020 = vadd.f32 %v3019, %v2759
      %v3021 = vadd.f32 %v3020, %v2760
      %v3022 = vadd.f32 %v3021, %v2761
      %v3023 = vadd.f32 %v3022, %v2762
      %v3024 = vadd.f32 %v3023, %v2763
      %v3025 = vadd.f32 %v3024, %v2764
      %v3026 = vadd.f32 %v3025, %v2765
      %v3027 = vadd.f32 %v3026, %v2766
      %v3028 = vadd.f32 %v3027, %v2767
      %v3029 = vrot.slane %v3028, 4
      %v3030 = vadd.f32 %v3028, %v3029
      %v3031 = vrot.slane %v3030, 2
      %v3032 = vadd.f32 %v3030, %v3031
      %v3033 = vrot.slane %v3032, 1
      %v3034 = vadd.f32 %v3032, %v3033
      %v3035 = vadd.f32 %v2768, %v2769
      %v3036 = vadd.f32 %v3035, %v2770
      %v3037 = vadd.f32 %v3036, %v2771
      %v3038 = vadd.f32 %v3037, %v2772
      %v3039 = vadd.f32 %v3038, %v2773
      %v3040 = vadd.f32 %v3039, %v2774
      %v3041 = vadd.f32 %v3040, %v2775
      %v3042 = vadd.f32 %v3041, %v2776
      %v3043 = vadd.f32 %v3042, %v2777
      %v3044 = vadd.f32 %v3043, %v2778
      %v3045 = vadd.f32 %v3044, %v2779
      %v3046 = vadd.f32 %v3045, %v2780
      %v3047 = vadd.f32 %v3046, %v2781
      %v3048 = vadd.f32 %v3047, %v2782
      %v3049 = vadd.f32 %v3048, %v2783
      %v3050 = vadd.f32 %v3049, %v2784
      %v3051 = vadd.f32 %v3050, %v2785
      %v3052 = vadd.f32 %v3051, %v2786
      %v3053 = vadd.f32 %v3052, %v2787
      %v3054 = vadd.f32 %v3053, %v2788
      %v3055 = vadd.f32 %v3054, %v2789
      %v3056 = vadd.f32 %v3055, %v2790
      %v3057 = vadd.f32 %v3056, %v2791
      %v3058 = vadd.f32 %v3057, %v2792
      %v3059 = vadd.f32 %v3058, %v2793
      %v3060 = vadd.f32 %v3059, %v2794
      %v3061 = vadd.f32 %v3060, %v2795
      %v3062 = vadd.f32 %v3061, %v2796
      %v3063 = vadd.f32 %v3062, %v2797
      %v3064 = vadd.f32 %v3063, %v2798
      %v3065 = vadd.f32 %v3064, %v2799
      %v3066 = vrot.slane %v3065, 4
      %v3067 = vadd.f32 %v3065, %v3066
      %v3068 = vrot.slane %v3067, 2
      %v3069 = vadd.f32 %v3067, %v3068
      %v3070 = vrot.slane %v3069, 1
      %v3071 = vadd.f32 %v3069, %v3070
      %v3072 = vadd.f32 %v2800, %v2801
      %v3073 = vadd.f32 %v3072, %v2802
      %v3074 = vadd.f32 %v3073, %v2803
      %v3075 = vadd.f32 %v3074, %v2804
      %v3076 = vadd.f32 %v3075, %v2805
      %v3077 = vadd.f32 %v3076, %v2806
      %v3078 = vadd.f32 %v3077, %v2807
      %v3079 = vadd.f32 %v3078, %v2808
      %v3080 = vadd.f32 %v3079, %v2809
      %v3081 = vadd.f32 %v3080, %v2810
      %v3082 = vadd.f32 %v3081, %v2811
      %v3083 = vadd.f32 %v3082, %v2812
      %v3084 = vadd.f32 %v3083, %v2813
      %v3085 = vadd.f32 %v3084, %v2814
      %v3086 = vadd.f32 %v3085, %v2815
      %v3087 = vadd.f32 %v3086, %v2816
      %v3088 = vadd.f32 %v3087, %v2817
      %v3089 = vadd.f32 %v3088, %v2818
      %v3090 = vadd.f32 %v3089, %v2819
      %v3091 = vadd.f32 %v3090, %v2820
      %v3092 = vadd.f32 %v3091, %v2821
      %v3093 = vadd.f32 %v3092, %v2822
      %v3094 = vadd.f32 %v3093, %v2823
      %v3095 = vadd.f32 %v3094, %v2824
      %v3096 = vadd.f32 %v3095, %v2825
      %v3097 = vadd.f32 %v3096, %v2826
      %v3098 = vadd.f32 %v3097, %v2827
      %v3099 = vadd.f32 %v3098, %v2828
      %v3100 = vadd.f32 %v3099, %v2829
      %v3101 = vadd.f32 %v3100, %v2830
      %v3102 = vadd.f32 %v3101, %v2831
      %v3103 = vrot.slane %v3102, 4
      %v3104 = vadd.f32 %v3102, %v3103
      %v3105 = vrot.slane %v3104, 2
      %v3106 = vadd.f32 %v3104, %v3105
      %v3107 = vrot.slane %v3106, 1
      %v3108 = vadd.f32 %v3106, %v3107
      %v3109 = vadd.f32 %v2832, %v2833
      %v3110 = vadd.f32 %v3109, %v2834
      %v3111 = vadd.f32 %v3110, %v2835
      %v3112 = vadd.f32 %v3111, %v2836
      %v3113 = vadd.f32 %v3112, %v2837
      %v3114 = vadd.f32 %v3113, %v2838
      %v3115 = vadd.f32 %v3114, %v2839
      %v3116 = vadd.f32 %v3115, %v2840
      %v3117 = vadd.f32 %v3116, %v2841
      %v3118 = vadd.f32 %v3117, %v2842
      %v3119 = vadd.f32 %v3118, %v2843
      %v3120 = vadd.f32 %v3119, %v2844
      %v3121 = vadd.f32 %v3120, %v2845
      %v3122 = vadd.f32 %v3121, %v2846
      %v3123 = vadd.f32 %v3122, %v2847
      %v3124 = vadd.f32 %v3123, %v2848
      %v3125 = vadd.f32 %v3124, %v2849
      %v3126 = vadd.f32 %v3125, %v2850
      %v3127 = vadd.f32 %v3126, %v2851
      %v3128 = vadd.f32 %v3127, %v2852
      %v3129 = vadd.f32 %v3128, %v2853
      %v3130 = vadd.f32 %v3129, %v2854
      %v3131 = vadd.f32 %v3130, %v2855
      %v3132 = vadd.f32 %v3131, %v2856
      %v3133 = vadd.f32 %v3132, %v2857
      %v3134 = vadd.f32 %v3133, %v2858
      %v3135 = vadd.f32 %v3134, %v2859
      %v3136 = vadd.f32 %v3135, %v2860
      %v3137 = vadd.f32 %v3136, %v2861
      %v3138 = vadd.f32 %v3137, %v2862
      %v3139 = vadd.f32 %v3138, %v2863
      %v3140 = vrot.slane %v3139, 4
      %v3141 = vadd.f32 %v3139, %v3140
      %v3142 = vrot.slane %v3141, 2
      %v3143 = vadd.f32 %v3141, %v3142
      %v3144 = vrot.slane %v3143, 1
      %v3145 = vadd.f32 %v3143, %v3144
      %v3146 = vadd.f32 %v2864, %v2865
      %v3147 = vadd.f32 %v3146, %v2866
      %v3148 = vadd.f32 %v3147, %v2867
      %v3149 = vadd.f32 %v3148, %v2868
      %v3150 = vadd.f32 %v3149, %v2869
      %v3151 = vadd.f32 %v3150, %v2870
      %v3152 = vadd.f32 %v3151, %v2871
      %v3153 = vadd.f32 %v3152, %v2872
      %v3154 = vadd.f32 %v3153, %v2873
      %v3155 = vadd.f32 %v3154, %v2874
      %v3156 = vadd.f32 %v3155, %v2875
      %v3157 = vadd.f32 %v3156, %v2876
      %v3158 = vadd.f32 %v3157, %v2877
      %v3159 = vadd.f32 %v3158, %v2878
      %v3160 = vadd.f32 %v3159, %v2879
      %v3161 = vadd.f32 %v3160, %v2880
      %v3162 = vadd.f32 %v3161, %v2881
      %v3163 = vadd.f32 %v3162, %v2882
      %v3164 = vadd.f32 %v3163, %v2883
      %v3165 = vadd.f32 %v3164, %v2884
      %v3166 = vadd.f32 %v3165, %v2885
      %v3167 = vadd.f32 %v3166, %v2886
      %v3168 = vadd.f32 %v3167, %v2887
      %v3169 = vadd.f32 %v3168, %v2888
      %v3170 = vadd.f32 %v3169, %v2889
      %v3171 = vadd.f32 %v3170, %v2890
      %v3172 = vadd.f32 %v3171, %v2891
      %v3173 = vadd.f32 %v3172, %v2892
      %v3174 = vadd.f32 %v3173, %v2893
      %v3175 = vadd.f32 %v3174, %v2894
      %v3176 = vadd.f32 %v3175, %v2895
      %v3177 = vrot.slane %v3176, 4
      %v3178 = vadd.f32 %v3176, %v3177
      %v3179 = vrot.slane %v3178, 2
      %v3180 = vadd.f32 %v3178, %v3179
      %v3181 = vrot.slane %v3180, 1
      %v3182 = vadd.f32 %v3180, %v3181
      %v3183 = vadd.f32 %v2896, %v2897
      %v3184 = vadd.f32 %v3183, %v2898
      %v3185 = vadd.f32 %v3184, %v2899
      %v3186 = vadd.f32 %v3185, %v2900
      %v3187 = vadd.f32 %v3186, %v2901
      %v3188 = vadd.f32 %v3187, %v2902
      %v3189 = vadd.f32 %v3188, %v2903
      %v3190 = vadd.f32 %v3189, %v2904
      %v3191 = vadd.f32 %v3190, %v2905
      %v3192 = vadd.f32 %v3191, %v2906
      %v3193 = vadd.f32 %v3192, %v2907
      %v3194 = vadd.f32 %v3193, %v2908
      %v3195 = vadd.f32 %v3194, %v2909
      %v3196 = vadd.f32 %v3195, %v2910
      %v3197 = vadd.f32 %v3196, %v2911
      %v3198 = vadd.f32 %v3197, %v2912
      %v3199 = vadd.f32 %v3198, %v2913
      %v3200 = vadd.f32 %v3199, %v2914
      %v3201 = vadd.f32 %v3200, %v2915
      %v3202 = vadd.f32 %v3201, %v2916
      %v3203 = vadd.f32 %v3202, %v2917
      %v3204 = vadd.f32 %v3203, %v2918
      %v3205 = vadd.f32 %v3204, %v2919
      %v3206 = vadd.f32 %v3205, %v2920
      %v3207 = vadd.f32 %v3206, %v2921
      %v3208 = vadd.f32 %v3207, %v2922
      %v3209 = vadd.f32 %v3208, %v2923
      %v3210 = vadd.f32 %v3209, %v2924
      %v3211 = vadd.f32 %v3210, %v2925
      %v3212 = vadd.f32 %v3211, %v2926
      %v3213 = vadd.f32 %v3212, %v2927
      %v3214 = vrot.slane %v3213, 4
      %v3215 = vadd.f32 %v3213, %v3214
      %v3216 = vrot.slane %v3215, 2
      %v3217 = vadd.f32 %v3215, %v3216
      %v3218 = vrot.slane %v3217, 1
      %v3219 = vadd.f32 %v3217, %v3218
      %v3220 = vadd.f32 %v2928, %v2929
      %v3221 = vadd.f32 %v3220, %v2930
      %v3222 = vadd.f32 %v3221, %v2931
      %v3223 = vadd.f32 %v3222, %v2932
      %v3224 = vadd.f32 %v3223, %v2933
      %v3225 = vadd.f32 %v3224, %v2934
      %v3226 = vadd.f32 %v3225, %v2935
      %v3227 = vadd.f32 %v3226, %v2936
      %v3228 = vadd.f32 %v3227, %v2937
      %v3229 = vadd.f32 %v3228, %v2938
      %v3230 = vadd.f32 %v3229, %v2939
      %v3231 = vadd.f32 %v3230, %v2940
      %v3232 = vadd.f32 %v3231, %v2941
      %v3233 = vadd.f32 %v3232, %v2942
      %v3234 = vadd.f32 %v3233, %v2943
      %v3235 = vadd.f32 %v3234, %v2944
      %v3236 = vadd.f32 %v3235, %v2945
      %v3237 = vadd.f32 %v3236, %v2946
      %v3238 = vadd.f32 %v3237, %v2947
      %v3239 = vadd.f32 %v3238, %v2948
      %v3240 = vadd.f32 %v3239, %v2949
      %v3241 = vadd.f32 %v3240, %v2950
      %v3242 = vadd.f32 %v3241, %v2951
      %v3243 = vadd.f32 %v3242, %v2952
      %v3244 = vadd.f32 %v3243, %v2953
      %v3245 = vadd.f32 %v3244, %v2954
      %v3246 = vadd.f32 %v3245, %v2955
      %v3247 = vadd.f32 %v3246, %v2956
      %v3248 = vadd.f32 %v3247, %v2957
      %v3249 = vadd.f32 %v3248, %v2958
      %v3250 = vadd.f32 %v3249, %v2959
      %v3251 = vrot.slane %v3250, 4
      %v3252 = vadd.f32 %v3250, %v3251
      %v3253 = vrot.slane %v3252, 2
      %v3254 = vadd.f32 %v3252, %v3253
      %v3255 = vrot.slane %v3254, 1
      %v3256 = vadd.f32 %v3254, %v3255
      %vm3265 = vcmask 1041409
      %v3266 = vsel %vm3265, %v3034, %v2997
      %vm3267 = vcmask 1042434
      %v3268 = vsel %vm3267, %v3071, %v3266
      %vm3269 = vcmask 1043459
      %v3270 = vsel %vm3269, %v3108, %v3268
      %vm3271 = vcmask 1044484
      %v3272 = vsel %vm3271, %v3145, %v3270
      %vm3273 = vcmask 1045509
      %v3274 = vsel %vm3273, %v3182, %v3272
      %vm3275 = vcmask 1046534
      %v3276 = vsel %vm3275, %v3219, %v3274
      %vm3277 = vcmask 1047559
      %v3278 = vsel %vm3277, %v3256, %v3276
      %v3280 = vadd.f32 %v2960, %v3278
      %3281 = vst [vmem:[#allocation2] sm:$0xff] %v3280
      // Predicated region
      $region45: #{_forward_impl.1} parent=39 // pred_check
        %p3282 = pneg %p315
      $region46: #{_forward_impl.1} parent=39 // pred_check_branch
        %3284 = sbr.rel (%p3282) target = $region48
      $region47: #{_forward_impl.1} parent=39 // pred_region
        %v3285 = vld [vmem:[#allocation2] sm:$0xff]
        %v3286 = vmul.f32 %v3285, 0.00390625
        %v3287 = vld [vmem:[%s3] sm:$0xff]
        %v3288 = vld [vmem:[%s3 + $0x8] sm:$0xff]
        %v3289 = vld [vmem:[%s3 + $0x10] sm:$0xff]
        %v3290 = vld [vmem:[%s3 + $0x18] sm:$0xff]
        %v3291 = vld [vmem:[%s3 + $0x20] sm:$0xff]
        %v3292 = vld [vmem:[%s3 + $0x28] sm:$0xff]
        %v3293 = vld [vmem:[%s3 + $0x30] sm:$0xff]
        %v3294 = vld [vmem:[%s3 + $0x38] sm:$0xff]
        %v3295 = vld [vmem:[%s3 + $0x40] sm:$0xff]
        %v3296 = vld [vmem:[%s3 + $0x48] sm:$0xff]
        %v3297 = vld [vmem:[%s3 + $0x50] sm:$0xff]
        %v3298 = vld [vmem:[%s3 + $0x58] sm:$0xff]
        %v3299 = vld [vmem:[%s3 + $0x60] sm:$0xff]
        %v3300 = vld [vmem:[%s3 + $0x68] sm:$0xff]
        %v3301 = vld [vmem:[%s3 + $0x70] sm:$0xff]
        %v3302 = vld [vmem:[%s3 + $0x78] sm:$0xff]
        %v3303 = vld [vmem:[%s4] sm:$0x1]
        %v3305 = vlaneseq
        %v3306 = vshrl.u32 %v3305, 7
        %v3307 = vsub.s32 0, %v3306
        %v3308 = vrot.slane %v3303, %v3307
        %3310 = vmatprep.subr.mxu0 0.0
        %3311 = vmatpush1.msra.mxu0 %v3287
        %3312 = vmatprep.subr.mxu0 0.0
        %3313 = vmatpush1.msra.mxu0 %v3288
        %3314 = vmatprep.subr.mxu0 0.0
        %3315 = vmatpush1.msra.mxu0 %v3289
        %3316 = vmatprep.subr.mxu0 0.0
        %3317 = vmatpush1.msra.mxu0 %v3290
        %3318 = vmatprep.subr.mxu0 0.0
        %3319 = vmatpush1.msra.mxu0 %v3291
        %3320 = vmatprep.subr.mxu0 0.0
        %3321 = vmatpush1.msra.mxu0 %v3292
        %3322 = vmatprep.subr.mxu0 0.0
        %3323 = vmatpush1.msra.mxu0 %v3293
        %3324 = vmatprep.subr.mxu0 0.0
        %3325 = vmatpush1.msra.mxu0 %v3294
        %3326 = vmatprep.subr.mxu0 0.0
        %3327 = vmatpush1.msra.mxu0 %v3295
        %3328 = vmatprep.subr.mxu0 0.0
        %3329 = vmatpush1.msra.mxu0 %v3296
        %3330 = vmatprep.subr.mxu0 0.0
        %3331 = vmatpush1.msra.mxu0 %v3297
        %3332 = vmatprep.subr.mxu0 0.0
        %3333 = vmatpush1.msra.mxu0 %v3298
        %3334 = vmatprep.subr.mxu0 0.0
        %3335 = vmatpush1.msra.mxu0 %v3299
        %3336 = vmatprep.subr.mxu0 0.0
        %3337 = vmatpush1.msra.mxu0 %v3300
        %3338 = vmatprep.subr.mxu0 0.0
        %3339 = vmatpush1.msra.mxu0 %v3301
        %3340 = vmatprep.subr.mxu0 0.0
        %3341 = vmatpush1.msra.mxu0 %v3302
        %3342 = vmatprep.subr.mxu0 0.0
        %3343 = vmatpush1.msra.mxu0 0.0
        %3344 = vmatprep.subr.mxu0 0.0
        %3345 = vmatpush1.msra.mxu0 0.0
        %3346 = vmatprep.subr.mxu0 0.0
        %3347 = vmatpush1.msra.mxu0 0.0
        %3348 = vmatprep.subr.mxu0 0.0
        %3349 = vmatpush1.msra.mxu0 0.0
        %3350 = vmatprep.subr.mxu0 0.0
        %3351 = vmatpush1.msra.mxu0 0.0
        %3352 = vmatprep.subr.mxu0 0.0
        %3353 = vmatpush1.msra.mxu0 0.0
        %3354 = vmatprep.subr.mxu0 0.0
        %3355 = vmatpush1.msra.mxu0 0.0
        %3356 = vmatprep.subr.mxu0 0.0
        %3357 = vmatpush1.msra.mxu0 0.0
        %3358 = vmatprep.subr.mxu0 0.0
        %3359 = vmatpush1.msra.mxu0 0.0
        %3360 = vmatprep.subr.mxu0 0.0
        %3361 = vmatpush1.msra.mxu0 0.0
        %3362 = vmatprep.subr.mxu0 0.0
        %3363 = vmatpush1.msra.mxu0 0.0
        %3364 = vmatprep.subr.mxu0 0.0
        %3365 = vmatpush1.msra.mxu0 0.0
        %3366 = vmatprep.subr.mxu0 0.0
        %3367 = vmatpush1.msra.mxu0 0.0
        %3368 = vmatprep.subr.mxu0 0.0
        %3369 = vmatpush1.msra.mxu0 0.0
        %3370 = vmatprep.subr.mxu0 0.0
        %3371 = vmatpush1.msra.mxu0 0.0
        %3372 = vmatprep.subr.mxu0 0.0
        %3373 = vmatpush1.msra.mxu0 0.0
        %3374 = vmatprep.mubr.f32.mxu0 0.0
        %3375 = vmatmul.mubr.f32.gmra.mrb[0].mxu0 %v3286
        %v3376 = vpop.f32.mrb[0].mxu0
        %v3377 = vadd.f32 %v3308, %v3376
        %v3378 = vpop.f32.mrb[0].mxu0
        %3379 = vdwg.mxu0
        %s3380 = smul.u32 %s24, 8
        %s3381 = scalar_lea.vmem [#allocation3], %s3380
        %3382 = vst [vmem:[%s3381] sm:$0xff] %v3377
      $region48: #{_forward_impl.1} parent=39 // pred_fallthru
        _
      %p3383 = scmp.eq.s32.totalorder %s24, 1
      %p3384 = pnand %p315, %p3383
      %p3385 = pneg %p3384
      // Predicated region
      $region49: #{_forward_impl.1} parent=39 // pred_check
        _
      $region50: #{_forward_impl.1} parent=39 // pred_check_branch
        %3387 = sbr.rel (%p3384) target = $region52
      $region51: #{_forward_impl.1} parent=39 // pred_region
        %v3388 = vld [vmem:[#allocation3] sm:$0xff]
        %v3389 = vld [vmem:[#allocation3 + $0x8] sm:$0xff]
        %v3390 = vadd.f32 %v3388, %v3389
        %v3391 = vrcp.pop 2.0
        %v3392 = vmul.f32 %v3390, %v3391
        %3393 = vst [vmem:[%s310] sm:$0xff] %v3392
        %v3394 = vsub.f32 %v3388, %v3392
        %v3395 = vsub.f32 %v3389, %v3392
        %v3396 = vmul.f32 %v3394, %v3394
        %v3397 = vmul.f32 %v3395, %v3395
        %v3398 = vadd.f32 %v3396, %v3397
        %v3399 = vrsqrt.pop %v3398
        %v3400 = vmul.f32 %v3398, %v3399
        %vm3401 = vcmp.eq.f32.partialorder %v3398, inf
        %v3402 = vsel %vm3401, %v3398, %v3400
        %vm3403 = vcmp.eq.f32.partialorder %v3398, 0.0
        %v3404 = vand.u32 %v3398, 2147483648
        %v3405 = vsel %vm3403, %v3404, %v3402
        %3406 = vst [vmem:[%s314] sm:$0xff] %v3405
      $region52: #{_forward_impl.1} parent=39 // pred_fallthru
        _
      %p3407 = scmp.lt.s32.totalorder %s23, 0
      %s3408 = scalar_select %p3407, %s23, 0
      %s3409 = smul.addr %s3408, 8
      %s3410 = scalar_lea.vmem %s5, %s3409
      %p3411 = scmp.lt.s32.totalorder %s23, 0
      %s3412 = scalar_select %p3411, %s23, 0
      %s3413 = smul.addr %s3412, 8
      %s3414 = scalar_lea.vmem %s6, %s3413
      // Predicated region
      $region53: #{_forward_impl.1} parent=39 // pred_check
        %p3415 = pneg %p169
      $region54: #{_forward_impl.1} parent=39 // pred_check_branch
        %3417 = sbr.rel (%p3415) target = $region56
      $region55: #{_forward_impl.1} parent=39 // pred_region
        _
      $region56: #{_forward_impl.1} parent=39 // pred_fallthru
        _
      // Predicated region
      $region57: #{_forward_impl.1} parent=39 // pred_check
        %p3418 = pneg %p195
      $region58: #{_forward_impl.1} parent=39 // pred_check_branch
        %3420 = sbr.rel (%p3418) target = $region60
      $region59: #{_forward_impl.1} parent=39 // pred_region
        _
      $region60: #{_forward_impl.1} parent=39 // pred_fallthru
        _
      // Predicated region
      $region61: #{_forward_impl.1} parent=39 // pred_check
        %p3421 = pneg %p169
      $region62: #{_forward_impl.1} parent=39 // pred_check_branch
        %3423 = sbr.rel (%p3421) target = $region64
      $region63: #{_forward_impl.1} parent=39 // pred_region
        %p3424 = scmp.lt.s32.totalorder %s23, 0
        %s3425 = scalar_select %p3424, %s23, 0
        %s3426 = smul.addr %s3425, 8
        %s3427 = scalar_lea.vmem %s5, %s3426
      $region64: #{_forward_impl.1} parent=39 // pred_fallthru
        _
      // Predicated region
      $region65: #{_forward_impl.1} parent=39 // pred_check
        %p3428 = pneg %p195
      $region66: #{_forward_impl.1} parent=39 // pred_check_branch
        %3430 = sbr.rel (%p3428) target = $region68
      $region67: #{_forward_impl.1} parent=39 // pred_region
        %p3431 = scmp.lt.s32.totalorder %s23, 0
        %s3432 = scalar_select %p3431, %s23, 0
        %s3433 = smul.addr %s3432, 8
        %s3434 = scalar_lea.vmem %s6, %s3433
      $region68: #{_forward_impl.1} parent=39 // pred_fallthru
        _
    $region40: #{_forward_impl.1} parent=5 // pred_fallthru
      _
    %p3435 = scmp.le.s32.totalorder 2, %s13
    // Predicated region
    $region69: #{_forward_impl.1} parent=5 // pred_check
      %p3436 = pneg %p3435
    $region70: #{_forward_impl.1} parent=5 // pred_check_branch
      %3438 = sbr.rel (%p3436) target = $region72
    $region71: #{_forward_impl.1} parent=5 // pred_region
      %s3439 = ssub.s32 %s13, 2
    $region72: #{_forward_impl.1} parent=5 // pred_fallthru
      _
  $region6: #{_forward_impl.1} parent=0 // loop_footer
    %s17 = sadd.s32 1, %s13
  $region7: #{_forward_impl.1} parent=0 // loop_footer_branch
    %12 = sbr.rel target = $region3
  $region8: #{_forward_impl.1} parent=0 // loop_exit
    _

</llo_original>
